<compile_context>
chip_gen: v6e
topology: v6e:2x2x1
jax: 0.10.0
libtpu: 0.0.40
codegen_flags: <defaults>
</compile_context>

<pallas_src>
import math

import jax
import jax.numpy as jnp
from jax.experimental import pallas as pl
from jax.experimental.pallas import tpu as pltpu

# ----------------------------- configuration --------------------------------
B, L = 2, 8            # batch, sequence length
EMB = 32               # embedding_size
HID = 32               # hidden_size
NUM_LAYERS = 2
NUM_HEADS = 4
KEY_DEPTH = 32         # total_key_depth
VAL_DEPTH = 32         # total_value_depth
FILTER = 64            # filter_size
MAX_LEN = 64           # max_length for timing signal
EPS = 1e-6             # LayerNorm eps

BL = B * L                         # batch folded into rows
S = NUM_HEADS * BL                 # head+batch stacked attention rows
HK = KEY_DEPTH // NUM_HEADS
HV = VAL_DEPTH // NUM_HEADS
QKV_W = 2 * KEY_DEPTH + VAL_DEPTH  # fused QKV projection width

# packed matmul-weight slab (128 lanes wide), row offsets
W_LANES = 128
PER_LAYER_W_ROWS = HID + VAL_DEPTH + 3 * HID + 3 * FILTER      # qkv|wo|w1|w2
W_ROWS = EMB + NUM_LAYERS * PER_LAYER_W_ROWS

# packed small-vector slab (64 lanes wide), row offsets
VEC_LANES = 64
VEC_TIMING = 0                      # rows [0, BL): timing signal (tiled per batch)
VEC_LAYER = BL                      # + l*6: ln1_g, ln1_b, ln2_g, ln2_b, c1_b, c2_b
VEC_PER_LAYER = 6
VEC_FINAL = BL + NUM_LAYERS * VEC_PER_LAYER
VEC_ROWS = VEC_FINAL + 2

# TODO(synk): input/layer/attention/relu dropouts are identity at inference
# (p=0.0); no RNG path implemented.


# ------------------------------ fused kernel --------------------------------

def _encoder_kernel(x_ref, mask_ref, w_ref, vec_ref, o_ref):
    """Whole-encoder forward, batch folded, fully resident in VMEM.

    x_ref:    (B*L, EMB)   flattened inputs
    mask_ref: (S, S)       float mask codes: 0 attend, 1 padded key, 2 cross-block
    w_ref:    (W_ROWS, 128) packed matmul weights (static row/lane slices)
    vec_ref:  (VEC_ROWS, 64) timing rows + LN gammas/betas + conv biases
    o_ref:    (B*L, HID)
    """
    scale = float(HK) ** -0.5

    def layer_norm(v, g_row, b_row):
        # PyTorch custom LN: unbiased std (divide by H-1), denominator (std + eps).
        g = vec_ref[g_row:g_row + 1, :HID]
        b = vec_ref[b_row:b_row + 1, :HID]
        mean = jnp.mean(v, axis=-1, keepdims=True)
        d = v - mean
        var = jnp.sum(d * d, axis=-1, keepdims=True) / (HID - 1)
        inv = pl.reciprocal(jnp.sqrt(var) + EPS, approx=True)   # EUP slot
        return g * d * inv + b

    # ---- hoisted once-per-forward helpers ----
    mcode = mask_ref[...]                    # (S, S)
    m_cross = mcode >= 1.5                   # different (head, batch) block
    m_pad = mcode >= 0.5                     # padded key (or cross-block)

    pos = jax.lax.broadcasted_iota(jnp.int32, (BL, 1), 0)
    is_first = (pos % L) == 0                # first row of each sequence
    is_last = (pos % L) == (L - 1)           # last row of each sequence

    # ---- embedding projection + timing signal ----
    x = jnp.dot(x_ref[...], w_ref[0:EMB, :HID],
                preferred_element_type=jnp.float32)             # (BL, HID)
    x = x + vec_ref[VEC_TIMING:VEC_TIMING + BL, :HID]

    for l in range(NUM_LAYERS):                                  # static unroll
        wbase = EMB + l * PER_LAYER_W_ROWS
        off_qkv = wbase
        off_wo = off_qkv + HID
        off_w1 = off_wo + VAL_DEPTH
        off_w2 = off_w1 + 3 * HID
        vbase = VEC_LAYER + l * VEC_PER_LAYER

        # ================= multi-head-attention sublayer (pre-LN) ============
        xn = layer_norm(x, vbase + 0, vbase + 1)
        qkv = jnp.dot(xn, w_ref[off_qkv:off_qkv + HID, :QKV_W],
                      preferred_element_type=jnp.float32)        # (BL, 96)
        q = qkv[:, :KEY_DEPTH] * scale                           # scale hoisted
        k = qkv[:, KEY_DEPTH:2 * KEY_DEPTH]
        v = qkv[:, 2 * KEY_DEPTH:]

        # stack heads along sublanes: rows ordered (head, batch*L + pos)
        q_stk = jnp.concatenate(
            [q[:, h * HK:(h + 1) * HK] for h in range(NUM_HEADS)], axis=0)  # (S, hk)
        k_stk = jnp.concatenate(
            [k[:, h * HK:(h + 1) * HK] for h in range(NUM_HEADS)], axis=0)
        v_stk = jnp.concatenate(
            [v[:, h * HV:(h + 1) * HV] for h in range(NUM_HEADS)], axis=0)

        logits = jax.lax.dot_general(q_stk, k_stk, (((1,), (1,)), ((), ())),
                                     preferred_element_type=jnp.float32)    # (S, S)
        # one combined mask select: padded keys -> -1e18 (masked_fill parity),
        # cross-(head,batch) blocks -> -2e18 (strictly below, keeps the
        # fully-padded-row uniform-softmax behaviour confined to its own keys)
        logits = jnp.where(m_cross, -2e18, jnp.where(m_pad, -1e18, logits))
        lmax = jnp.max(logits, axis=-1, keepdims=True)
        e = jnp.exp(logits - lmax)
        p = e * pl.reciprocal(jnp.sum(e, axis=-1, keepdims=True), approx=True)
        ctx = jnp.dot(p, v_stk, preferred_element_type=jnp.float32)          # (S, hv)

        # merge-heads + output projection: per-head sublane slices of ctx,
        # accumulated straight onto the residual stream.
        for h in range(NUM_HEADS):
            x = x + jnp.dot(ctx[h * BL:(h + 1) * BL, :],
                            w_ref[off_wo + h * HV:off_wo + (h + 1) * HV, :HID],
                            preferred_element_type=jnp.float32)

        # ============ position-wise FFN ('cc' convs, padding='both') =========
        xn = layer_norm(x, vbase + 2, vbase + 3)
        # +/-1 row shifts via XLU roll; zero the sequence-boundary rows (also
        # prevents leakage across the folded batch blocks).
        x_prev = jnp.where(is_first, 0.0, pltpu.roll(xn, shift=1, axis=0))
        x_next = jnp.where(is_last, 0.0, pltpu.roll(xn, shift=BL - 1, axis=0))
        x_cat = jnp.concatenate([x_prev, xn, x_next], axis=1)               # (BL, 3H)
        hmid = jnp.dot(x_cat, w_ref[off_w1:off_w1 + 3 * HID, :FILTER],
                       preferred_element_type=jnp.float32)
        hmid = jnp.maximum(hmid + vec_ref[vbase + 4:vbase + 5, :FILTER], 0.0)

        h_prev = jnp.where(is_first, 0.0, pltpu.roll(hmid, shift=1, axis=0))
        h_next = jnp.where(is_last, 0.0, pltpu.roll(hmid, shift=BL - 1, axis=0))
        h_cat = jnp.concatenate([h_prev, hmid, h_next], axis=1)             # (BL, 3F)
        y = jnp.dot(h_cat, w_ref[off_w2:off_w2 + 3 * FILTER, :HID],
                    preferred_element_type=jnp.float32)
        x = x + y + vec_ref[vbase + 5:vbase + 6, :HID]

    # ---- final LayerNorm, single store ----
    o_ref[...] = layer_norm(x, VEC_FINAL, VEC_FINAL + 1)


# ----------------------------- model (glue) ---------------------------------

def gen_timing_signal(length, channels, min_timescale=1.0, max_timescale=1.0e4):
    position = jnp.arange(length, dtype=jnp.float32)
    num_timescales = channels // 2
    log_timescale_increment = (math.log(float(max_timescale) / float(min_timescale))
                               / max(float(num_timescales) - 1.0, 1.0))
    inv_timescales = min_timescale * jnp.exp(
        jnp.arange(num_timescales, dtype=jnp.float32) * -log_timescale_increment)
    scaled_time = position[:, None] * inv_timescales[None, :]
    signal = jnp.concatenate([jnp.sin(scaled_time), jnp.cos(scaled_time)], axis=1)
    signal = jnp.pad(signal, ((0, 0), (0, channels % 2)))
    return signal.reshape(1, length, channels).astype(jnp.float32)


def init_params(key):
    ks = jax.random.split(key, 8)

    def dense(k, shape, scale=0.05):
        return scale * jax.random.normal(k, shape, jnp.float32)

    nl = NUM_LAYERS
    return {
        "w_emb": dense(ks[0], (EMB, HID)),                        # Linear(E->H, bias=False)
        "timing": gen_timing_signal(MAX_LEN, HID),                # (1, MAX_LEN, H)
        "ln1_g": jnp.ones((nl, 1, HID), jnp.float32),
        "ln1_b": jnp.zeros((nl, 1, HID), jnp.float32),
        "w_qkv": dense(ks[1], (nl, HID, QKV_W)),                  # fused Q|K|V (bias-free)
        "w_o": dense(ks[2], (nl, VAL_DEPTH, HID)),
        "ln2_g": jnp.ones((nl, 1, HID), jnp.float32),
        "ln2_b": jnp.zeros((nl, 1, HID), jnp.float32),
        "conv1_w": dense(ks[3], (nl, 3, HID, FILTER)),            # (layer, tap, Cin, Cout)
        "conv1_b": dense(ks[4], (nl, 1, FILTER)),
        "conv2_w": dense(ks[5], (nl, 3, FILTER, HID)),
        "conv2_b": dense(ks[6], (nl, 1, HID)),
        "ln_f_g": jnp.ones((1, HID), jnp.float32),
        "ln_f_b": jnp.zeros((1, HID), jnp.float32),
    }


def _pad_lanes(a, lanes):
    return jnp.pad(a, ((0, 0), (0, lanes - a.shape[1])))


def pack_params(params, seq_len, batch):
    """Pack the 14 parameter arrays into two flat f32 slabs (fewer, larger DMAs)."""
    # matmul weights: pad to 128 lanes, stack along sublanes (im2col'd convs)
    blocks = [_pad_lanes(params["w_emb"], W_LANES)]
    for l in range(NUM_LAYERS):
        blocks.append(_pad_lanes(params["w_qkv"][l], W_LANES))
        blocks.append(_pad_lanes(params["w_o"][l], W_LANES))
        blocks.append(_pad_lanes(params["conv1_w"][l].reshape(3 * HID, FILTER), W_LANES))
        blocks.append(_pad_lanes(params["conv2_w"][l].reshape(3 * FILTER, HID), W_LANES))
    w_big = jnp.concatenate(blocks, axis=0)                       # (W_ROWS, 128)

    # timing rows (tiled per batch) + per-layer vectors + final LN, 64 lanes
    timing = jnp.tile(params["timing"][0, :seq_len, :], (batch, 1))   # (BL, HID)
    rows = [_pad_lanes(timing, VEC_LANES)]
    for l in range(NUM_LAYERS):
        rows += [_pad_lanes(params["ln1_g"][l], VEC_LANES),
                 _pad_lanes(params["ln1_b"][l], VEC_LANES),
                 _pad_lanes(params["ln2_g"][l], VEC_LANES),
                 _pad_lanes(params["ln2_b"][l], VEC_LANES),
                 _pad_lanes(params["conv1_b"][l], VEC_LANES),
                 _pad_lanes(params["conv2_b"][l], VEC_LANES)]
    rows += [_pad_lanes(params["ln_f_g"], VEC_LANES),
             _pad_lanes(params["ln_f_b"], VEC_LANES)]
    vec_buf = jnp.concatenate(rows, axis=0)                       # (VEC_ROWS, 64)
    return w_big, vec_buf


def encoder_forward(params, inputs, mask_bool):
    batch, seq_len, emb = inputs.shape
    assert (batch, seq_len, emb) == (B, L, EMB)

    w_big, vec_buf = pack_params(params, seq_len, batch)
    assert w_big.shape == (W_ROWS, W_LANES) and vec_buf.shape == (VEC_ROWS, VEC_LANES)

    # combined mask codes for the head+batch-stacked (S, S) score matrix:
    #   0 -> attend, 1 -> padded key (in-block), 2 -> different (head,batch) block
    r = jnp.arange(S)
    c = jnp.arange(S)
    same_block = (r[:, None] // seq_len) == (c[None, :] // seq_len)
    pad_c = mask_bool[(c // seq_len) % batch, 0, c % seq_len]     # (S,)
    mask_code = jnp.where(same_block,
                          jnp.where(pad_c[None, :], 1.0, 0.0),
                          2.0).astype(jnp.float32)

    x2d = inputs.reshape(batch * seq_len, emb)

    # TODO(synk): on v7x the folded batch leaves the second TensorCore idle;
    # a core_map split would be needed to feed both cores (kernel is launch-bound
    # anyway at these shapes).
    out2d = pl.pallas_call(
        _encoder_kernel,
        out_shape=jax.ShapeDtypeStruct((BL, HID), jnp.float32),
    )(x2d, mask_code, w_big, vec_buf)
    return out2d.reshape(batch, seq_len, HID)


# --------------------------------- main --------------------------------------

if __name__ == "__main__":
    key = jax.random.PRNGKey(0)
    k_in, k_p = jax.random.split(key)

    inputs = jax.random.normal(k_in, (B, L, EMB), jnp.float32)
    lengths = jnp.array([L, L - 2])
    # padding mask, True where key position is padding: shape (B, 1, L)
    mask = (jnp.arange(L)[None, :] >= lengths[:, None])[:, None, :]

    params = init_params(k_p)

    out = jax.jit(encoder_forward)(params, inputs, mask)
    out = jax.block_until_ready(out)

    assert out.shape == (B, L, HID)
    assert out.dtype == jnp.float32
    assert bool(jnp.all(jnp.isfinite(out)))
    print("KERNEL_OK")
</pallas_src>

<mosaic_0001>
module attributes {stable_mosaic.version = 11 : i64} {
  func.func @_encoder_kernel(%arg0: memref<16x32xf32, #tpu.memory_space<vmem>>, %arg1: memref<64x64xf32, #tpu.memory_space<vmem>>, %arg2: memref<736x128xf32, #tpu.memory_space<vmem>>, %arg3: memref<30x64xf32, #tpu.memory_space<vmem>>, %arg4: memref<16x32xf32, #tpu.memory_space<vmem>>) attributes {dimension_semantics = [], scalar_prefetch = 0 : i64, scratch_operands = 0 : i64, tpu.core_type = #tpu.core_type<tc>} {
    %c0 = arith.constant 0 : index
    %c0_0 = arith.constant 0 : index
    %0 = vector.load %arg1[%c0, %c0_0] : memref<64x64xf32, #tpu.memory_space<vmem>>, vector<64x64xf32>
    %cst = arith.constant 1.500000e+00 : f32
    %1 = vector.broadcast %cst : f32 to vector<64x64xf32>
    %2 = arith.cmpf oge, %0, %1 : vector<64x64xf32>
    %cst_1 = arith.constant 5.000000e-01 : f32
    %3 = vector.broadcast %cst_1 : f32 to vector<64x64xf32>
    %4 = arith.cmpf oge, %0, %3 : vector<64x64xf32>
    %5 = tpu.iota {dimensions = array<i32: 0>} : vector<16x1xi32>
    %c8_i32 = arith.constant 8 : i32
    %c0_i32 = arith.constant 0 : i32
    %6 = arith.cmpi eq, %c8_i32, %c0_i32 : i32
    %c1_i32 = arith.constant 1 : i32
    %7 = arith.select %6, %c1_i32, %c8_i32 : i32
    %8 = vector.broadcast %7 : i32 to vector<16x1xi32>
    %9 = arith.remsi %5, %8 : vector<16x1xi32>
    %c0_i32_2 = arith.constant 0 : i32
    %10 = vector.broadcast %c0_i32_2 : i32 to vector<16x1xi32>
    %11 = arith.cmpi ne, %9, %10 : vector<16x1xi32>
    %c0_i32_3 = arith.constant 0 : i32
    %12 = vector.broadcast %c0_i32_3 : i32 to vector<16x1xi32>
    %13 = arith.cmpi slt, %9, %12 : vector<16x1xi32>
    %c0_i32_4 = arith.constant 0 : i32
    %14 = arith.cmpi slt, %7, %c0_i32_4 : i32
    %15 = vector.broadcast %14 : i1 to vector<16x1xi1>
    %16 = vector.broadcast %15 : vector<16x1xi1> to vector<16x1xi1>
    %17 = arith.xori %13, %16 : vector<16x1xi1>
    %18 = arith.andi %17, %11 : vector<16x1xi1>
    %19 = vector.broadcast %7 : i32 to vector<16x1xi32>
    %20 = arith.addi %9, %19 : vector<16x1xi32>
    %21 = arith.select %18, %20, %9 : vector<16x1xi1>, vector<16x1xi32>
    %c0_i32_5 = arith.constant 0 : i32
    %22 = vector.broadcast %c0_i32_5 : i32 to vector<16x1xi32>
    %23 = arith.cmpi eq, %21, %22 : vector<16x1xi32>
    %c8_i32_6 = arith.constant 8 : i32
    %c0_i32_7 = arith.constant 0 : i32
    %24 = arith.cmpi eq, %c8_i32_6, %c0_i32_7 : i32
    %c1_i32_8 = arith.constant 1 : i32
    %25 = arith.select %24, %c1_i32_8, %c8_i32_6 : i32
    %26 = vector.broadcast %25 : i32 to vector<16x1xi32>
    %27 = arith.remsi %5, %26 : vector<16x1xi32>
    %c0_i32_9 = arith.constant 0 : i32
    %28 = vector.broadcast %c0_i32_9 : i32 to vector<16x1xi32>
    %29 = arith.cmpi ne, %27, %28 : vector<16x1xi32>
    %c0_i32_10 = arith.constant 0 : i32
    %30 = vector.broadcast %c0_i32_10 : i32 to vector<16x1xi32>
    %31 = arith.cmpi slt, %27, %30 : vector<16x1xi32>
    %c0_i32_11 = arith.constant 0 : i32
    %32 = arith.cmpi slt, %25, %c0_i32_11 : i32
    %33 = vector.broadcast %32 : i1 to vector<16x1xi1>
    %34 = vector.broadcast %33 : vector<16x1xi1> to vector<16x1xi1>
    %35 = arith.xori %31, %34 : vector<16x1xi1>
    %36 = arith.andi %35, %29 : vector<16x1xi1>
    %37 = vector.broadcast %25 : i32 to vector<16x1xi32>
    %38 = arith.addi %27, %37 : vector<16x1xi32>
    %39 = arith.select %36, %38, %27 : vector<16x1xi1>, vector<16x1xi32>
    %c7_i32 = arith.constant 7 : i32
    %40 = vector.broadcast %c7_i32 : i32 to vector<16x1xi32>
    %41 = arith.cmpi eq, %39, %40 : vector<16x1xi32>
    %c0_12 = arith.constant 0 : index
    %c0_13 = arith.constant 0 : index
    %42 = vector.load %arg0[%c0_12, %c0_13] : memref<16x32xf32, #tpu.memory_space<vmem>>, vector<16x32xf32>
    %c0_14 = arith.constant 0 : index
    %c0_15 = arith.constant 0 : index
    %43 = vector.load %arg2[%c0_14, %c0_15] : memref<736x128xf32, #tpu.memory_space<vmem>>, vector<32x32xf32>
    %cst_16 = arith.constant dense<0.000000e+00> : vector<16x32xf32>
    %44 = tpu.matmul %42, %43, %cst_16 {dimension_numbers = #tpu.dot_dimension_numbers<[1], [0], [0], [1], [0, 0, 1, 1], [], []>} : vector<16x32xf32>, vector<32x32xf32>, vector<16x32xf32> -> vector<16x32xf32>
    %c0_17 = arith.constant 0 : index
    %c0_18 = arith.constant 0 : index
    %45 = vector.load %arg3[%c0_17, %c0_18] : memref<30x64xf32, #tpu.memory_space<vmem>>, vector<16x32xf32>
    %46 = arith.addf %44, %45 : vector<16x32xf32>
    %c16 = arith.constant 16 : index
    %c0_19 = arith.constant 0 : index
    %47 = vector.load %arg3[%c16, %c0_19] : memref<30x64xf32, #tpu.memory_space<vmem>>, vector<1x32xf32>
    %c17 = arith.constant 17 : index
    %c0_20 = arith.constant 0 : index
    %48 = vector.load %arg3[%c17, %c0_20] : memref<30x64xf32, #tpu.memory_space<vmem>>, vector<1x32xf32>
    %cst_21 = arith.constant dense<0.000000e+00> : vector<16xf32>
    %49 = vector.multi_reduction <add>, %46, %cst_21 [1] : vector<16x32xf32> to vector<16xf32>
    %50 = vector.shape_cast %49 : vector<16xf32> to vector<16x1xf32>
    %cst_22 = arith.constant 3.200000e+01 : f32
    %51 = vector.broadcast %cst_22 : f32 to vector<16x1xf32>
    %52 = arith.divf %50, %51 : vector<16x1xf32>
    %53 = vector.broadcast %52 : vector<16x1xf32> to vector<16x32xf32>
    %54 = arith.subf %46, %53 : vector<16x32xf32>
    %55 = arith.mulf %54, %54 : vector<16x32xf32>
    %cst_23 = arith.constant dense<0.000000e+00> : vector<16xf32>
    %56 = vector.multi_reduction <add>, %55, %cst_23 [1] : vector<16x32xf32> to vector<16xf32>
    %57 = vector.shape_cast %56 : vector<16xf32> to vector<16x1xf32>
    %cst_24 = arith.constant 3.100000e+01 : f32
    %58 = vector.broadcast %cst_24 : f32 to vector<16x1xf32>
    %59 = arith.divf %57, %58 : vector<16x1xf32>
    %60 = math.sqrt %59 : vector<16x1xf32>
    %cst_25 = arith.constant 9.99999997E-7 : f32
    %61 = vector.broadcast %cst_25 : f32 to vector<16x1xf32>
    %62 = arith.addf %60, %61 : vector<16x1xf32>
    %63 = tpu.reciprocal %62 {approx = true} : vector<16x1xf32> -> vector<16x1xf32>
    %64 = vector.broadcast %47 : vector<1x32xf32> to vector<16x32xf32>
    %65 = arith.mulf %64, %54 : vector<16x32xf32>
    %66 = vector.broadcast %63 : vector<16x1xf32> to vector<16x32xf32>
    %67 = arith.mulf %65, %66 : vector<16x32xf32>
    %68 = vector.broadcast %48 : vector<1x32xf32> to vector<16x32xf32>
    %69 = arith.addf %67, %68 : vector<16x32xf32>
    %c32 = arith.constant 32 : index
    %c0_26 = arith.constant 0 : index
    %70 = vector.load %arg2[%c32, %c0_26] : memref<736x128xf32, #tpu.memory_space<vmem>>, vector<32x96xf32>
    %cst_27 = arith.constant dense<0.000000e+00> : vector<16x96xf32>
    %71 = tpu.matmul %69, %70, %cst_27 {dimension_numbers = #tpu.dot_dimension_numbers<[1], [0], [0], [1], [0, 0, 1, 1], [], []>} : vector<16x32xf32>, vector<32x96xf32>, vector<16x96xf32> -> vector<16x96xf32>
    %72 = vector.extract_strided_slice %71 {offsets = [0, 0], sizes = [16, 32], strides = [1, 1]} : vector<16x96xf32> to vector<16x32xf32>
    %cst_28 = arith.constant 0.353553385 : f32
    %73 = vector.broadcast %cst_28 : f32 to vector<16x32xf32>
    %74 = arith.mulf %72, %73 : vector<16x32xf32>
    %75 = vector.extract_strided_slice %71 {offsets = [0, 32], sizes = [16, 32], strides = [1, 1]} : vector<16x96xf32> to vector<16x32xf32>
    %76 = vector.extract_strided_slice %71 {offsets = [0, 64], sizes = [16, 32], strides = [1, 1]} : vector<16x96xf32> to vector<16x32xf32>
    %77 = vector.extract_strided_slice %74 {offsets = [0, 0], sizes = [16, 8], strides = [1, 1]} : vector<16x32xf32> to vector<16x8xf32>
    %78 = vector.extract_strided_slice %74 {offsets = [0, 8], sizes = [16, 8], strides = [1, 1]} : vector<16x32xf32> to vector<16x8xf32>
    %79 = vector.extract_strided_slice %74 {offsets = [0, 16], sizes = [16, 8], strides = [1, 1]} : vector<16x32xf32> to vector<16x8xf32>
    %80 = vector.extract_strided_slice %74 {offsets = [0, 24], sizes = [16, 8], strides = [1, 1]} : vector<16x32xf32> to vector<16x8xf32>
    %81 = tpu.concatenate %77, %78, %79, %80 in 0 : vector<16x8xf32>, vector<16x8xf32>, vector<16x8xf32>, vector<16x8xf32> -> vector<64x8xf32>
    %82 = vector.extract_strided_slice %75 {offsets = [0, 0], sizes = [16, 8], strides = [1, 1]} : vector<16x32xf32> to vector<16x8xf32>
    %83 = vector.extract_strided_slice %75 {offsets = [0, 8], sizes = [16, 8], strides = [1, 1]} : vector<16x32xf32> to vector<16x8xf32>
    %84 = vector.extract_strided_slice %75 {offsets = [0, 16], sizes = [16, 8], strides = [1, 1]} : vector<16x32xf32> to vector<16x8xf32>
    %85 = vector.extract_strided_slice %75 {offsets = [0, 24], sizes = [16, 8], strides = [1, 1]} : vector<16x32xf32> to vector<16x8xf32>
    %86 = tpu.concatenate %82, %83, %84, %85 in 0 : vector<16x8xf32>, vector<16x8xf32>, vector<16x8xf32>, vector<16x8xf32> -> vector<64x8xf32>
    %87 = vector.extract_strided_slice %76 {offsets = [0, 0], sizes = [16, 8], strides = [1, 1]} : vector<16x32xf32> to vector<16x8xf32>
    %88 = vector.extract_strided_slice %76 {offsets = [0, 8], sizes = [16, 8], strides = [1, 1]} : vector<16x32xf32> to vector<16x8xf32>
    %89 = vector.extract_strided_slice %76 {offsets = [0, 16], sizes = [16, 8], strides = [1, 1]} : vector<16x32xf32> to vector<16x8xf32>
    %90 = vector.extract_strided_slice %76 {offsets = [0, 24], sizes = [16, 8], strides = [1, 1]} : vector<16x32xf32> to vector<16x8xf32>
    %91 = tpu.concatenate %87, %88, %89, %90 in 0 : vector<16x8xf32>, vector<16x8xf32>, vector<16x8xf32>, vector<16x8xf32> -> vector<64x8xf32>
    %cst_29 = arith.constant dense<0.000000e+00> : vector<64x64xf32>
    %92 = tpu.matmul %81, %86, %cst_29 {dimension_numbers = #tpu.dot_dimension_numbers<[1], [1], [0], [0], [0, 0, 1, 0], [], []>} : vector<64x8xf32>, vector<64x8xf32>, vector<64x64xf32> -> vector<64x64xf32>
    %cst_30 = arith.constant -9.99999984E+17 : f32
    %93 = vector.broadcast %cst_30 : f32 to vector<64x64xf32>
    %94 = arith.select %4, %93, %92 : vector<64x64xi1>, vector<64x64xf32>
    %cst_31 = arith.constant -2.000000e+18 : f32
    %95 = vector.broadcast %cst_31 : f32 to vector<64x64xf32>
    %96 = arith.select %2, %95, %94 : vector<64x64xi1>, vector<64x64xf32>
    %cst_32 = arith.constant dense<0xFF800000> : vector<64xf32>
    %97 = vector.multi_reduction <maximumf>, %96, %cst_32 [1] : vector<64x64xf32> to vector<64xf32>
    %98 = vector.shape_cast %97 : vector<64xf32> to vector<64x1xf32>
    %99 = vector.broadcast %98 : vector<64x1xf32> to vector<64x64xf32>
    %100 = arith.subf %96, %99 : vector<64x64xf32>
    %101 = math.exp %100 : vector<64x64xf32>
    %cst_33 = arith.constant dense<0.000000e+00> : vector<64xf32>
    %102 = vector.multi_reduction <add>, %101, %cst_33 [1] : vector<64x64xf32> to vector<64xf32>
    %103 = vector.shape_cast %102 : vector<64xf32> to vector<64x1xf32>
    %104 = tpu.reciprocal %103 {approx = true} : vector<64x1xf32> -> vector<64x1xf32>
    %105 = vector.broadcast %104 : vector<64x1xf32> to vector<64x64xf32>
    %106 = arith.mulf %101, %105 : vector<64x64xf32>
    %cst_34 = arith.constant dense<0.000000e+00> : vector<64x8xf32>
    %107 = tpu.matmul %106, %91, %cst_34 {dimension_numbers = #tpu.dot_dimension_numbers<[1], [0], [0], [1], [0, 0, 1, 1], [], []>} : vector<64x64xf32>, vector<64x8xf32>, vector<64x8xf32> -> vector<64x8xf32>
    %108 = vector.extract_strided_slice %107 {offsets = [0, 0], sizes = [16, 8], strides = [1, 1]} : vector<64x8xf32> to vector<16x8xf32>
    %c64 = arith.constant 64 : index
    %c0_35 = arith.constant 0 : index
    %109 = vector.load %arg2[%c64, %c0_35] : memref<736x128xf32, #tpu.memory_space<vmem>>, vector<8x32xf32>
    %cst_36 = arith.constant dense<0.000000e+00> : vector<16x32xf32>
    %110 = tpu.matmul %108, %109, %cst_36 {dimension_numbers = #tpu.dot_dimension_numbers<[1], [0], [0], [1], [0, 0, 1, 1], [], []>} : vector<16x8xf32>, vector<8x32xf32>, vector<16x32xf32> -> vector<16x32xf32>
    %111 = arith.addf %46, %110 : vector<16x32xf32>
    %112 = vector.extract_strided_slice %107 {offsets = [16, 0], sizes = [16, 8], strides = [1, 1]} : vector<64x8xf32> to vector<16x8xf32>
    %c72 = arith.constant 72 : index
    %c0_37 = arith.constant 0 : index
    %113 = vector.load %arg2[%c72, %c0_37] : memref<736x128xf32, #tpu.memory_space<vmem>>, vector<8x32xf32>
    %cst_38 = arith.constant dense<0.000000e+00> : vector<16x32xf32>
    %114 = tpu.matmul %112, %113, %cst_38 {dimension_numbers = #tpu.dot_dimension_numbers<[1], [0], [0], [1], [0, 0, 1, 1], [], []>} : vector<16x8xf32>, vector<8x32xf32>, vector<16x32xf32> -> vector<16x32xf32>
    %115 = arith.addf %111, %114 : vector<16x32xf32>
    %116 = vector.extract_strided_slice %107 {offsets = [32, 0], sizes = [16, 8], strides = [1, 1]} : vector<64x8xf32> to vector<16x8xf32>
    %c80 = arith.constant 80 : index
    %c0_39 = arith.constant 0 : index
    %117 = vector.load %arg2[%c80, %c0_39] : memref<736x128xf32, #tpu.memory_space<vmem>>, vector<8x32xf32>
    %cst_40 = arith.constant dense<0.000000e+00> : vector<16x32xf32>
    %118 = tpu.matmul %116, %117, %cst_40 {dimension_numbers = #tpu.dot_dimension_numbers<[1], [0], [0], [1], [0, 0, 1, 1], [], []>} : vector<16x8xf32>, vector<8x32xf32>, vector<16x32xf32> -> vector<16x32xf32>
    %119 = arith.addf %115, %118 : vector<16x32xf32>
    %120 = vector.extract_strided_slice %107 {offsets = [48, 0], sizes = [16, 8], strides = [1, 1]} : vector<64x8xf32> to vector<16x8xf32>
    %c88 = arith.constant 88 : index
    %c0_41 = arith.constant 0 : index
    %121 = vector.load %arg2[%c88, %c0_41] : memref<736x128xf32, #tpu.memory_space<vmem>>, vector<8x32xf32>
    %cst_42 = arith.constant dense<0.000000e+00> : vector<16x32xf32>
    %122 = tpu.matmul %120, %121, %cst_42 {dimension_numbers = #tpu.dot_dimension_numbers<[1], [0], [0], [1], [0, 0, 1, 1], [], []>} : vector<16x8xf32>, vector<8x32xf32>, vector<16x32xf32> -> vector<16x32xf32>
    %123 = arith.addf %119, %122 : vector<16x32xf32>
    %c18 = arith.constant 18 : index
    %c0_43 = arith.constant 0 : index
    %124 = vector.load %arg3[%c18, %c0_43] : memref<30x64xf32, #tpu.memory_space<vmem>>, vector<1x32xf32>
    %c19 = arith.constant 19 : index
    %c0_44 = arith.constant 0 : index
    %125 = vector.load %arg3[%c19, %c0_44] : memref<30x64xf32, #tpu.memory_space<vmem>>, vector<1x32xf32>
    %cst_45 = arith.constant dense<0.000000e+00> : vector<16xf32>
    %126 = vector.multi_reduction <add>, %123, %cst_45 [1] : vector<16x32xf32> to vector<16xf32>
    %127 = vector.shape_cast %126 : vector<16xf32> to vector<16x1xf32>
    %cst_46 = arith.constant 3.200000e+01 : f32
    %128 = vector.broadcast %cst_46 : f32 to vector<16x1xf32>
    %129 = arith.divf %127, %128 : vector<16x1xf32>
    %130 = vector.broadcast %129 : vector<16x1xf32> to vector<16x32xf32>
    %131 = arith.subf %123, %130 : vector<16x32xf32>
    %132 = arith.mulf %131, %131 : vector<16x32xf32>
    %cst_47 = arith.constant dense<0.000000e+00> : vector<16xf32>
    %133 = vector.multi_reduction <add>, %132, %cst_47 [1] : vector<16x32xf32> to vector<16xf32>
    %134 = vector.shape_cast %133 : vector<16xf32> to vector<16x1xf32>
    %cst_48 = arith.constant 3.100000e+01 : f32
    %135 = vector.broadcast %cst_48 : f32 to vector<16x1xf32>
    %136 = arith.divf %134, %135 : vector<16x1xf32>
    %137 = math.sqrt %136 : vector<16x1xf32>
    %cst_49 = arith.constant 9.99999997E-7 : f32
    %138 = vector.broadcast %cst_49 : f32 to vector<16x1xf32>
    %139 = arith.addf %137, %138 : vector<16x1xf32>
    %140 = tpu.reciprocal %139 {approx = true} : vector<16x1xf32> -> vector<16x1xf32>
    %141 = vector.broadcast %124 : vector<1x32xf32> to vector<16x32xf32>
    %142 = arith.mulf %141, %131 : vector<16x32xf32>
    %143 = vector.broadcast %140 : vector<16x1xf32> to vector<16x32xf32>
    %144 = arith.mulf %142, %143 : vector<16x32xf32>
    %145 = vector.broadcast %125 : vector<1x32xf32> to vector<16x32xf32>
    %146 = arith.addf %144, %145 : vector<16x32xf32>
    %c1_i32_50 = arith.constant 1 : i32
    %147 = tpu.dynamic_rotate %146 by %c1_i32_50 dim 0 : vector<16x32xf32>, i32 -> vector<16x32xf32>
    %cst_51 = arith.constant 0.000000e+00 : f32
    %148 = vector.shape_cast %23 : vector<16x1xi1> to vector<16x1xi1>
    %149 = vector.broadcast %148 : vector<16x1xi1> to vector<16x32xi1>
    %150 = vector.broadcast %cst_51 : f32 to vector<16x32xf32>
    %151 = arith.select %149, %150, %147 : vector<16x32xi1>, vector<16x32xf32>
    %c15_i32 = arith.constant 15 : i32
    %152 = tpu.dynamic_rotate %146 by %c15_i32 dim 0 : vector<16x32xf32>, i32 -> vector<16x32xf32>
    %cst_52 = arith.constant 0.000000e+00 : f32
    %153 = vector.shape_cast %41 : vector<16x1xi1> to vector<16x1xi1>
    %154 = vector.broadcast %153 : vector<16x1xi1> to vector<16x32xi1>
    %155 = vector.broadcast %cst_52 : f32 to vector<16x32xf32>
    %156 = arith.select %154, %155, %152 : vector<16x32xi1>, vector<16x32xf32>
    %157 = tpu.concatenate %151, %146, %156 in 1 : vector<16x32xf32>, vector<16x32xf32>, vector<16x32xf32> -> vector<16x96xf32>
    %c96 = arith.constant 96 : index
    %c0_53 = arith.constant 0 : index
    %158 = vector.load %arg2[%c96, %c0_53] : memref<736x128xf32, #tpu.memory_space<vmem>>, vector<96x64xf32>
    %cst_54 = arith.constant dense<0.000000e+00> : vector<16x64xf32>
    %159 = tpu.matmul %157, %158, %cst_54 {dimension_numbers = #tpu.dot_dimension_numbers<[1], [0], [0], [1], [0, 0, 1, 1], [], []>} : vector<16x96xf32>, vector<96x64xf32>, vector<16x64xf32> -> vector<16x64xf32>
    %c20 = arith.constant 20 : index
    %c0_55 = arith.constant 0 : index
    %160 = vector.load %arg3[%c20, %c0_55] : memref<30x64xf32, #tpu.memory_space<vmem>>, vector<1x64xf32>
    %161 = vector.broadcast %160 : vector<1x64xf32> to vector<16x64xf32>
    %162 = arith.addf %159, %161 : vector<16x64xf32>
    %cst_56 = arith.constant 0.000000e+00 : f32
    %163 = vector.broadcast %cst_56 : f32 to vector<16x64xf32>
    %164 = arith.maximumf %162, %163 : vector<16x64xf32>
    %c1_i32_57 = arith.constant 1 : i32
    %165 = tpu.dynamic_rotate %164 by %c1_i32_57 dim 0 : vector<16x64xf32>, i32 -> vector<16x64xf32>
    %cst_58 = arith.constant 0.000000e+00 : f32
    %166 = vector.shape_cast %23 : vector<16x1xi1> to vector<16x1xi1>
    %167 = vector.broadcast %166 : vector<16x1xi1> to vector<16x64xi1>
    %168 = vector.broadcast %cst_58 : f32 to vector<16x64xf32>
    %169 = arith.select %167, %168, %165 : vector<16x64xi1>, vector<16x64xf32>
    %c15_i32_59 = arith.constant 15 : i32
    %170 = tpu.dynamic_rotate %164 by %c15_i32_59 dim 0 : vector<16x64xf32>, i32 -> vector<16x64xf32>
    %cst_60 = arith.constant 0.000000e+00 : f32
    %171 = vector.shape_cast %41 : vector<16x1xi1> to vector<16x1xi1>
    %172 = vector.broadcast %171 : vector<16x1xi1> to vector<16x64xi1>
    %173 = vector.broadcast %cst_60 : f32 to vector<16x64xf32>
    %174 = arith.select %172, %173, %170 : vector<16x64xi1>, vector<16x64xf32>
    %175 = tpu.concatenate %169, %164, %174 in 1 : vector<16x64xf32>, vector<16x64xf32>, vector<16x64xf32> -> vector<16x192xf32>
    %c192 = arith.constant 192 : index
    %c0_61 = arith.constant 0 : index
    %176 = vector.load %arg2[%c192, %c0_61] : memref<736x128xf32, #tpu.memory_space<vmem>>, vector<192x32xf32>
    %cst_62 = arith.constant dense<0.000000e+00> : vector<16x32xf32>
    %177 = tpu.matmul %175, %176, %cst_62 {dimension_numbers = #tpu.dot_dimension_numbers<[1], [0], [0], [1], [0, 0, 1, 1], [], []>} : vector<16x192xf32>, vector<192x32xf32>, vector<16x32xf32> -> vector<16x32xf32>
    %178 = arith.addf %123, %177 : vector<16x32xf32>
    %c21 = arith.constant 21 : index
    %c0_63 = arith.constant 0 : index
    %179 = vector.load %arg3[%c21, %c0_63] : memref<30x64xf32, #tpu.memory_space<vmem>>, vector<1x32xf32>
    %180 = vector.broadcast %179 : vector<1x32xf32> to vector<16x32xf32>
    %181 = arith.addf %178, %180 : vector<16x32xf32>
    %c22 = arith.constant 22 : index
    %c0_64 = arith.constant 0 : index
    %182 = vector.load %arg3[%c22, %c0_64] : memref<30x64xf32, #tpu.memory_space<vmem>>, vector<1x32xf32>
    %c23 = arith.constant 23 : index
    %c0_65 = arith.constant 0 : index
    %183 = vector.load %arg3[%c23, %c0_65] : memref<30x64xf32, #tpu.memory_space<vmem>>, vector<1x32xf32>
    %cst_66 = arith.constant dense<0.000000e+00> : vector<16xf32>
    %184 = vector.multi_reduction <add>, %181, %cst_66 [1] : vector<16x32xf32> to vector<16xf32>
    %185 = vector.shape_cast %184 : vector<16xf32> to vector<16x1xf32>
    %cst_67 = arith.constant 3.200000e+01 : f32
    %186 = vector.broadcast %cst_67 : f32 to vector<16x1xf32>
    %187 = arith.divf %185, %186 : vector<16x1xf32>
    %188 = vector.broadcast %187 : vector<16x1xf32> to vector<16x32xf32>
    %189 = arith.subf %181, %188 : vector<16x32xf32>
    %190 = arith.mulf %189, %189 : vector<16x32xf32>
    %cst_68 = arith.constant dense<0.000000e+00> : vector<16xf32>
    %191 = vector.multi_reduction <add>, %190, %cst_68 [1] : vector<16x32xf32> to vector<16xf32>
    %192 = vector.shape_cast %191 : vector<16xf32> to vector<16x1xf32>
    %cst_69 = arith.constant 3.100000e+01 : f32
    %193 = vector.broadcast %cst_69 : f32 to vector<16x1xf32>
    %194 = arith.divf %192, %193 : vector<16x1xf32>
    %195 = math.sqrt %194 : vector<16x1xf32>
    %cst_70 = arith.constant 9.99999997E-7 : f32
    %196 = vector.broadcast %cst_70 : f32 to vector<16x1xf32>
    %197 = arith.addf %195, %196 : vector<16x1xf32>
    %198 = tpu.reciprocal %197 {approx = true} : vector<16x1xf32> -> vector<16x1xf32>
    %199 = vector.broadcast %182 : vector<1x32xf32> to vector<16x32xf32>
    %200 = arith.mulf %199, %189 : vector<16x32xf32>
    %201 = vector.broadcast %198 : vector<16x1xf32> to vector<16x32xf32>
    %202 = arith.mulf %200, %201 : vector<16x32xf32>
    %203 = vector.broadcast %183 : vector<1x32xf32> to vector<16x32xf32>
    %204 = arith.addf %202, %203 : vector<16x32xf32>
    %c384 = arith.constant 384 : index
    %c0_71 = arith.constant 0 : index
    %205 = vector.load %arg2[%c384, %c0_71] : memref<736x128xf32, #tpu.memory_space<vmem>>, vector<32x96xf32>
    %cst_72 = arith.constant dense<0.000000e+00> : vector<16x96xf32>
    %206 = tpu.matmul %204, %205, %cst_72 {dimension_numbers = #tpu.dot_dimension_numbers<[1], [0], [0], [1], [0, 0, 1, 1], [], []>} : vector<16x32xf32>, vector<32x96xf32>, vector<16x96xf32> -> vector<16x96xf32>
    %207 = vector.extract_strided_slice %206 {offsets = [0, 0], sizes = [16, 32], strides = [1, 1]} : vector<16x96xf32> to vector<16x32xf32>
    %cst_73 = arith.constant 0.353553385 : f32
    %208 = vector.broadcast %cst_73 : f32 to vector<16x32xf32>
    %209 = arith.mulf %207, %208 : vector<16x32xf32>
    %210 = vector.extract_strided_slice %206 {offsets = [0, 32], sizes = [16, 32], strides = [1, 1]} : vector<16x96xf32> to vector<16x32xf32>
    %211 = vector.extract_strided_slice %206 {offsets = [0, 64], sizes = [16, 32], strides = [1, 1]} : vector<16x96xf32> to vector<16x32xf32>
    %212 = vector.extract_strided_slice %209 {offsets = [0, 0], sizes = [16, 8], strides = [1, 1]} : vector<16x32xf32> to vector<16x8xf32>
    %213 = vector.extract_strided_slice %209 {offsets = [0, 8], sizes = [16, 8], strides = [1, 1]} : vector<16x32xf32> to vector<16x8xf32>
    %214 = vector.extract_strided_slice %209 {offsets = [0, 16], sizes = [16, 8], strides = [1, 1]} : vector<16x32xf32> to vector<16x8xf32>
    %215 = vector.extract_strided_slice %209 {offsets = [0, 24], sizes = [16, 8], strides = [1, 1]} : vector<16x32xf32> to vector<16x8xf32>
    %216 = tpu.concatenate %212, %213, %214, %215 in 0 : vector<16x8xf32>, vector<16x8xf32>, vector<16x8xf32>, vector<16x8xf32> -> vector<64x8xf32>
    %217 = vector.extract_strided_slice %210 {offsets = [0, 0], sizes = [16, 8], strides = [1, 1]} : vector<16x32xf32> to vector<16x8xf32>
    %218 = vector.extract_strided_slice %210 {offsets = [0, 8], sizes = [16, 8], strides = [1, 1]} : vector<16x32xf32> to vector<16x8xf32>
    %219 = vector.extract_strided_slice %210 {offsets = [0, 16], sizes = [16, 8], strides = [1, 1]} : vector<16x32xf32> to vector<16x8xf32>
    %220 = vector.extract_strided_slice %210 {offsets = [0, 24], sizes = [16, 8], strides = [1, 1]} : vector<16x32xf32> to vector<16x8xf32>
    %221 = tpu.concatenate %217, %218, %219, %220 in 0 : vector<16x8xf32>, vector<16x8xf32>, vector<16x8xf32>, vector<16x8xf32> -> vector<64x8xf32>
    %222 = vector.extract_strided_slice %211 {offsets = [0, 0], sizes = [16, 8], strides = [1, 1]} : vector<16x32xf32> to vector<16x8xf32>
    %223 = vector.extract_strided_slice %211 {offsets = [0, 8], sizes = [16, 8], strides = [1, 1]} : vector<16x32xf32> to vector<16x8xf32>
    %224 = vector.extract_strided_slice %211 {offsets = [0, 16], sizes = [16, 8], strides = [1, 1]} : vector<16x32xf32> to vector<16x8xf32>
    %225 = vector.extract_strided_slice %211 {offsets = [0, 24], sizes = [16, 8], strides = [1, 1]} : vector<16x32xf32> to vector<16x8xf32>
    %226 = tpu.concatenate %222, %223, %224, %225 in 0 : vector<16x8xf32>, vector<16x8xf32>, vector<16x8xf32>, vector<16x8xf32> -> vector<64x8xf32>
    %cst_74 = arith.constant dense<0.000000e+00> : vector<64x64xf32>
    %227 = tpu.matmul %216, %221, %cst_74 {dimension_numbers = #tpu.dot_dimension_numbers<[1], [1], [0], [0], [0, 0, 1, 0], [], []>} : vector<64x8xf32>, vector<64x8xf32>, vector<64x64xf32> -> vector<64x64xf32>
    %cst_75 = arith.constant -9.99999984E+17 : f32
    %228 = vector.broadcast %cst_75 : f32 to vector<64x64xf32>
    %229 = arith.select %4, %228, %227 : vector<64x64xi1>, vector<64x64xf32>
    %cst_76 = arith.constant -2.000000e+18 : f32
    %230 = vector.broadcast %cst_76 : f32 to vector<64x64xf32>
    %231 = arith.select %2, %230, %229 : vector<64x64xi1>, vector<64x64xf32>
    %cst_77 = arith.constant dense<0xFF800000> : vector<64xf32>
    %232 = vector.multi_reduction <maximumf>, %231, %cst_77 [1] : vector<64x64xf32> to vector<64xf32>
    %233 = vector.shape_cast %232 : vector<64xf32> to vector<64x1xf32>
    %234 = vector.broadcast %233 : vector<64x1xf32> to vector<64x64xf32>
    %235 = arith.subf %231, %234 : vector<64x64xf32>
    %236 = math.exp %235 : vector<64x64xf32>
    %cst_78 = arith.constant dense<0.000000e+00> : vector<64xf32>
    %237 = vector.multi_reduction <add>, %236, %cst_78 [1] : vector<64x64xf32> to vector<64xf32>
    %238 = vector.shape_cast %237 : vector<64xf32> to vector<64x1xf32>
    %239 = tpu.reciprocal %238 {approx = true} : vector<64x1xf32> -> vector<64x1xf32>
    %240 = vector.broadcast %239 : vector<64x1xf32> to vector<64x64xf32>
    %241 = arith.mulf %236, %240 : vector<64x64xf32>
    %cst_79 = arith.constant dense<0.000000e+00> : vector<64x8xf32>
    %242 = tpu.matmul %241, %226, %cst_79 {dimension_numbers = #tpu.dot_dimension_numbers<[1], [0], [0], [1], [0, 0, 1, 1], [], []>} : vector<64x64xf32>, vector<64x8xf32>, vector<64x8xf32> -> vector<64x8xf32>
    %243 = vector.extract_strided_slice %242 {offsets = [0, 0], sizes = [16, 8], strides = [1, 1]} : vector<64x8xf32> to vector<16x8xf32>
    %c416 = arith.constant 416 : index
    %c0_80 = arith.constant 0 : index
    %244 = vector.load %arg2[%c416, %c0_80] : memref<736x128xf32, #tpu.memory_space<vmem>>, vector<8x32xf32>
    %cst_81 = arith.constant dense<0.000000e+00> : vector<16x32xf32>
    %245 = tpu.matmul %243, %244, %cst_81 {dimension_numbers = #tpu.dot_dimension_numbers<[1], [0], [0], [1], [0, 0, 1, 1], [], []>} : vector<16x8xf32>, vector<8x32xf32>, vector<16x32xf32> -> vector<16x32xf32>
    %246 = arith.addf %181, %245 : vector<16x32xf32>
    %247 = vector.extract_strided_slice %242 {offsets = [16, 0], sizes = [16, 8], strides = [1, 1]} : vector<64x8xf32> to vector<16x8xf32>
    %c424 = arith.constant 424 : index
    %c0_82 = arith.constant 0 : index
    %248 = vector.load %arg2[%c424, %c0_82] : memref<736x128xf32, #tpu.memory_space<vmem>>, vector<8x32xf32>
    %cst_83 = arith.constant dense<0.000000e+00> : vector<16x32xf32>
    %249 = tpu.matmul %247, %248, %cst_83 {dimension_numbers = #tpu.dot_dimension_numbers<[1], [0], [0], [1], [0, 0, 1, 1], [], []>} : vector<16x8xf32>, vector<8x32xf32>, vector<16x32xf32> -> vector<16x32xf32>
    %250 = arith.addf %246, %249 : vector<16x32xf32>
    %251 = vector.extract_strided_slice %242 {offsets = [32, 0], sizes = [16, 8], strides = [1, 1]} : vector<64x8xf32> to vector<16x8xf32>
    %c432 = arith.constant 432 : index
    %c0_84 = arith.constant 0 : index
    %252 = vector.load %arg2[%c432, %c0_84] : memref<736x128xf32, #tpu.memory_space<vmem>>, vector<8x32xf32>
    %cst_85 = arith.constant dense<0.000000e+00> : vector<16x32xf32>
    %253 = tpu.matmul %251, %252, %cst_85 {dimension_numbers = #tpu.dot_dimension_numbers<[1], [0], [0], [1], [0, 0, 1, 1], [], []>} : vector<16x8xf32>, vector<8x32xf32>, vector<16x32xf32> -> vector<16x32xf32>
    %254 = arith.addf %250, %253 : vector<16x32xf32>
    %255 = vector.extract_strided_slice %242 {offsets = [48, 0], sizes = [16, 8], strides = [1, 1]} : vector<64x8xf32> to vector<16x8xf32>
    %c440 = arith.constant 440 : index
    %c0_86 = arith.constant 0 : index
    %256 = vector.load %arg2[%c440, %c0_86] : memref<736x128xf32, #tpu.memory_space<vmem>>, vector<8x32xf32>
    %cst_87 = arith.constant dense<0.000000e+00> : vector<16x32xf32>
    %257 = tpu.matmul %255, %256, %cst_87 {dimension_numbers = #tpu.dot_dimension_numbers<[1], [0], [0], [1], [0, 0, 1, 1], [], []>} : vector<16x8xf32>, vector<8x32xf32>, vector<16x32xf32> -> vector<16x32xf32>
    %258 = arith.addf %254, %257 : vector<16x32xf32>
    %c24 = arith.constant 24 : index
    %c0_88 = arith.constant 0 : index
    %259 = vector.load %arg3[%c24, %c0_88] : memref<30x64xf32, #tpu.memory_space<vmem>>, vector<1x32xf32>
    %c25 = arith.constant 25 : index
    %c0_89 = arith.constant 0 : index
    %260 = vector.load %arg3[%c25, %c0_89] : memref<30x64xf32, #tpu.memory_space<vmem>>, vector<1x32xf32>
    %cst_90 = arith.constant dense<0.000000e+00> : vector<16xf32>
    %261 = vector.multi_reduction <add>, %258, %cst_90 [1] : vector<16x32xf32> to vector<16xf32>
    %262 = vector.shape_cast %261 : vector<16xf32> to vector<16x1xf32>
    %cst_91 = arith.constant 3.200000e+01 : f32
    %263 = vector.broadcast %cst_91 : f32 to vector<16x1xf32>
    %264 = arith.divf %262, %263 : vector<16x1xf32>
    %265 = vector.broadcast %264 : vector<16x1xf32> to vector<16x32xf32>
    %266 = arith.subf %258, %265 : vector<16x32xf32>
    %267 = arith.mulf %266, %266 : vector<16x32xf32>
    %cst_92 = arith.constant dense<0.000000e+00> : vector<16xf32>
    %268 = vector.multi_reduction <add>, %267, %cst_92 [1] : vector<16x32xf32> to vector<16xf32>
    %269 = vector.shape_cast %268 : vector<16xf32> to vector<16x1xf32>
    %cst_93 = arith.constant 3.100000e+01 : f32
    %270 = vector.broadcast %cst_93 : f32 to vector<16x1xf32>
    %271 = arith.divf %269, %270 : vector<16x1xf32>
    %272 = math.sqrt %271 : vector<16x1xf32>
    %cst_94 = arith.constant 9.99999997E-7 : f32
    %273 = vector.broadcast %cst_94 : f32 to vector<16x1xf32>
    %274 = arith.addf %272, %273 : vector<16x1xf32>
    %275 = tpu.reciprocal %274 {approx = true} : vector<16x1xf32> -> vector<16x1xf32>
    %276 = vector.broadcast %259 : vector<1x32xf32> to vector<16x32xf32>
    %277 = arith.mulf %276, %266 : vector<16x32xf32>
    %278 = vector.broadcast %275 : vector<16x1xf32> to vector<16x32xf32>
    %279 = arith.mulf %277, %278 : vector<16x32xf32>
    %280 = vector.broadcast %260 : vector<1x32xf32> to vector<16x32xf32>
    %281 = arith.addf %279, %280 : vector<16x32xf32>
    %c1_i32_95 = arith.constant 1 : i32
    %282 = tpu.dynamic_rotate %281 by %c1_i32_95 dim 0 : vector<16x32xf32>, i32 -> vector<16x32xf32>
    %cst_96 = arith.constant 0.000000e+00 : f32
    %283 = vector.shape_cast %23 : vector<16x1xi1> to vector<16x1xi1>
    %284 = vector.broadcast %283 : vector<16x1xi1> to vector<16x32xi1>
    %285 = vector.broadcast %cst_96 : f32 to vector<16x32xf32>
    %286 = arith.select %284, %285, %282 : vector<16x32xi1>, vector<16x32xf32>
    %c15_i32_97 = arith.constant 15 : i32
    %287 = tpu.dynamic_rotate %281 by %c15_i32_97 dim 0 : vector<16x32xf32>, i32 -> vector<16x32xf32>
    %cst_98 = arith.constant 0.000000e+00 : f32
    %288 = vector.shape_cast %41 : vector<16x1xi1> to vector<16x1xi1>
    %289 = vector.broadcast %288 : vector<16x1xi1> to vector<16x32xi1>
    %290 = vector.broadcast %cst_98 : f32 to vector<16x32xf32>
    %291 = arith.select %289, %290, %287 : vector<16x32xi1>, vector<16x32xf32>
    %292 = tpu.concatenate %286, %281, %291 in 1 : vector<16x32xf32>, vector<16x32xf32>, vector<16x32xf32> -> vector<16x96xf32>
    %c448 = arith.constant 448 : index
    %c0_99 = arith.constant 0 : index
    %293 = vector.load %arg2[%c448, %c0_99] : memref<736x128xf32, #tpu.memory_space<vmem>>, vector<96x64xf32>
    %cst_100 = arith.constant dense<0.000000e+00> : vector<16x64xf32>
    %294 = tpu.matmul %292, %293, %cst_100 {dimension_numbers = #tpu.dot_dimension_numbers<[1], [0], [0], [1], [0, 0, 1, 1], [], []>} : vector<16x96xf32>, vector<96x64xf32>, vector<16x64xf32> -> vector<16x64xf32>
    %c26 = arith.constant 26 : index
    %c0_101 = arith.constant 0 : index
    %295 = vector.load %arg3[%c26, %c0_101] : memref<30x64xf32, #tpu.memory_space<vmem>>, vector<1x64xf32>
    %296 = vector.broadcast %295 : vector<1x64xf32> to vector<16x64xf32>
    %297 = arith.addf %294, %296 : vector<16x64xf32>
    %cst_102 = arith.constant 0.000000e+00 : f32
    %298 = vector.broadcast %cst_102 : f32 to vector<16x64xf32>
    %299 = arith.maximumf %297, %298 : vector<16x64xf32>
    %c1_i32_103 = arith.constant 1 : i32
    %300 = tpu.dynamic_rotate %299 by %c1_i32_103 dim 0 : vector<16x64xf32>, i32 -> vector<16x64xf32>
    %cst_104 = arith.constant 0.000000e+00 : f32
    %301 = vector.shape_cast %23 : vector<16x1xi1> to vector<16x1xi1>
    %302 = vector.broadcast %301 : vector<16x1xi1> to vector<16x64xi1>
    %303 = vector.broadcast %cst_104 : f32 to vector<16x64xf32>
    %304 = arith.select %302, %303, %300 : vector<16x64xi1>, vector<16x64xf32>
    %c15_i32_105 = arith.constant 15 : i32
    %305 = tpu.dynamic_rotate %299 by %c15_i32_105 dim 0 : vector<16x64xf32>, i32 -> vector<16x64xf32>
    %cst_106 = arith.constant 0.000000e+00 : f32
    %306 = vector.shape_cast %41 : vector<16x1xi1> to vector<16x1xi1>
    %307 = vector.broadcast %306 : vector<16x1xi1> to vector<16x64xi1>
    %308 = vector.broadcast %cst_106 : f32 to vector<16x64xf32>
    %309 = arith.select %307, %308, %305 : vector<16x64xi1>, vector<16x64xf32>
    %310 = tpu.concatenate %304, %299, %309 in 1 : vector<16x64xf32>, vector<16x64xf32>, vector<16x64xf32> -> vector<16x192xf32>
    %c544 = arith.constant 544 : index
    %c0_107 = arith.constant 0 : index
    %311 = vector.load %arg2[%c544, %c0_107] : memref<736x128xf32, #tpu.memory_space<vmem>>, vector<192x32xf32>
    %cst_108 = arith.constant dense<0.000000e+00> : vector<16x32xf32>
    %312 = tpu.matmul %310, %311, %cst_108 {dimension_numbers = #tpu.dot_dimension_numbers<[1], [0], [0], [1], [0, 0, 1, 1], [], []>} : vector<16x192xf32>, vector<192x32xf32>, vector<16x32xf32> -> vector<16x32xf32>
    %313 = arith.addf %258, %312 : vector<16x32xf32>
    %c27 = arith.constant 27 : index
    %c0_109 = arith.constant 0 : index
    %314 = vector.load %arg3[%c27, %c0_109] : memref<30x64xf32, #tpu.memory_space<vmem>>, vector<1x32xf32>
    %315 = vector.broadcast %314 : vector<1x32xf32> to vector<16x32xf32>
    %316 = arith.addf %313, %315 : vector<16x32xf32>
    %c28 = arith.constant 28 : index
    %c0_110 = arith.constant 0 : index
    %317 = vector.load %arg3[%c28, %c0_110] : memref<30x64xf32, #tpu.memory_space<vmem>>, vector<1x32xf32>
    %c29 = arith.constant 29 : index
    %c0_111 = arith.constant 0 : index
    %318 = vector.load %arg3[%c29, %c0_111] : memref<30x64xf32, #tpu.memory_space<vmem>>, vector<1x32xf32>
    %cst_112 = arith.constant dense<0.000000e+00> : vector<16xf32>
    %319 = vector.multi_reduction <add>, %316, %cst_112 [1] : vector<16x32xf32> to vector<16xf32>
    %320 = vector.shape_cast %319 : vector<16xf32> to vector<16x1xf32>
    %cst_113 = arith.constant 3.200000e+01 : f32
    %321 = vector.broadcast %cst_113 : f32 to vector<16x1xf32>
    %322 = arith.divf %320, %321 : vector<16x1xf32>
    %323 = vector.broadcast %322 : vector<16x1xf32> to vector<16x32xf32>
    %324 = arith.subf %316, %323 : vector<16x32xf32>
    %325 = arith.mulf %324, %324 : vector<16x32xf32>
    %cst_114 = arith.constant dense<0.000000e+00> : vector<16xf32>
    %326 = vector.multi_reduction <add>, %325, %cst_114 [1] : vector<16x32xf32> to vector<16xf32>
    %327 = vector.shape_cast %326 : vector<16xf32> to vector<16x1xf32>
    %cst_115 = arith.constant 3.100000e+01 : f32
    %328 = vector.broadcast %cst_115 : f32 to vector<16x1xf32>
    %329 = arith.divf %327, %328 : vector<16x1xf32>
    %330 = math.sqrt %329 : vector<16x1xf32>
    %cst_116 = arith.constant 9.99999997E-7 : f32
    %331 = vector.broadcast %cst_116 : f32 to vector<16x1xf32>
    %332 = arith.addf %330, %331 : vector<16x1xf32>
    %333 = tpu.reciprocal %332 {approx = true} : vector<16x1xf32> -> vector<16x1xf32>
    %334 = vector.broadcast %317 : vector<1x32xf32> to vector<16x32xf32>
    %335 = arith.mulf %334, %324 : vector<16x32xf32>
    %336 = vector.broadcast %333 : vector<16x1xf32> to vector<16x32xf32>
    %337 = arith.mulf %335, %336 : vector<16x32xf32>
    %338 = vector.broadcast %318 : vector<1x32xf32> to vector<16x32xf32>
    %339 = arith.addf %337, %338 : vector<16x32xf32>
    %c0_117 = arith.constant 0 : index
    %c0_118 = arith.constant 0 : index
    %340 = vector.load %arg4[%c0_117, %c0_118] : memref<16x32xf32, #tpu.memory_space<vmem>>, vector<16x32xf32>
    tpu.vector_store %arg4[%c0_117, %c0_118], %339 {strides = array<i32>} : memref<16x32xf32, #tpu.memory_space<vmem>>, vector<16x32xf32>,
    return
  }
}

</mosaic_0001>

<llo_original>
// kernel: encoder_forward.1
$region0: #{encoder_forward.1}
  #allocation0 [shape = 'u32[]', space=smem, size = 0x4, offset = 0x4, fixed_abs, tag = 'smem constant byte address 0x4 - core index']
  #allocation1 [shape = 'u32[144,128]{1,0:T(1,128)}', space=vmem, size = 0x12000, scoped, tag = 'internal scratch']
  %s0 = inlined_call_operand.vmem [shape: f32[16,32], index: 0, kind: input, shape index: {}]
  %s1 = inlined_call_operand.vmem [shape: f32[64,64], index: 1, kind: input, shape index: {}]
  %s2 = inlined_call_operand.vmem [shape: f32[736,128], index: 2, kind: input, shape index: {}]
  %s3 = inlined_call_operand.vmem [shape: f32[30,64], index: 3, kind: input, shape index: {}]
  %s4 = inlined_call_operand.hbm [shape: f32[16,32], index: 4, kind: output, shape index: {}]
  %s5 = sld [smem:[#allocation0]]
  $region26: #{encoder_forward.1} parent=0
    _
  %s7 = ssub.s32 1, %s5
  %s8 = scalar_select 0, %s7, %s5
  $region1: #{encoder_forward.1} parent=0
    #allocation2 [shape = 'u8[8192]{0}', space=vmem, size = 0x2000, scoped, tag = 'output window, operand 0, single buffered']
    #allocation3 [shape = 's32[1]{0}', space=sflag, size = 0x4, scoped, tag = 'scoped memory for encoder_forward.1']
    %9 = vsyncpa [#allocation3], 0
    // Predicated region
    $region2: #{encoder_forward.1} parent=1 // pred_check
      _
    $region3: #{encoder_forward.1} parent=1 // pred_check_branch
      %11 = sbr.rel (0) target = $region5
    $region4: #{encoder_forward.1} parent=1 // pred_region
      _
    $region5: #{encoder_forward.1} parent=1 // pred_fallthru
      _
    // Predicated region
    $region6: #{encoder_forward.1} parent=1 // pred_check
      _
    $region7: #{encoder_forward.1} parent=1 // pred_check_branch
      %13 = sbr.rel (0) target = $region9
    $region8: #{encoder_forward.1} parent=1 // pred_region
      _
    $region9: #{encoder_forward.1} parent=1 // pred_fallthru
      _
    // Predicated region
    $region10: #{encoder_forward.1} parent=1 // pred_check
      _
    $region11: #{encoder_forward.1} parent=1 // pred_check_branch
      %15 = sbr.rel (0) target = $region13
    $region12: #{encoder_forward.1} parent=1 // pred_region
      _
    $region13: #{encoder_forward.1} parent=1 // pred_fallthru
      _
    // Predicated region
    $region14: #{encoder_forward.1} parent=1 // pred_check
      _
    $region15: #{encoder_forward.1} parent=1 // pred_check_branch
      %17 = sbr.rel (0) target = $region17
    $region16: #{encoder_forward.1} parent=1 // pred_region
      _
    $region17: #{encoder_forward.1} parent=1 // pred_fallthru
      _
    %v18 = vld [vmem:[%s1] sm:$0xff]
    %v19 = vld [vmem:[%s1 + $0x8] sm:$0xff]
    %v20 = vld [vmem:[%s1 + $0x10] sm:$0xff]
    %v21 = vld [vmem:[%s1 + $0x18] sm:$0xff]
    %v22 = vld [vmem:[%s1 + $0x20] sm:$0xff]
    %v23 = vld [vmem:[%s1 + $0x28] sm:$0xff]
    %v24 = vld [vmem:[%s1 + $0x30] sm:$0xff]
    %v25 = vld [vmem:[%s1 + $0x38] sm:$0xff]
    %vm26 = vcmp.ge.f32.partialorder %v18, 1.5
    %vm27 = vcmp.ge.f32.partialorder %v19, 1.5
    %vm28 = vcmp.ge.f32.partialorder %v20, 1.5
    %vm29 = vcmp.ge.f32.partialorder %v21, 1.5
    %vm30 = vcmp.ge.f32.partialorder %v22, 1.5
    %vm31 = vcmp.ge.f32.partialorder %v23, 1.5
    %vm32 = vcmp.ge.f32.partialorder %v24, 1.5
    %vm33 = vcmp.ge.f32.partialorder %v25, 1.5
    %vm34 = vcmp.ge.f32.partialorder %v18, 0.5
    %vm35 = vcmp.ge.f32.partialorder %v19, 0.5
    %vm36 = vcmp.ge.f32.partialorder %v20, 0.5
    %vm37 = vcmp.ge.f32.partialorder %v21, 0.5
    %vm38 = vcmp.ge.f32.partialorder %v22, 0.5
    %vm39 = vcmp.ge.f32.partialorder %v23, 0.5
    %vm40 = vcmp.ge.f32.partialorder %v24, 0.5
    %vm41 = vcmp.ge.f32.partialorder %v25, 0.5
    %v42 = vlaneseq
    %v43 = vshrl.u32 %v42, 7
    %v44 = vadd.s32 %v43, 8
    %vm45 = vcmp.lt.s32.totalorder %v43, 0
    %v46 = vsub.s32 0, %v43
    %v47 = vsel %vm45, %v46, %v43
    %v48 = vshrl.u32 %v47, 3
    %v49 = vand.u32 %v47, 7
    %v50 = vsub.s32 0, %v49
    %v51 = vsel %vm45, %v50, %v49
    %vm52 = vcmp.lt.s32.totalorder %v44, 0
    %v53 = vsub.s32 0, %v44
    %v54 = vsel %vm52, %v53, %v44
    %v55 = vshrl.u32 %v54, 3
    %v56 = vand.u32 %v54, 7
    %v57 = vsub.s32 0, %v56
    %v58 = vsel %vm52, %v57, %v56
    %vm59 = vcmp.ne.s32.totalorder %v51, 0
    %vm60 = vcmp.ne.s32.totalorder %v58, 0
    %vm61 = vcmp.lt.s32.totalorder %v51, 0
    %vm62 = vcmp.lt.s32.totalorder %v58, 0
    %vm63 = vmand %vm61, %vm59
    %vm64 = vmand %vm62, %vm60
    %v65 = vadd.s32 %v51, 8
    %v66 = vadd.s32 %v58, 8
    %v67 = vsel %vm63, %v65, %v51
    %v68 = vsel %vm64, %v66, %v58
    %vm69 = vcmp.eq.s32.totalorder %v67, 0
    %vm70 = vcmp.eq.s32.totalorder %v68, 0
    %vm71 = vcmp.eq.s32.totalorder %v67, 7
    %vm72 = vcmp.eq.s32.totalorder %v68, 7
    %v73 = vld [vmem:[%s0] sm:$0xff]
    %v74 = vld [vmem:[%s0 + $0x8] sm:$0xff]
    %v75 = vld [vmem:[%s2] sm:$0xff]
    %v76 = vld [vmem:[%s2 + $0x8] sm:$0xff]
    %v77 = vld [vmem:[%s2 + $0x10] sm:$0xff]
    %v78 = vld [vmem:[%s2 + $0x18] sm:$0xff]
    %v79 = vld [vmem:[%s3] sm:$0xff]
    %v80 = vld [vmem:[%s3 + $0x8] sm:$0xff]
    %vm81 = vcmask 261120
    %v83 = vsel %vm81, %v73, 0
    %v86 = vsel %vm81, %v74, 0
    %88 = vmatprep.subr.mxu0 0.0
    %89 = vmatpush1.msra.mxu0 0.0
    %90 = vmatprep.subr.mxu0 0.0
    %91 = vmatpush1.msra.mxu0 0.0
    %92 = vmatprep.subr.mxu0 0.0
    %93 = vmatpush1.msra.mxu0 0.0
    %94 = vmatprep.subr.mxu0 0.0
    %95 = vmatpush1.msra.mxu0 0.0
    %96 = vmatprep.subr.mxu0 0.0
    %97 = vmatpush1.msra.mxu0 0.0
    %98 = vmatprep.subr.mxu0 0.0
    %99 = vmatpush1.msra.mxu0 0.0
    %100 = vmatprep.subr.mxu0 0.0
    %101 = vmatpush1.msra.mxu0 0.0
    %102 = vmatprep.subr.mxu0 0.0
    %103 = vmatpush1.msra.mxu0 0.0
    %104 = vmatprep.subr.mxu0 0.0
    %105 = vmatpush1.msra.mxu0 0.0
    %106 = vmatprep.subr.mxu0 0.0
    %107 = vmatpush1.msra.mxu0 0.0
    %108 = vmatprep.subr.mxu0 0.0
    %109 = vmatpush1.msra.mxu0 0.0
    %110 = vmatprep.subr.mxu0 0.0
    %111 = vmatpush1.msra.mxu0 0.0
    %112 = vmatprep.subr.mxu0 0.0
    %113 = vmatpush1.msra.mxu0 %v78
    %114 = vmatprep.subr.mxu0 0.0
    %115 = vmatpush1.msra.mxu0 %v77
    %116 = vmatprep.subr.mxu0 0.0
    %117 = vmatpush1.msra.mxu0 %v76
    %118 = vmatprep.subr.mxu0 0.0
    %119 = vmatpush1.msra.mxu0 %v75
    %120 = vmatprep.subr.mxu0 0.0
    %121 = vmatpush2.msra.mxu0 0.0
    %122 = vmatprep.subr.mxu0 0.0
    %123 = vmatpush2.msra.mxu0 0.0
    %124 = vmatprep.subr.mxu0 0.0
    %125 = vmatpush2.msra.mxu0 0.0
    %126 = vmatprep.subr.mxu0 0.0
    %127 = vmatpush2.msra.mxu0 0.0
    %128 = vmatprep.subr.mxu0 0.0
    %129 = vmatpush2.msra.mxu0 0.0
    %130 = vmatprep.subr.mxu0 0.0
    %131 = vmatpush2.msra.mxu0 0.0
    %132 = vmatprep.subr.mxu0 0.0
    %133 = vmatpush2.msra.mxu0 0.0
    %134 = vmatprep.subr.mxu0 0.0
    %135 = vmatpush2.msra.mxu0 0.0
    %136 = vmatprep.subr.mxu0 0.0
    %137 = vmatpush2.msra.mxu0 0.0
    %138 = vmatprep.subr.mxu0 0.0
    %139 = vmatpush2.msra.mxu0 0.0
    %140 = vmatprep.subr.mxu0 0.0
    %141 = vmatpush2.msra.mxu0 0.0
    %142 = vmatprep.subr.mxu0 0.0
    %143 = vmatpush2.msra.mxu0 0.0
    %144 = vmatprep.subr.mxu0 0.0
    %145 = vmatpush2.msra.mxu0 0.0
    %146 = vmatprep.subr.mxu0 0.0
    %147 = vmatpush2.msra.mxu0 0.0
    %148 = vmatprep.subr.mxu0 0.0
    %149 = vmatpush2.msra.mxu0 0.0
    %150 = vmatprep.subr.mxu0 0.0
    %151 = vmatpush2.msra.mxu0 0.0
    %152 = vmatprep.mubr.f32.mxu0 0.0
    %153 = vmatmul.mubr.f32.gmra.mxu0 %v83
    %v154 = vpop.f32.mrf.mxu0
    %v155 = vadd.f32 %v79, %v154
    %v156 = vpop.f32.mrf.mxu0
    %157 = vmatprep.mubr.f32.mxu0 0.0
    %158 = vmatmul.mubr.f32.gmra.mxu0 %v86
    %v159 = vpop.f32.mrf.mxu0
    %v160 = vadd.f32 %v80, %v159
    %v161 = vpop.f32.mrf.mxu0
    %162 = vdwg.mxu0
    %v163 = vld [vmem:[%s3 + $0x10] sm:$0x1]
    %v164 = vld [vmem:[%s3 + $0x11] sm:$0x1]
    %v165 = vsel %vm81, %v155, 0.0
    %166 = vadd.xlane.f32.xlu0 %v165
    %v167 = vpop.xlane.xlu0 %166
    %v168 = vsel %vm81, %v160, 0.0
    %169 = vadd.xlane.f32.xlu0 %v168
    %v170 = vpop.xlane.xlu0 %169
    %v171 = vrcp.pop 32.0
    %v172 = vmul.f32 %v167, %v171
    %v173 = vmul.f32 %v170, %v171
    %v174 = vsub.f32 %v155, %v172
    %v175 = vsub.f32 %v160, %v173
    %v176 = vmul.f32 %v174, %v174
    %v177 = vmul.f32 %v175, %v175
    %v178 = vsel %vm81, %v176, 0.0
    %179 = vadd.xlane.f32.xlu0 %v178
    %v180 = vpop.xlane.xlu0 %179
    %v181 = vsel %vm81, %v177, 0.0
    %182 = vadd.xlane.f32.xlu0 %v181
    %v183 = vpop.xlane.xlu0 %182
    %v184 = vrcp.pop 31.0
    %v185 = vmul.f32 %v180, %v184
    %v186 = vmul.f32 %v183, %v184
    %v187 = vrsqrt.pop %v185
    %v188 = vmul.f32 %v185, %v187
    %vm189 = vcmp.eq.f32.partialorder %v185, inf
    %v190 = vsel %vm189, %v185, %v188
    %vm191 = vcmp.eq.f32.partialorder %v185, 0.0
    %v192 = vand.u32 %v185, 2147483648
    %v193 = vsel %vm191, %v192, %v190
    %v194 = vrsqrt.pop %v186
    %v195 = vmul.f32 %v186, %v194
    %vm196 = vcmp.eq.f32.partialorder %v186, inf
    %v197 = vsel %vm196, %v186, %v195
    %vm198 = vcmp.eq.f32.partialorder %v186, 0.0
    %v199 = vand.u32 %v186, 2147483648
    %v200 = vsel %vm198, %v199, %v197
    %v201 = vadd.f32 %v193, 1e-06
    %v202 = vadd.f32 %v200, 1e-06
    %v203 = vrcp.pop %v201
    %v204 = vrcp.pop %v202
    %v205 = vlaneseq
    %v206 = vshrl.u32 %v205, 7
    %v207 = vsub.s32 0, %v206
    %v208 = vrot.slane %v163, %v207
    %v209 = vmul.f32 %v208, %v174
    %v210 = vmul.f32 %v208, %v175
    %v211 = vmul.f32 %v209, %v203
    %v212 = vmul.f32 %v210, %v204
    %v213 = vlaneseq
    %v214 = vshrl.u32 %v213, 7
    %v215 = vsub.s32 0, %v214
    %v216 = vrot.slane %v164, %v215
    %v217 = vadd.f32 %v211, %v216
    %v218 = vadd.f32 %v212, %v216
    %v219 = vld [vmem:[%s2 + $0x20] sm:$0xff]
    %v220 = vld [vmem:[%s2 + $0x28] sm:$0xff]
    %v221 = vld [vmem:[%s2 + $0x30] sm:$0xff]
    %v222 = vld [vmem:[%s2 + $0x38] sm:$0xff]
    %v224 = vsel %vm81, %v217, 0
    %v227 = vsel %vm81, %v218, 0
    %229 = vmatprep.subr.mxu0 0.0
    %230 = vmatpush1.msra.mxu0 0.0
    %231 = vmatprep.subr.mxu0 0.0
    %232 = vmatpush1.msra.mxu0 0.0
    %233 = vmatprep.subr.mxu0 0.0
    %234 = vmatpush1.msra.mxu0 0.0
    %235 = vmatprep.subr.mxu0 0.0
    %236 = vmatpush1.msra.mxu0 0.0
    %237 = vmatprep.subr.mxu0 0.0
    %238 = vmatpush1.msra.mxu0 0.0
    %239 = vmatprep.subr.mxu0 0.0
    %240 = vmatpush1.msra.mxu0 0.0
    %241 = vmatprep.subr.mxu0 0.0
    %242 = vmatpush1.msra.mxu0 0.0
    %243 = vmatprep.subr.mxu0 0.0
    %244 = vmatpush1.msra.mxu0 0.0
    %245 = vmatprep.subr.mxu0 0.0
    %246 = vmatpush1.msra.mxu0 0.0
    %247 = vmatprep.subr.mxu0 0.0
    %248 = vmatpush1.msra.mxu0 0.0
    %249 = vmatprep.subr.mxu0 0.0
    %250 = vmatpush1.msra.mxu0 0.0
    %251 = vmatprep.subr.mxu0 0.0
    %252 = vmatpush1.msra.mxu0 0.0
    %253 = vmatprep.subr.mxu0 0.0
    %254 = vmatpush1.msra.mxu0 %v222
    %255 = vmatprep.subr.mxu0 0.0
    %256 = vmatpush1.msra.mxu0 %v221
    %257 = vmatprep.subr.mxu0 0.0
    %258 = vmatpush1.msra.mxu0 %v220
    %259 = vmatprep.subr.mxu0 0.0
    %260 = vmatpush1.msra.mxu0 %v219
    %261 = vmatprep.subr.mxu0 0.0
    %262 = vmatpush2.msra.mxu0 0.0
    %263 = vmatprep.subr.mxu0 0.0
    %264 = vmatpush2.msra.mxu0 0.0
    %265 = vmatprep.subr.mxu0 0.0
    %266 = vmatpush2.msra.mxu0 0.0
    %267 = vmatprep.subr.mxu0 0.0
    %268 = vmatpush2.msra.mxu0 0.0
    %269 = vmatprep.subr.mxu0 0.0
    %270 = vmatpush2.msra.mxu0 0.0
    %271 = vmatprep.subr.mxu0 0.0
    %272 = vmatpush2.msra.mxu0 0.0
    %273 = vmatprep.subr.mxu0 0.0
    %274 = vmatpush2.msra.mxu0 0.0
    %275 = vmatprep.subr.mxu0 0.0
    %276 = vmatpush2.msra.mxu0 0.0
    %277 = vmatprep.subr.mxu0 0.0
    %278 = vmatpush2.msra.mxu0 0.0
    %279 = vmatprep.subr.mxu0 0.0
    %280 = vmatpush2.msra.mxu0 0.0
    %281 = vmatprep.subr.mxu0 0.0
    %282 = vmatpush2.msra.mxu0 0.0
    %283 = vmatprep.subr.mxu0 0.0
    %284 = vmatpush2.msra.mxu0 0.0
    %285 = vmatprep.subr.mxu0 0.0
    %286 = vmatpush2.msra.mxu0 0.0
    %287 = vmatprep.subr.mxu0 0.0
    %288 = vmatpush2.msra.mxu0 0.0
    %289 = vmatprep.subr.mxu0 0.0
    %290 = vmatpush2.msra.mxu0 0.0
    %291 = vmatprep.subr.mxu0 0.0
    %292 = vmatpush2.msra.mxu0 0.0
    %293 = vmatprep.mubr.f32.mxu0 0.0
    %294 = vmatmul.mubr.f32.gmra.mxu0 %v224
    %v295 = vpop.f32.mrf.mxu0
    %v296 = vadd.f32 0.0, %v295
    %v297 = vpop.f32.mrf.mxu0
    %298 = vmatprep.mubr.f32.mxu0 0.0
    %299 = vmatmul.mubr.f32.gmra.mxu0 %v227
    %v300 = vpop.f32.mrf.mxu0
    %v301 = vadd.f32 0.0, %v300
    %v302 = vpop.f32.mrf.mxu0
    %303 = vdwg.mxu0
    %v304 = vmul.f32 %v296, 0.35355338
    %v305 = vmul.f32 %v301, 0.35355338
    %308 = vrot.lane.b32.xlu0 %v304, 120
    %v309 = vpop.permute.xlu0 %308
    %310 = vrot.lane.b32.xlu0 %v305, 120
    %v311 = vpop.permute.xlu0 %310
    %312 = vrot.lane.b32.xlu0 %v304, 112
    %v313 = vpop.permute.xlu0 %312
    %314 = vrot.lane.b32.xlu0 %v305, 112
    %v315 = vpop.permute.xlu0 %314
    %316 = vrot.lane.b32.xlu0 %v304, 104
    %v317 = vpop.permute.xlu0 %316
    %318 = vrot.lane.b32.xlu0 %v305, 104
    %v319 = vpop.permute.xlu0 %318
    %322 = vrot.lane.b32.xlu0 %v296, 120
    %v323 = vpop.permute.xlu0 %322
    %324 = vrot.lane.b32.xlu0 %v301, 120
    %v325 = vpop.permute.xlu0 %324
    %326 = vrot.lane.b32.xlu0 %v296, 112
    %v327 = vpop.permute.xlu0 %326
    %328 = vrot.lane.b32.xlu0 %v301, 112
    %v329 = vpop.permute.xlu0 %328
    %330 = vrot.lane.b32.xlu0 %v296, 104
    %v331 = vpop.permute.xlu0 %330
    %332 = vrot.lane.b32.xlu0 %v301, 104
    %v333 = vpop.permute.xlu0 %332
    %334 = vrot.lane.b32.xlu0 %v296, 96
    %v335 = vpop.permute.xlu0 %334
    %336 = vrot.lane.b32.xlu0 %v301, 96
    %v337 = vpop.permute.xlu0 %336
    %338 = vrot.lane.b32.xlu0 %v323, 96
    %v339 = vpop.permute.xlu0 %338
    %340 = vrot.lane.b32.xlu0 %v325, 96
    %v341 = vpop.permute.xlu0 %340
    %342 = vrot.lane.b32.xlu0 %v327, 96
    %v343 = vpop.permute.xlu0 %342
    %344 = vrot.lane.b32.xlu0 %v329, 96
    %v345 = vpop.permute.xlu0 %344
    %346 = vrot.lane.b32.xlu0 %v331, 96
    %v347 = vpop.permute.xlu0 %346
    %348 = vrot.lane.b32.xlu0 %v333, 96
    %v349 = vpop.permute.xlu0 %348
    %vm350 = vcmask 64512
    %v351 = vsel %vm350, %v304, 0
    %v353 = vsel %vm350, %v305, 0
    %v355 = vsel %vm350, %v309, 0
    %v357 = vsel %vm350, %v311, 0
    %v359 = vsel %vm350, %v313, 0
    %v361 = vsel %vm350, %v315, 0
    %v363 = vsel %vm350, %v317, 0
    %v365 = vsel %vm350, %v319, 0
    %v367 = vsel %vm350, %v335, 0
    %v369 = vsel %vm350, %v337, 0
    %v371 = vsel %vm350, %v339, 0
    %v373 = vsel %vm350, %v341, 0
    %v375 = vsel %vm350, %v343, 0
    %v377 = vsel %vm350, %v345, 0
    %v379 = vsel %vm350, %v347, 0
    %v381 = vsel %vm350, %v349, 0
    %383 = vmatprep.subr.mxu0 0.0
    %384 = vmatpush1.xpose.msra.mxu0 0.0
    %385 = vmatprep.subr.mxu0 0.0
    %386 = vmatpush1.xpose.msra.mxu0 0.0
    %387 = vmatprep.subr.mxu0 0.0
    %388 = vmatpush1.xpose.msra.mxu0 0.0
    %389 = vmatprep.subr.mxu0 0.0
    %390 = vmatpush1.xpose.msra.mxu0 0.0
    %391 = vmatprep.subr.mxu0 0.0
    %392 = vmatpush1.xpose.msra.mxu0 0.0
    %393 = vmatprep.subr.mxu0 0.0
    %394 = vmatpush1.xpose.msra.mxu0 0.0
    %395 = vmatprep.subr.mxu0 0.0
    %396 = vmatpush1.xpose.msra.mxu0 0.0
    %397 = vmatprep.subr.mxu0 0.0
    %398 = vmatpush1.xpose.msra.mxu0 0.0
    %399 = vmatprep.subr.mxu0 0.0
    %400 = vmatpush1.xpose.msra.mxu0 %v381
    %401 = vmatprep.subr.mxu0 0.0
    %402 = vmatpush1.xpose.msra.mxu0 %v379
    %403 = vmatprep.subr.mxu0 0.0
    %404 = vmatpush1.xpose.msra.mxu0 %v377
    %405 = vmatprep.subr.mxu0 0.0
    %406 = vmatpush1.xpose.msra.mxu0 %v375
    %407 = vmatprep.subr.mxu0 0.0
    %408 = vmatpush1.xpose.msra.mxu0 %v373
    %409 = vmatprep.subr.mxu0 0.0
    %410 = vmatpush1.xpose.msra.mxu0 %v371
    %411 = vmatprep.subr.mxu0 0.0
    %412 = vmatpush1.xpose.msra.mxu0 %v369
    %413 = vmatprep.subr.mxu0 0.0
    %414 = vmatpush1.xpose.msra.mxu0 %v367
    %415 = vmatprep.subr.mxu0 0.0
    %416 = vmatpush2.xpose.msra.mxu0 0.0
    %417 = vmatprep.subr.mxu0 0.0
    %418 = vmatpush2.xpose.msra.mxu0 0.0
    %419 = vmatprep.subr.mxu0 0.0
    %420 = vmatpush2.xpose.msra.mxu0 0.0
    %421 = vmatprep.subr.mxu0 0.0
    %422 = vmatpush2.xpose.msra.mxu0 0.0
    %423 = vmatprep.subr.mxu0 0.0
    %424 = vmatpush2.xpose.msra.mxu0 0.0
    %425 = vmatprep.subr.mxu0 0.0
    %426 = vmatpush2.xpose.msra.mxu0 0.0
    %427 = vmatprep.subr.mxu0 0.0
    %428 = vmatpush2.xpose.msra.mxu0 0.0
    %429 = vmatprep.subr.mxu0 0.0
    %430 = vmatpush2.xpose.msra.mxu0 0.0
    %431 = vmatprep.subr.mxu0 0.0
    %432 = vmatpush2.xpose.msra.mxu0 0.0
    %433 = vmatprep.subr.mxu0 0.0
    %434 = vmatpush2.xpose.msra.mxu0 0.0
    %435 = vmatprep.subr.mxu0 0.0
    %436 = vmatpush2.xpose.msra.mxu0 0.0
    %437 = vmatprep.subr.mxu0 0.0
    %438 = vmatpush2.xpose.msra.mxu0 0.0
    %439 = vmatprep.subr.mxu0 0.0
    %440 = vmatpush2.xpose.msra.mxu0 0.0
    %441 = vmatprep.subr.mxu0 0.0
    %442 = vmatpush2.xpose.msra.mxu0 0.0
    %443 = vmatprep.subr.mxu0 0.0
    %444 = vmatpush2.xpose.msra.mxu0 0.0
    %445 = vmatprep.subr.mxu0 0.0
    %446 = vmatpush2.xpose.msra.mxu0 0.0
    %447 = vmatprep.mubr.f32.mxu0 0.0
    %448 = vmatmul.mubr.f32.gmra.mxu0 %v351
    %v449 = vpop.f32.mrf.mxu0
    %v450 = vadd.f32 0.0, %v449
    %v451 = vpop.f32.mrf.mxu0
    %452 = vmatprep.mubr.f32.mxu0 0.0
    %453 = vmatmul.mubr.f32.gmra.mxu0 %v353
    %v454 = vpop.f32.mrf.mxu0
    %v455 = vadd.f32 0.0, %v454
    %v456 = vpop.f32.mrf.mxu0
    %457 = vmatprep.mubr.f32.mxu0 0.0
    %458 = vmatmul.mubr.f32.gmra.mxu0 %v355
    %v459 = vpop.f32.mrf.mxu0
    %v460 = vadd.f32 0.0, %v459
    %v461 = vpop.f32.mrf.mxu0
    %462 = vmatprep.mubr.f32.mxu0 0.0
    %463 = vmatmul.mubr.f32.gmra.mxu0 %v357
    %v464 = vpop.f32.mrf.mxu0
    %v465 = vadd.f32 0.0, %v464
    %v466 = vpop.f32.mrf.mxu0
    %467 = vmatprep.mubr.f32.mxu0 0.0
    %468 = vmatmul.mubr.f32.gmra.mxu0 %v359
    %v469 = vpop.f32.mrf.mxu0
    %v470 = vadd.f32 0.0, %v469
    %v471 = vpop.f32.mrf.mxu0
    %472 = vmatprep.mubr.f32.mxu0 0.0
    %473 = vmatmul.mubr.f32.gmra.mxu0 %v361
    %v474 = vpop.f32.mrf.mxu0
    %v475 = vadd.f32 0.0, %v474
    %v476 = vpop.f32.mrf.mxu0
    %477 = vmatprep.mubr.f32.mxu0 0.0
    %478 = vmatmul.mubr.f32.gmra.mxu0 %v363
    %v479 = vpop.f32.mrf.mxu0
    %v480 = vadd.f32 0.0, %v479
    %v481 = vpop.f32.mrf.mxu0
    %482 = vmatprep.mubr.f32.mxu0 0.0
    %483 = vmatmul.mubr.f32.gmra.mxu0 %v365
    %v484 = vpop.f32.mrf.mxu0
    %v485 = vadd.f32 0.0, %v484
    %v486 = vpop.f32.mrf.mxu0
    %487 = vdwg.mxu0
    %v488 = vsel %vm34, -1e+18, %v450
    %v489 = vsel %vm35, -1e+18, %v455
    %v490 = vsel %vm36, -1e+18, %v460
    %v491 = vsel %vm37, -1e+18, %v465
    %v492 = vsel %vm38, -1e+18, %v470
    %v493 = vsel %vm39, -1e+18, %v475
    %v494 = vsel %vm40, -1e+18, %v480
    %v495 = vsel %vm41, -1e+18, %v485
    %v496 = vsel %vm26, -2e+18, %v488
    %v497 = vsel %vm27, -2e+18, %v489
    %v498 = vsel %vm28, -2e+18, %v490
    %v499 = vsel %vm29, -2e+18, %v491
    %v500 = vsel %vm30, -2e+18, %v492
    %v501 = vsel %vm31, -2e+18, %v493
    %v502 = vsel %vm32, -2e+18, %v494
    %v503 = vsel %vm33, -2e+18, %v495
    %vm504 = vcmask 523264
    %v505 = vsel %vm504, %v496, -inf
    %506 = vmax.xlane.f32.xlu0 %v505
    %v507 = vpop.xlane.xlu0 %506
    %v508 = vsel %vm504, %v497, -inf
    %509 = vmax.xlane.f32.xlu0 %v508
    %v510 = vpop.xlane.xlu0 %509
    %v511 = vsel %vm504, %v498, -inf
    %512 = vmax.xlane.f32.xlu0 %v511
    %v513 = vpop.xlane.xlu0 %512
    %v514 = vsel %vm504, %v499, -inf
    %515 = vmax.xlane.f32.xlu0 %v514
    %v516 = vpop.xlane.xlu0 %515
    %v517 = vsel %vm504, %v500, -inf
    %518 = vmax.xlane.f32.xlu0 %v517
    %v519 = vpop.xlane.xlu0 %518
    %v520 = vsel %vm504, %v501, -inf
    %521 = vmax.xlane.f32.xlu0 %v520
    %v522 = vpop.xlane.xlu0 %521
    %v523 = vsel %vm504, %v502, -inf
    %524 = vmax.xlane.f32.xlu0 %v523
    %v525 = vpop.xlane.xlu0 %524
    %v526 = vsel %vm504, %v503, -inf
    %527 = vmax.xlane.f32.xlu0 %v526
    %v528 = vpop.xlane.xlu0 %527
    %v529 = vsub.f32 %v496, %v507
    %v530 = vsub.f32 %v497, %v510
    %v531 = vsub.f32 %v498, %v513
    %v532 = vsub.f32 %v499, %v516
    %v533 = vsub.f32 %v500, %v519
    %v534 = vsub.f32 %v501, %v522
    %v535 = vsub.f32 %v502, %v525
    %v536 = vsub.f32 %v503, %v528
    %v537 = vmul.f32 %v529, 1.442695
    %v538 = vpow.pop %v537
    %v539 = vmul.f32 %v530, 1.442695
    %v540 = vpow.pop %v539
    %v541 = vmul.f32 %v531, 1.442695
    %v542 = vpow.pop %v541
    %v543 = vmul.f32 %v532, 1.442695
    %v544 = vpow.pop %v543
    %v545 = vmul.f32 %v533, 1.442695
    %v546 = vpow.pop %v545
    %v547 = vmul.f32 %v534, 1.442695
    %v548 = vpow.pop %v547
    %v549 = vmul.f32 %v535, 1.442695
    %v550 = vpow.pop %v549
    %v551 = vmul.f32 %v536, 1.442695
    %v552 = vpow.pop %v551
    %v553 = vsel %vm504, %v538, 0.0
    %554 = vadd.xlane.f32.xlu0 %v553
    %v555 = vpop.xlane.xlu0 %554
    %v556 = vsel %vm504, %v540, 0.0
    %557 = vadd.xlane.f32.xlu0 %v556
    %v558 = vpop.xlane.xlu0 %557
    %v559 = vsel %vm504, %v542, 0.0
    %560 = vadd.xlane.f32.xlu0 %v559
    %v561 = vpop.xlane.xlu0 %560
    %v562 = vsel %vm504, %v544, 0.0
    %563 = vadd.xlane.f32.xlu0 %v562
    %v564 = vpop.xlane.xlu0 %563
    %v565 = vsel %vm504, %v546, 0.0
    %566 = vadd.xlane.f32.xlu0 %v565
    %v567 = vpop.xlane.xlu0 %566
    %v568 = vsel %vm504, %v548, 0.0
    %569 = vadd.xlane.f32.xlu0 %v568
    %v570 = vpop.xlane.xlu0 %569
    %v571 = vsel %vm504, %v550, 0.0
    %572 = vadd.xlane.f32.xlu0 %v571
    %v573 = vpop.xlane.xlu0 %572
    %v574 = vsel %vm504, %v552, 0.0
    %575 = vadd.xlane.f32.xlu0 %v574
    %v576 = vpop.xlane.xlu0 %575
    %v577 = vrcp.pop %v555
    %v578 = vrcp.pop %v558
    %v579 = vrcp.pop %v561
    %v580 = vrcp.pop %v564
    %v581 = vrcp.pop %v567
    %v582 = vrcp.pop %v570
    %v583 = vrcp.pop %v573
    %v584 = vrcp.pop %v576
    %v585 = vmul.f32 %v538, %v577
    %v586 = vmul.f32 %v540, %v578
    %v587 = vmul.f32 %v542, %v579
    %v588 = vmul.f32 %v544, %v580
    %v589 = vmul.f32 %v546, %v581
    %v590 = vmul.f32 %v548, %v582
    %v591 = vmul.f32 %v550, %v583
    %v592 = vmul.f32 %v552, %v584
    %593 = vrot.lane.b32.xlu0 %v296, 64
    %v594 = vpop.permute.xlu0 %593
    %595 = vrot.lane.b32.xlu0 %v301, 64
    %v596 = vpop.permute.xlu0 %595
    %597 = vrot.lane.b32.xlu0 %v323, 64
    %v598 = vpop.permute.xlu0 %597
    %599 = vrot.lane.b32.xlu0 %v325, 64
    %v600 = vpop.permute.xlu0 %599
    %601 = vrot.lane.b32.xlu0 %v327, 64
    %v602 = vpop.permute.xlu0 %601
    %603 = vrot.lane.b32.xlu0 %v329, 64
    %v604 = vpop.permute.xlu0 %603
    %605 = vrot.lane.b32.xlu0 %v331, 64
    %v606 = vpop.permute.xlu0 %605
    %607 = vrot.lane.b32.xlu0 %v333, 64
    %v608 = vpop.permute.xlu0 %607
    %v618 = vsel %vm504, %v585, 0
    %v621 = vsel %vm504, %v586, 0
    %v624 = vsel %vm504, %v587, 0
    %v627 = vsel %vm504, %v588, 0
    %v630 = vsel %vm504, %v589, 0
    %v633 = vsel %vm504, %v590, 0
    %v636 = vsel %vm504, %v591, 0
    %v639 = vsel %vm504, %v592, 0
    %641 = vmatprep.subr.mxu0 0.0
    %642 = vmatpush1.msra.mxu0 0.0
    %643 = vmatprep.subr.mxu0 0.0
    %644 = vmatpush1.msra.mxu0 0.0
    %645 = vmatprep.subr.mxu0 0.0
    %646 = vmatpush1.msra.mxu0 0.0
    %647 = vmatprep.subr.mxu0 0.0
    %648 = vmatpush1.msra.mxu0 0.0
    %649 = vmatprep.subr.mxu0 0.0
    %650 = vmatpush1.msra.mxu0 0.0
    %651 = vmatprep.subr.mxu0 0.0
    %652 = vmatpush1.msra.mxu0 0.0
    %653 = vmatprep.subr.mxu0 0.0
    %654 = vmatpush1.msra.mxu0 0.0
    %655 = vmatprep.subr.mxu0 0.0
    %656 = vmatpush1.msra.mxu0 0.0
    %657 = vmatprep.subr.mxu0 0.0
    %658 = vmatpush1.msra.mxu0 %v608
    %659 = vmatprep.subr.mxu0 0.0
    %660 = vmatpush1.msra.mxu0 %v606
    %661 = vmatprep.subr.mxu0 0.0
    %662 = vmatpush1.msra.mxu0 %v604
    %663 = vmatprep.subr.mxu0 0.0
    %664 = vmatpush1.msra.mxu0 %v602
    %665 = vmatprep.subr.mxu0 0.0
    %666 = vmatpush1.msra.mxu0 %v600
    %667 = vmatprep.subr.mxu0 0.0
    %668 = vmatpush1.msra.mxu0 %v598
    %669 = vmatprep.subr.mxu0 0.0
    %670 = vmatpush1.msra.mxu0 %v596
    %671 = vmatprep.subr.mxu0 0.0
    %672 = vmatpush1.msra.mxu0 %v594
    %673 = vmatprep.subr.mxu0 0.0
    %674 = vmatpush2.msra.mxu0 0.0
    %675 = vmatprep.subr.mxu0 0.0
    %676 = vmatpush2.msra.mxu0 0.0
    %677 = vmatprep.subr.mxu0 0.0
    %678 = vmatpush2.msra.mxu0 0.0
    %679 = vmatprep.subr.mxu0 0.0
    %680 = vmatpush2.msra.mxu0 0.0
    %681 = vmatprep.subr.mxu0 0.0
    %682 = vmatpush2.msra.mxu0 0.0
    %683 = vmatprep.subr.mxu0 0.0
    %684 = vmatpush2.msra.mxu0 0.0
    %685 = vmatprep.subr.mxu0 0.0
    %686 = vmatpush2.msra.mxu0 0.0
    %687 = vmatprep.subr.mxu0 0.0
    %688 = vmatpush2.msra.mxu0 0.0
    %689 = vmatprep.subr.mxu0 0.0
    %690 = vmatpush2.msra.mxu0 0.0
    %691 = vmatprep.subr.mxu0 0.0
    %692 = vmatpush2.msra.mxu0 0.0
    %693 = vmatprep.subr.mxu0 0.0
    %694 = vmatpush2.msra.mxu0 0.0
    %695 = vmatprep.subr.mxu0 0.0
    %696 = vmatpush2.msra.mxu0 0.0
    %697 = vmatprep.subr.mxu0 0.0
    %698 = vmatpush2.msra.mxu0 0.0
    %699 = vmatprep.subr.mxu0 0.0
    %700 = vmatpush2.msra.mxu0 0.0
    %701 = vmatprep.subr.mxu0 0.0
    %702 = vmatpush2.msra.mxu0 0.0
    %703 = vmatprep.subr.mxu0 0.0
    %704 = vmatpush2.msra.mxu0 0.0
    %705 = vmatprep.mubr.f32.mxu0 0.0
    %706 = vmatmul.mubr.f32.gmra.mxu0 %v618
    %v707 = vpop.f32.mrf.mxu0
    %v708 = vadd.f32 0.0, %v707
    %v709 = vpop.f32.mrf.mxu0
    %710 = vmatprep.mubr.f32.mxu0 0.0
    %711 = vmatmul.mubr.f32.gmra.mxu0 %v621
    %v712 = vpop.f32.mrf.mxu0
    %v713 = vadd.f32 0.0, %v712
    %v714 = vpop.f32.mrf.mxu0
    %715 = vmatprep.mubr.f32.mxu0 0.0
    %716 = vmatmul.mubr.f32.gmra.mxu0 %v624
    %v717 = vpop.f32.mrf.mxu0
    %v718 = vadd.f32 0.0, %v717
    %v719 = vpop.f32.mrf.mxu0
    %720 = vmatprep.mubr.f32.mxu0 0.0
    %721 = vmatmul.mubr.f32.gmra.mxu0 %v627
    %v722 = vpop.f32.mrf.mxu0
    %v723 = vadd.f32 0.0, %v722
    %v724 = vpop.f32.mrf.mxu0
    %725 = vmatprep.mubr.f32.mxu0 0.0
    %726 = vmatmul.mubr.f32.gmra.mxu0 %v630
    %v727 = vpop.f32.mrf.mxu0
    %v728 = vadd.f32 0.0, %v727
    %v729 = vpop.f32.mrf.mxu0
    %730 = vmatprep.mubr.f32.mxu0 0.0
    %731 = vmatmul.mubr.f32.gmra.mxu0 %v633
    %v732 = vpop.f32.mrf.mxu0
    %v733 = vadd.f32 0.0, %v732
    %v734 = vpop.f32.mrf.mxu0
    %735 = vmatprep.mubr.f32.mxu0 0.0
    %736 = vmatmul.mubr.f32.gmra.mxu0 %v636
    %v737 = vpop.f32.mrf.mxu0
    %v738 = vadd.f32 0.0, %v737
    %v739 = vpop.f32.mrf.mxu0
    %740 = vmatprep.mubr.f32.mxu0 0.0
    %741 = vmatmul.mubr.f32.gmra.mxu0 %v639
    %v742 = vpop.f32.mrf.mxu0
    %v743 = vadd.f32 0.0, %v742
    %v744 = vpop.f32.mrf.mxu0
    %745 = vdwg.mxu0
    %v746 = vld [vmem:[%s2 + $0x40] sm:$0xff]
    %v748 = vsel %vm350, %v708, 0
    %v751 = vsel %vm350, %v713, 0
    %753 = vmatprep.subr.mxu0 0.0
    %754 = vmatpush1.msra.mxu0 0.0
    %755 = vmatprep.subr.mxu0 0.0
    %756 = vmatpush1.msra.mxu0 0.0
    %757 = vmatprep.subr.mxu0 0.0
    %758 = vmatpush1.msra.mxu0 0.0
    %759 = vmatprep.subr.mxu0 0.0
    %760 = vmatpush1.msra.mxu0 0.0
    %761 = vmatprep.subr.mxu0 0.0
    %762 = vmatpush1.msra.mxu0 0.0
    %763 = vmatprep.subr.mxu0 0.0
    %764 = vmatpush1.msra.mxu0 0.0
    %765 = vmatprep.subr.mxu0 0.0
    %766 = vmatpush1.msra.mxu0 0.0
    %767 = vmatprep.subr.mxu0 0.0
    %768 = vmatpush1.msra.mxu0 0.0
    %769 = vmatprep.subr.mxu0 0.0
    %770 = vmatpush1.msra.mxu0 0.0
    %771 = vmatprep.subr.mxu0 0.0
    %772 = vmatpush1.msra.mxu0 0.0
    %773 = vmatprep.subr.mxu0 0.0
    %774 = vmatpush1.msra.mxu0 0.0
    %775 = vmatprep.subr.mxu0 0.0
    %776 = vmatpush1.msra.mxu0 0.0
    %777 = vmatprep.subr.mxu0 0.0
    %778 = vmatpush1.msra.mxu0 0.0
    %779 = vmatprep.subr.mxu0 0.0
    %780 = vmatpush1.msra.mxu0 0.0
    %781 = vmatprep.subr.mxu0 0.0
    %782 = vmatpush1.msra.mxu0 0.0
    %783 = vmatprep.subr.mxu0 0.0
    %784 = vmatpush1.msra.mxu0 %v746
    %785 = vmatprep.subr.mxu0 0.0
    %786 = vmatpush2.msra.mxu0 0.0
    %787 = vmatprep.subr.mxu0 0.0
    %788 = vmatpush2.msra.mxu0 0.0
    %789 = vmatprep.subr.mxu0 0.0
    %790 = vmatpush2.msra.mxu0 0.0
    %791 = vmatprep.subr.mxu0 0.0
    %792 = vmatpush2.msra.mxu0 0.0
    %793 = vmatprep.subr.mxu0 0.0
    %794 = vmatpush2.msra.mxu0 0.0
    %795 = vmatprep.subr.mxu0 0.0
    %796 = vmatpush2.msra.mxu0 0.0
    %797 = vmatprep.subr.mxu0 0.0
    %798 = vmatpush2.msra.mxu0 0.0
    %799 = vmatprep.subr.mxu0 0.0
    %800 = vmatpush2.msra.mxu0 0.0
    %801 = vmatprep.subr.mxu0 0.0
    %802 = vmatpush2.msra.mxu0 0.0
    %803 = vmatprep.subr.mxu0 0.0
    %804 = vmatpush2.msra.mxu0 0.0
    %805 = vmatprep.subr.mxu0 0.0
    %806 = vmatpush2.msra.mxu0 0.0
    %807 = vmatprep.subr.mxu0 0.0
    %808 = vmatpush2.msra.mxu0 0.0
    %809 = vmatprep.subr.mxu0 0.0
    %810 = vmatpush2.msra.mxu0 0.0
    %811 = vmatprep.subr.mxu0 0.0
    %812 = vmatpush2.msra.mxu0 0.0
    %813 = vmatprep.subr.mxu0 0.0
    %814 = vmatpush2.msra.mxu0 0.0
    %815 = vmatprep.subr.mxu0 0.0
    %816 = vmatpush2.msra.mxu0 0.0
    %817 = vmatprep.mubr.f32.mxu0 0.0
    %818 = vmatmul.mubr.f32.gmra.mxu0 %v748
    %v819 = vpop.f32.mrf.mxu0
    %v820 = vadd.f32 0.0, %v819
    %v821 = vpop.f32.mrf.mxu0
    %822 = vmatprep.mubr.f32.mxu0 0.0
    %823 = vmatmul.mubr.f32.gmra.mxu0 %v751
    %v824 = vpop.f32.mrf.mxu0
    %v825 = vadd.f32 0.0, %v824
    %v826 = vpop.f32.mrf.mxu0
    %827 = vdwg.mxu0
    %v828 = vadd.f32 %v155, %v820
    %v829 = vadd.f32 %v160, %v825
    %v830 = vld [vmem:[%s2 + $0x48] sm:$0xff]
    %v832 = vsel %vm350, %v718, 0
    %v835 = vsel %vm350, %v723, 0
    %837 = vmatprep.subr.mxu0 0.0
    %838 = vmatpush1.msra.mxu0 0.0
    %839 = vmatprep.subr.mxu0 0.0
    %840 = vmatpush1.msra.mxu0 0.0
    %841 = vmatprep.subr.mxu0 0.0
    %842 = vmatpush1.msra.mxu0 0.0
    %843 = vmatprep.subr.mxu0 0.0
    %844 = vmatpush1.msra.mxu0 0.0
    %845 = vmatprep.subr.mxu0 0.0
    %846 = vmatpush1.msra.mxu0 0.0
    %847 = vmatprep.subr.mxu0 0.0
    %848 = vmatpush1.msra.mxu0 0.0
    %849 = vmatprep.subr.mxu0 0.0
    %850 = vmatpush1.msra.mxu0 0.0
    %851 = vmatprep.subr.mxu0 0.0
    %852 = vmatpush1.msra.mxu0 0.0
    %853 = vmatprep.subr.mxu0 0.0
    %854 = vmatpush1.msra.mxu0 0.0
    %855 = vmatprep.subr.mxu0 0.0
    %856 = vmatpush1.msra.mxu0 0.0
    %857 = vmatprep.subr.mxu0 0.0
    %858 = vmatpush1.msra.mxu0 0.0
    %859 = vmatprep.subr.mxu0 0.0
    %860 = vmatpush1.msra.mxu0 0.0
    %861 = vmatprep.subr.mxu0 0.0
    %862 = vmatpush1.msra.mxu0 0.0
    %863 = vmatprep.subr.mxu0 0.0
    %864 = vmatpush1.msra.mxu0 0.0
    %865 = vmatprep.subr.mxu0 0.0
    %866 = vmatpush1.msra.mxu0 0.0
    %867 = vmatprep.subr.mxu0 0.0
    %868 = vmatpush1.msra.mxu0 %v830
    %869 = vmatprep.subr.mxu0 0.0
    %870 = vmatpush2.msra.mxu0 0.0
    %871 = vmatprep.subr.mxu0 0.0
    %872 = vmatpush2.msra.mxu0 0.0
    %873 = vmatprep.subr.mxu0 0.0
    %874 = vmatpush2.msra.mxu0 0.0
    %875 = vmatprep.subr.mxu0 0.0
    %876 = vmatpush2.msra.mxu0 0.0
    %877 = vmatprep.subr.mxu0 0.0
    %878 = vmatpush2.msra.mxu0 0.0
    %879 = vmatprep.subr.mxu0 0.0
    %880 = vmatpush2.msra.mxu0 0.0
    %881 = vmatprep.subr.mxu0 0.0
    %882 = vmatpush2.msra.mxu0 0.0
    %883 = vmatprep.subr.mxu0 0.0
    %884 = vmatpush2.msra.mxu0 0.0
    %885 = vmatprep.subr.mxu0 0.0
    %886 = vmatpush2.msra.mxu0 0.0
    %887 = vmatprep.subr.mxu0 0.0
    %888 = vmatpush2.msra.mxu0 0.0
    %889 = vmatprep.subr.mxu0 0.0
    %890 = vmatpush2.msra.mxu0 0.0
    %891 = vmatprep.subr.mxu0 0.0
    %892 = vmatpush2.msra.mxu0 0.0
    %893 = vmatprep.subr.mxu0 0.0
    %894 = vmatpush2.msra.mxu0 0.0
    %895 = vmatprep.subr.mxu0 0.0
    %896 = vmatpush2.msra.mxu0 0.0
    %897 = vmatprep.subr.mxu0 0.0
    %898 = vmatpush2.msra.mxu0 0.0
    %899 = vmatprep.subr.mxu0 0.0
    %900 = vmatpush2.msra.mxu0 0.0
    %901 = vmatprep.mubr.f32.mxu0 0.0
    %902 = vmatmul.mubr.f32.gmra.mxu0 %v832
    %v903 = vpop.f32.mrf.mxu0
    %v904 = vadd.f32 0.0, %v903
    %v905 = vpop.f32.mrf.mxu0
    %906 = vmatprep.mubr.f32.mxu0 0.0
    %907 = vmatmul.mubr.f32.gmra.mxu0 %v835
    %v908 = vpop.f32.mrf.mxu0
    %v909 = vadd.f32 0.0, %v908
    %v910 = vpop.f32.mrf.mxu0
    %911 = vdwg.mxu0
    %v912 = vadd.f32 %v828, %v904
    %v913 = vadd.f32 %v829, %v909
    %v914 = vld [vmem:[%s2 + $0x50] sm:$0xff]
    %v916 = vsel %vm350, %v728, 0
    %v919 = vsel %vm350, %v733, 0
    %921 = vmatprep.subr.mxu0 0.0
    %922 = vmatpush1.msra.mxu0 0.0
    %923 = vmatprep.subr.mxu0 0.0
    %924 = vmatpush1.msra.mxu0 0.0
    %925 = vmatprep.subr.mxu0 0.0
    %926 = vmatpush1.msra.mxu0 0.0
    %927 = vmatprep.subr.mxu0 0.0
    %928 = vmatpush1.msra.mxu0 0.0
    %929 = vmatprep.subr.mxu0 0.0
    %930 = vmatpush1.msra.mxu0 0.0
    %931 = vmatprep.subr.mxu0 0.0
    %932 = vmatpush1.msra.mxu0 0.0
    %933 = vmatprep.subr.mxu0 0.0
    %934 = vmatpush1.msra.mxu0 0.0
    %935 = vmatprep.subr.mxu0 0.0
    %936 = vmatpush1.msra.mxu0 0.0
    %937 = vmatprep.subr.mxu0 0.0
    %938 = vmatpush1.msra.mxu0 0.0
    %939 = vmatprep.subr.mxu0 0.0
    %940 = vmatpush1.msra.mxu0 0.0
    %941 = vmatprep.subr.mxu0 0.0
    %942 = vmatpush1.msra.mxu0 0.0
    %943 = vmatprep.subr.mxu0 0.0
    %944 = vmatpush1.msra.mxu0 0.0
    %945 = vmatprep.subr.mxu0 0.0
    %946 = vmatpush1.msra.mxu0 0.0
    %947 = vmatprep.subr.mxu0 0.0
    %948 = vmatpush1.msra.mxu0 0.0
    %949 = vmatprep.subr.mxu0 0.0
    %950 = vmatpush1.msra.mxu0 0.0
    %951 = vmatprep.subr.mxu0 0.0
    %952 = vmatpush1.msra.mxu0 %v914
    %953 = vmatprep.subr.mxu0 0.0
    %954 = vmatpush2.msra.mxu0 0.0
    %955 = vmatprep.subr.mxu0 0.0
    %956 = vmatpush2.msra.mxu0 0.0
    %957 = vmatprep.subr.mxu0 0.0
    %958 = vmatpush2.msra.mxu0 0.0
    %959 = vmatprep.subr.mxu0 0.0
    %960 = vmatpush2.msra.mxu0 0.0
    %961 = vmatprep.subr.mxu0 0.0
    %962 = vmatpush2.msra.mxu0 0.0
    %963 = vmatprep.subr.mxu0 0.0
    %964 = vmatpush2.msra.mxu0 0.0
    %965 = vmatprep.subr.mxu0 0.0
    %966 = vmatpush2.msra.mxu0 0.0
    %967 = vmatprep.subr.mxu0 0.0
    %968 = vmatpush2.msra.mxu0 0.0
    %969 = vmatprep.subr.mxu0 0.0
    %970 = vmatpush2.msra.mxu0 0.0
    %971 = vmatprep.subr.mxu0 0.0
    %972 = vmatpush2.msra.mxu0 0.0
    %973 = vmatprep.subr.mxu0 0.0
    %974 = vmatpush2.msra.mxu0 0.0
    %975 = vmatprep.subr.mxu0 0.0
    %976 = vmatpush2.msra.mxu0 0.0
    %977 = vmatprep.subr.mxu0 0.0
    %978 = vmatpush2.msra.mxu0 0.0
    %979 = vmatprep.subr.mxu0 0.0
    %980 = vmatpush2.msra.mxu0 0.0
    %981 = vmatprep.subr.mxu0 0.0
    %982 = vmatpush2.msra.mxu0 0.0
    %983 = vmatprep.subr.mxu0 0.0
    %984 = vmatpush2.msra.mxu0 0.0
    %985 = vmatprep.mubr.f32.mxu0 0.0
    %986 = vmatmul.mubr.f32.gmra.mxu0 %v916
    %v987 = vpop.f32.mrf.mxu0
    %v988 = vadd.f32 0.0, %v987
    %v989 = vpop.f32.mrf.mxu0
    %990 = vmatprep.mubr.f32.mxu0 0.0
    %991 = vmatmul.mubr.f32.gmra.mxu0 %v919
    %v992 = vpop.f32.mrf.mxu0
    %v993 = vadd.f32 0.0, %v992
    %v994 = vpop.f32.mrf.mxu0
    %995 = vdwg.mxu0
    %v996 = vadd.f32 %v912, %v988
    %v997 = vadd.f32 %v913, %v993
    %v998 = vld [vmem:[%s2 + $0x58] sm:$0xff]
    %v1000 = vsel %vm350, %v738, 0
    %v1003 = vsel %vm350, %v743, 0
    %1005 = vmatprep.subr.mxu0 0.0
    %1006 = vmatpush1.msra.mxu0 0.0
    %1007 = vmatprep.subr.mxu0 0.0
    %1008 = vmatpush1.msra.mxu0 0.0
    %1009 = vmatprep.subr.mxu0 0.0
    %1010 = vmatpush1.msra.mxu0 0.0
    %1011 = vmatprep.subr.mxu0 0.0
    %1012 = vmatpush1.msra.mxu0 0.0
    %1013 = vmatprep.subr.mxu0 0.0
    %1014 = vmatpush1.msra.mxu0 0.0
    %1015 = vmatprep.subr.mxu0 0.0
    %1016 = vmatpush1.msra.mxu0 0.0
    %1017 = vmatprep.subr.mxu0 0.0
    %1018 = vmatpush1.msra.mxu0 0.0
    %1019 = vmatprep.subr.mxu0 0.0
    %1020 = vmatpush1.msra.mxu0 0.0
    %1021 = vmatprep.subr.mxu0 0.0
    %1022 = vmatpush1.msra.mxu0 0.0
    %1023 = vmatprep.subr.mxu0 0.0
    %1024 = vmatpush1.msra.mxu0 0.0
    %1025 = vmatprep.subr.mxu0 0.0
    %1026 = vmatpush1.msra.mxu0 0.0
    %1027 = vmatprep.subr.mxu0 0.0
    %1028 = vmatpush1.msra.mxu0 0.0
    %1029 = vmatprep.subr.mxu0 0.0
    %1030 = vmatpush1.msra.mxu0 0.0
    %1031 = vmatprep.subr.mxu0 0.0
    %1032 = vmatpush1.msra.mxu0 0.0
    %1033 = vmatprep.subr.mxu0 0.0
    %1034 = vmatpush1.msra.mxu0 0.0
    %1035 = vmatprep.subr.mxu0 0.0
    %1036 = vmatpush1.msra.mxu0 %v998
    %1037 = vmatprep.subr.mxu0 0.0
    %1038 = vmatpush2.msra.mxu0 0.0
    %1039 = vmatprep.subr.mxu0 0.0
    %1040 = vmatpush2.msra.mxu0 0.0
    %1041 = vmatprep.subr.mxu0 0.0
    %1042 = vmatpush2.msra.mxu0 0.0
    %1043 = vmatprep.subr.mxu0 0.0
    %1044 = vmatpush2.msra.mxu0 0.0
    %1045 = vmatprep.subr.mxu0 0.0
    %1046 = vmatpush2.msra.mxu0 0.0
    %1047 = vmatprep.subr.mxu0 0.0
    %1048 = vmatpush2.msra.mxu0 0.0
    %1049 = vmatprep.subr.mxu0 0.0
    %1050 = vmatpush2.msra.mxu0 0.0
    %1051 = vmatprep.subr.mxu0 0.0
    %1052 = vmatpush2.msra.mxu0 0.0
    %1053 = vmatprep.subr.mxu0 0.0
    %1054 = vmatpush2.msra.mxu0 0.0
    %1055 = vmatprep.subr.mxu0 0.0
    %1056 = vmatpush2.msra.mxu0 0.0
    %1057 = vmatprep.subr.mxu0 0.0
    %1058 = vmatpush2.msra.mxu0 0.0
    %1059 = vmatprep.subr.mxu0 0.0
    %1060 = vmatpush2.msra.mxu0 0.0
    %1061 = vmatprep.subr.mxu0 0.0
    %1062 = vmatpush2.msra.mxu0 0.0
    %1063 = vmatprep.subr.mxu0 0.0
    %1064 = vmatpush2.msra.mxu0 0.0
    %1065 = vmatprep.subr.mxu0 0.0
    %1066 = vmatpush2.msra.mxu0 0.0
    %1067 = vmatprep.subr.mxu0 0.0
    %1068 = vmatpush2.msra.mxu0 0.0
    %1069 = vmatprep.mubr.f32.mxu0 0.0
    %1070 = vmatmul.mubr.f32.gmra.mxu0 %v1000
    %v1071 = vpop.f32.mrf.mxu0
    %v1072 = vadd.f32 0.0, %v1071
    %v1073 = vpop.f32.mrf.mxu0
    %1074 = vmatprep.mubr.f32.mxu0 0.0
    %1075 = vmatmul.mubr.f32.gmra.mxu0 %v1003
    %v1076 = vpop.f32.mrf.mxu0
    %v1077 = vadd.f32 0.0, %v1076
    %v1078 = vpop.f32.mrf.mxu0
    %1079 = vdwg.mxu0
    %v1080 = vadd.f32 %v996, %v1072
    %v1081 = vadd.f32 %v997, %v1077
    %v1082 = vld [vmem:[%s3 + $0x12] sm:$0x1]
    %v1083 = vld [vmem:[%s3 + $0x13] sm:$0x1]
    %v1084 = vsel %vm81, %v1080, 0.0
    %1085 = vadd.xlane.f32.xlu0 %v1084
    %v1086 = vpop.xlane.xlu0 %1085
    %v1087 = vsel %vm81, %v1081, 0.0
    %1088 = vadd.xlane.f32.xlu0 %v1087
    %v1089 = vpop.xlane.xlu0 %1088
    %v1090 = vmul.f32 %v1086, %v171
    %v1091 = vmul.f32 %v1089, %v171
    %v1092 = vsub.f32 %v1080, %v1090
    %v1093 = vsub.f32 %v1081, %v1091
    %v1094 = vmul.f32 %v1092, %v1092
    %v1095 = vmul.f32 %v1093, %v1093
    %v1096 = vsel %vm81, %v1094, 0.0
    %1097 = vadd.xlane.f32.xlu0 %v1096
    %v1098 = vpop.xlane.xlu0 %1097
    %v1099 = vsel %vm81, %v1095, 0.0
    %1100 = vadd.xlane.f32.xlu0 %v1099
    %v1101 = vpop.xlane.xlu0 %1100
    %v1102 = vmul.f32 %v1098, %v184
    %v1103 = vmul.f32 %v1101, %v184
    %v1104 = vrsqrt.pop %v1102
    %v1105 = vmul.f32 %v1102, %v1104
    %vm1106 = vcmp.eq.f32.partialorder %v1102, inf
    %v1107 = vsel %vm1106, %v1102, %v1105
    %vm1108 = vcmp.eq.f32.partialorder %v1102, 0.0
    %v1109 = vand.u32 %v1102, 2147483648
    %v1110 = vsel %vm1108, %v1109, %v1107
    %v1111 = vrsqrt.pop %v1103
    %v1112 = vmul.f32 %v1103, %v1111
    %vm1113 = vcmp.eq.f32.partialorder %v1103, inf
    %v1114 = vsel %vm1113, %v1103, %v1112
    %vm1115 = vcmp.eq.f32.partialorder %v1103, 0.0
    %v1116 = vand.u32 %v1103, 2147483648
    %v1117 = vsel %vm1115, %v1116, %v1114
    %v1118 = vadd.f32 %v1110, 1e-06
    %v1119 = vadd.f32 %v1117, 1e-06
    %v1120 = vrcp.pop %v1118
    %v1121 = vrcp.pop %v1119
    %v1122 = vlaneseq
    %v1123 = vshrl.u32 %v1122, 7
    %v1124 = vsub.s32 0, %v1123
    %v1125 = vrot.slane %v1082, %v1124
    %v1126 = vmul.f32 %v1125, %v1092
    %v1127 = vmul.f32 %v1125, %v1093
    %v1128 = vmul.f32 %v1126, %v1120
    %v1129 = vmul.f32 %v1127, %v1121
    %v1130 = vlaneseq
    %v1131 = vshrl.u32 %v1130, 7
    %v1132 = vsub.s32 0, %v1131
    %v1133 = vrot.slane %v1083, %v1132
    %v1134 = vadd.f32 %v1128, %v1133
    %v1135 = vadd.f32 %v1129, %v1133
    %v1136 = vrot.slane %v1134, 7
    %v1137 = vrot.slane %v1135, 7
    %vm1138 = vcmp.lt.s32.totalorder %v43, 1
    %v1139 = vsel %vm1138, %v1136, %v1137
    %v1140 = vsel %vm1138, %v1137, %v1136
    %v1141 = vsel %vm69, 1, 0
    %v1142 = vsel %vm70, 1, 0
    %vm1143 = vcmp.eq.s32.totalorder %v1141, 1
    %vm1144 = vcmp.eq.s32.totalorder %v1142, 1
    %v1145 = vsel %vm1143, 0.0, %v1140
    %v1146 = vsel %vm1144, 0.0, %v1139
    %v1147 = vrot.slane %v1134, 1
    %v1148 = vrot.slane %v1135, 1
    %vm1149 = vcmp.lt.s32.totalorder %v43, 7
    %v1150 = vsel %vm1149, %v1147, %v1148
    %v1151 = vsel %vm1149, %v1148, %v1147
    %v1152 = vsel %vm71, 1, 0
    %v1153 = vsel %vm72, 1, 0
    %vm1154 = vcmp.eq.s32.totalorder %v1152, 1
    %vm1155 = vcmp.eq.s32.totalorder %v1153, 1
    %v1156 = vsel %vm1154, 0.0, %v1150
    %v1157 = vsel %vm1155, 0.0, %v1151
    %1160 = vrot.lane.b32.xlu0 %v1134, 32
    %v1161 = vpop.permute.xlu0 %1160
    %1162 = vrot.lane.b32.xlu0 %v1135, 32
    %v1163 = vpop.permute.xlu0 %1162
    %1168 = vrot.lane.b32.xlu0 %v1156, 64
    %v1169 = vpop.permute.xlu0 %1168
    %1170 = vrot.lane.b32.xlu0 %v1157, 64
    %v1171 = vpop.permute.xlu0 %1170
    %v1174 = vsel %vm81, %v1145, %v1161
    %v1175 = vsel %vm81, %v1146, %v1163
    %v1176 = vsel %vm504, %v1174, %v1169
    %v1177 = vsel %vm504, %v1175, %v1171
    %v1178 = vld [vmem:[%s2 + $0x60] sm:$0xff]
    %v1179 = vld [vmem:[%s2 + $0x68] sm:$0xff]
    %v1180 = vld [vmem:[%s2 + $0x70] sm:$0xff]
    %v1181 = vld [vmem:[%s2 + $0x78] sm:$0xff]
    %v1182 = vld [vmem:[%s2 + $0x80] sm:$0xff]
    %v1183 = vld [vmem:[%s2 + $0x88] sm:$0xff]
    %v1184 = vld [vmem:[%s2 + $0x90] sm:$0xff]
    %v1185 = vld [vmem:[%s2 + $0x98] sm:$0xff]
    %v1186 = vld [vmem:[%s2 + $0xa0] sm:$0xff]
    %v1187 = vld [vmem:[%s2 + $0xa8] sm:$0xff]
    %v1188 = vld [vmem:[%s2 + $0xb0] sm:$0xff]
    %v1189 = vld [vmem:[%s2 + $0xb8] sm:$0xff]
    %v1190 = vld [vmem:[%s3 + $0x14] sm:$0x1]
    %v1191 = vlaneseq
    %v1192 = vshrl.u32 %v1191, 7
    %v1193 = vsub.s32 0, %v1192
    %v1194 = vrot.slane %v1190, %v1193
    %vm1195 = vcmask 785408
    %v1197 = vsel %vm1195, %v1176, 0
    %v1200 = vsel %vm1195, %v1177, 0
    %1202 = vmatprep.subr.mxu0 0.0
    %1203 = vmatpush1.msra.mxu0 0.0
    %1204 = vmatprep.subr.mxu0 0.0
    %1205 = vmatpush1.msra.mxu0 0.0
    %1206 = vmatprep.subr.mxu0 0.0
    %1207 = vmatpush1.msra.mxu0 0.0
    %1208 = vmatprep.subr.mxu0 0.0
    %1209 = vmatpush1.msra.mxu0 0.0
    %1210 = vmatprep.subr.mxu0 0.0
    %1211 = vmatpush1.msra.mxu0 %v1189
    %1212 = vmatprep.subr.mxu0 0.0
    %1213 = vmatpush1.msra.mxu0 %v1188
    %1214 = vmatprep.subr.mxu0 0.0
    %1215 = vmatpush1.msra.mxu0 %v1187
    %1216 = vmatprep.subr.mxu0 0.0
    %1217 = vmatpush1.msra.mxu0 %v1186
    %1218 = vmatprep.subr.mxu0 0.0
    %1219 = vmatpush1.msra.mxu0 %v1185
    %1220 = vmatprep.subr.mxu0 0.0
    %1221 = vmatpush1.msra.mxu0 %v1184
    %1222 = vmatprep.subr.mxu0 0.0
    %1223 = vmatpush1.msra.mxu0 %v1183
    %1224 = vmatprep.subr.mxu0 0.0
    %1225 = vmatpush1.msra.mxu0 %v1182
    %1226 = vmatprep.subr.mxu0 0.0
    %1227 = vmatpush1.msra.mxu0 %v1181
    %1228 = vmatprep.subr.mxu0 0.0
    %1229 = vmatpush1.msra.mxu0 %v1180
    %1230 = vmatprep.subr.mxu0 0.0
    %1231 = vmatpush1.msra.mxu0 %v1179
    %1232 = vmatprep.subr.mxu0 0.0
    %1233 = vmatpush1.msra.mxu0 %v1178
    %1234 = vmatprep.subr.mxu0 0.0
    %1235 = vmatpush2.msra.mxu0 0.0
    %1236 = vmatprep.subr.mxu0 0.0
    %1237 = vmatpush2.msra.mxu0 0.0
    %1238 = vmatprep.subr.mxu0 0.0
    %1239 = vmatpush2.msra.mxu0 0.0
    %1240 = vmatprep.subr.mxu0 0.0
    %1241 = vmatpush2.msra.mxu0 0.0
    %1242 = vmatprep.subr.mxu0 0.0
    %1243 = vmatpush2.msra.mxu0 0.0
    %1244 = vmatprep.subr.mxu0 0.0
    %1245 = vmatpush2.msra.mxu0 0.0
    %1246 = vmatprep.subr.mxu0 0.0
    %1247 = vmatpush2.msra.mxu0 0.0
    %1248 = vmatprep.subr.mxu0 0.0
    %1249 = vmatpush2.msra.mxu0 0.0
    %1250 = vmatprep.subr.mxu0 0.0
    %1251 = vmatpush2.msra.mxu0 0.0
    %1252 = vmatprep.subr.mxu0 0.0
    %1253 = vmatpush2.msra.mxu0 0.0
    %1254 = vmatprep.subr.mxu0 0.0
    %1255 = vmatpush2.msra.mxu0 0.0
    %1256 = vmatprep.subr.mxu0 0.0
    %1257 = vmatpush2.msra.mxu0 0.0
    %1258 = vmatprep.subr.mxu0 0.0
    %1259 = vmatpush2.msra.mxu0 0.0
    %1260 = vmatprep.subr.mxu0 0.0
    %1261 = vmatpush2.msra.mxu0 0.0
    %1262 = vmatprep.subr.mxu0 0.0
    %1263 = vmatpush2.msra.mxu0 0.0
    %1264 = vmatprep.subr.mxu0 0.0
    %1265 = vmatpush2.msra.mxu0 0.0
    %1266 = vmatprep.mubr.f32.mxu0 0.0
    %1267 = vmatmul.mubr.f32.gmra.mxu0 %v1197
    %v1268 = vpop.f32.mrf.mxu0
    %v1269 = vadd.f32 %v1194, %v1268
    %v1270 = vpop.f32.mrf.mxu0
    %1271 = vmatprep.mubr.f32.mxu0 0.0
    %1272 = vmatmul.mubr.f32.gmra.mxu0 %v1200
    %v1273 = vpop.f32.mrf.mxu0
    %v1274 = vadd.f32 %v1194, %v1273
    %v1275 = vpop.f32.mrf.mxu0
    %1276 = vdwg.mxu0
    %v1277 = vmax.f32 %v1269, 0.0
    %v1278 = vmax.f32 %v1274, 0.0
    %v1279 = vrot.slane %v1277, 7
    %v1280 = vrot.slane %v1278, 7
    %v1281 = vsel %vm1138, %v1279, %v1280
    %v1282 = vsel %vm1138, %v1280, %v1279
    %v1283 = vsel %vm1143, 0.0, %v1282
    %v1284 = vsel %vm1144, 0.0, %v1281
    %v1285 = vrot.slane %v1277, 1
    %v1286 = vrot.slane %v1278, 1
    %v1287 = vsel %vm1149, %v1285, %v1286
    %v1288 = vsel %vm1149, %v1286, %v1285
    %v1289 = vsel %vm1154, 0.0, %v1287
    %v1290 = vsel %vm1155, 0.0, %v1288
    %1293 = vrot.lane.b32.xlu0 %v1277, 64
    %v1294 = vpop.permute.xlu0 %1293
    %1295 = vrot.lane.b32.xlu0 %v1278, 64
    %v1296 = vpop.permute.xlu0 %1295
    %v1299 = vsel %vm504, %v1283, %v1294
    %v1300 = vsel %vm504, %v1284, %v1296
    %v1301 = vld [vmem:[%s2 + $0xc0] sm:$0xff]
    %v1302 = vld [vmem:[%s2 + $0xc8] sm:$0xff]
    %v1303 = vld [vmem:[%s2 + $0xd0] sm:$0xff]
    %v1304 = vld [vmem:[%s2 + $0xd8] sm:$0xff]
    %v1305 = vld [vmem:[%s2 + $0xe0] sm:$0xff]
    %v1306 = vld [vmem:[%s2 + $0xe8] sm:$0xff]
    %v1307 = vld [vmem:[%s2 + $0xf0] sm:$0xff]
    %v1308 = vld [vmem:[%s2 + $0xf8] sm:$0xff]
    %v1309 = vld [vmem:[%s2 + $0x100] sm:$0xff]
    %v1310 = vld [vmem:[%s2 + $0x108] sm:$0xff]
    %v1311 = vld [vmem:[%s2 + $0x110] sm:$0xff]
    %v1312 = vld [vmem:[%s2 + $0x118] sm:$0xff]
    %v1313 = vld [vmem:[%s2 + $0x120] sm:$0xff]
    %v1314 = vld [vmem:[%s2 + $0x128] sm:$0xff]
    %v1315 = vld [vmem:[%s2 + $0x130] sm:$0xff]
    %v1316 = vld [vmem:[%s2 + $0x138] sm:$0xff]
    %v1317 = vld [vmem:[%s2 + $0x140] sm:$0xff]
    %v1318 = vld [vmem:[%s2 + $0x148] sm:$0xff]
    %v1319 = vld [vmem:[%s2 + $0x150] sm:$0xff]
    %v1320 = vld [vmem:[%s2 + $0x158] sm:$0xff]
    %v1321 = vld [vmem:[%s2 + $0x160] sm:$0xff]
    %v1322 = vld [vmem:[%s2 + $0x168] sm:$0xff]
    %v1323 = vld [vmem:[%s2 + $0x170] sm:$0xff]
    %v1324 = vld [vmem:[%s2 + $0x178] sm:$0xff]
    %v1326 = vsel %vm504, %v1289, 0
    %v1329 = vsel %vm504, %v1290, 0
    %1331 = vmatprep.subr.mxu0 0.0
    %1332 = vmatpush1.msra.mxu0 %v1316
    %1333 = vmatprep.subr.mxu0 0.0
    %1334 = vmatpush1.msra.mxu0 %v1315
    %1335 = vmatprep.subr.mxu0 0.0
    %1336 = vmatpush1.msra.mxu0 %v1314
    %1337 = vmatprep.subr.mxu0 0.0
    %1338 = vmatpush1.msra.mxu0 %v1313
    %1339 = vmatprep.subr.mxu0 0.0
    %1340 = vmatpush1.msra.mxu0 %v1312
    %1341 = vmatprep.subr.mxu0 0.0
    %1342 = vmatpush1.msra.mxu0 %v1311
    %1343 = vmatprep.subr.mxu0 0.0
    %1344 = vmatpush1.msra.mxu0 %v1310
    %1345 = vmatprep.subr.mxu0 0.0
    %1346 = vmatpush1.msra.mxu0 %v1309
    %1347 = vmatprep.subr.mxu0 0.0
    %1348 = vmatpush1.msra.mxu0 %v1308
    %1349 = vmatprep.subr.mxu0 0.0
    %1350 = vmatpush1.msra.mxu0 %v1307
    %1351 = vmatprep.subr.mxu0 0.0
    %1352 = vmatpush1.msra.mxu0 %v1306
    %1353 = vmatprep.subr.mxu0 0.0
    %1354 = vmatpush1.msra.mxu0 %v1305
    %1355 = vmatprep.subr.mxu0 0.0
    %1356 = vmatpush1.msra.mxu0 %v1304
    %1357 = vmatprep.subr.mxu0 0.0
    %1358 = vmatpush1.msra.mxu0 %v1303
    %1359 = vmatprep.subr.mxu0 0.0
    %1360 = vmatpush1.msra.mxu0 %v1302
    %1361 = vmatprep.subr.mxu0 0.0
    %1362 = vmatpush1.msra.mxu0 %v1301
    %1363 = vmatprep.subr.mxu0 0.0
    %1364 = vmatpush2.msra.mxu0 0.0
    %1365 = vmatprep.subr.mxu0 0.0
    %1366 = vmatpush2.msra.mxu0 0.0
    %1367 = vmatprep.subr.mxu0 0.0
    %1368 = vmatpush2.msra.mxu0 0.0
    %1369 = vmatprep.subr.mxu0 0.0
    %1370 = vmatpush2.msra.mxu0 0.0
    %1371 = vmatprep.subr.mxu0 0.0
    %1372 = vmatpush2.msra.mxu0 0.0
    %1373 = vmatprep.subr.mxu0 0.0
    %1374 = vmatpush2.msra.mxu0 0.0
    %1375 = vmatprep.subr.mxu0 0.0
    %1376 = vmatpush2.msra.mxu0 0.0
    %1377 = vmatprep.subr.mxu0 0.0
    %1378 = vmatpush2.msra.mxu0 0.0
    %1379 = vmatprep.subr.mxu0 0.0
    %1380 = vmatpush2.msra.mxu0 %v1324
    %1381 = vmatprep.subr.mxu0 0.0
    %1382 = vmatpush2.msra.mxu0 %v1323
    %1383 = vmatprep.subr.mxu0 0.0
    %1384 = vmatpush2.msra.mxu0 %v1322
    %1385 = vmatprep.subr.mxu0 0.0
    %1386 = vmatpush2.msra.mxu0 %v1321
    %1387 = vmatprep.subr.mxu0 0.0
    %1388 = vmatpush2.msra.mxu0 %v1320
    %1389 = vmatprep.subr.mxu0 0.0
    %1390 = vmatpush2.msra.mxu0 %v1319
    %1391 = vmatprep.subr.mxu0 0.0
    %1392 = vmatpush2.msra.mxu0 %v1318
    %1393 = vmatprep.subr.mxu0 0.0
    %1394 = vmatpush2.msra.mxu0 %v1317
    %1395 = vmatprep.mubr.f32.mxu0 %v1326
    %1396 = vmatmul.mubr.f32.gmra.mxu0 %v1299
    %v1397 = vpop.f32.mrf.mxu0
    %v1398 = vadd.f32 0.0, %v1397
    %v1399 = vpop.f32.mrf.mxu0
    %1400 = vmatprep.mubr.f32.mxu0 %v1329
    %1401 = vmatmul.mubr.f32.gmra.mxu0 %v1300
    %v1402 = vpop.f32.mrf.mxu0
    %v1403 = vadd.f32 0.0, %v1402
    %v1404 = vpop.f32.mrf.mxu0
    %1405 = vdwg.mxu0
    %v1406 = vadd.f32 %v1080, %v1398
    %v1407 = vadd.f32 %v1081, %v1403
    %v1408 = vld [vmem:[%s3 + $0x15] sm:$0x1]
    %v1409 = vlaneseq
    %v1410 = vshrl.u32 %v1409, 7
    %v1411 = vsub.s32 0, %v1410
    %v1412 = vrot.slane %v1408, %v1411
    %v1413 = vadd.f32 %v1406, %v1412
    %v1414 = vadd.f32 %v1407, %v1412
    %v1415 = vld [vmem:[%s3 + $0x16] sm:$0x1]
    %v1416 = vld [vmem:[%s3 + $0x17] sm:$0x1]
    %v1417 = vsel %vm81, %v1413, 0.0
    %1418 = vadd.xlane.f32.xlu0 %v1417
    %v1419 = vpop.xlane.xlu0 %1418
    %v1420 = vsel %vm81, %v1414, 0.0
    %1421 = vadd.xlane.f32.xlu0 %v1420
    %v1422 = vpop.xlane.xlu0 %1421
    %v1423 = vmul.f32 %v1419, %v171
    %v1424 = vmul.f32 %v1422, %v171
    %v1425 = vsub.f32 %v1413, %v1423
    %v1426 = vsub.f32 %v1414, %v1424
    %v1427 = vmul.f32 %v1425, %v1425
    %v1428 = vmul.f32 %v1426, %v1426
    %v1429 = vsel %vm81, %v1427, 0.0
    %1430 = vadd.xlane.f32.xlu0 %v1429
    %v1431 = vpop.xlane.xlu0 %1430
    %v1432 = vsel %vm81, %v1428, 0.0
    %1433 = vadd.xlane.f32.xlu0 %v1432
    %v1434 = vpop.xlane.xlu0 %1433
    %v1435 = vmul.f32 %v1431, %v184
    %v1436 = vmul.f32 %v1434, %v184
    %v1437 = vrsqrt.pop %v1435
    %v1438 = vmul.f32 %v1435, %v1437
    %vm1439 = vcmp.eq.f32.partialorder %v1435, inf
    %v1440 = vsel %vm1439, %v1435, %v1438
    %vm1441 = vcmp.eq.f32.partialorder %v1435, 0.0
    %v1442 = vand.u32 %v1435, 2147483648
    %v1443 = vsel %vm1441, %v1442, %v1440
    %v1444 = vrsqrt.pop %v1436
    %v1445 = vmul.f32 %v1436, %v1444
    %vm1446 = vcmp.eq.f32.partialorder %v1436, inf
    %v1447 = vsel %vm1446, %v1436, %v1445
    %vm1448 = vcmp.eq.f32.partialorder %v1436, 0.0
    %v1449 = vand.u32 %v1436, 2147483648
    %v1450 = vsel %vm1448, %v1449, %v1447
    %v1451 = vadd.f32 %v1443, 1e-06
    %v1452 = vadd.f32 %v1450, 1e-06
    %v1453 = vrcp.pop %v1451
    %v1454 = vrcp.pop %v1452
    %v1455 = vlaneseq
    %v1456 = vshrl.u32 %v1455, 7
    %v1457 = vsub.s32 0, %v1456
    %v1458 = vrot.slane %v1415, %v1457
    %v1459 = vmul.f32 %v1458, %v1425
    %v1460 = vmul.f32 %v1458, %v1426
    %v1461 = vmul.f32 %v1459, %v1453
    %v1462 = vmul.f32 %v1460, %v1454
    %v1463 = vlaneseq
    %v1464 = vshrl.u32 %v1463, 7
    %v1465 = vsub.s32 0, %v1464
    %v1466 = vrot.slane %v1416, %v1465
    %v1467 = vadd.f32 %v1461, %v1466
    %v1468 = vadd.f32 %v1462, %v1466
    %v1469 = vld [vmem:[%s2 + $0x180] sm:$0xff]
    %v1470 = vld [vmem:[%s2 + $0x188] sm:$0xff]
    %v1471 = vld [vmem:[%s2 + $0x190] sm:$0xff]
    %v1472 = vld [vmem:[%s2 + $0x198] sm:$0xff]
    %v1474 = vsel %vm81, %v1467, 0
    %v1477 = vsel %vm81, %v1468, 0
    %1479 = vmatprep.subr.mxu0 0.0
    %1480 = vmatpush1.msra.mxu0 0.0
    %1481 = vmatprep.subr.mxu0 0.0
    %1482 = vmatpush1.msra.mxu0 0.0
    %1483 = vmatprep.subr.mxu0 0.0
    %1484 = vmatpush1.msra.mxu0 0.0
    %1485 = vmatprep.subr.mxu0 0.0
    %1486 = vmatpush1.msra.mxu0 0.0
    %1487 = vmatprep.subr.mxu0 0.0
    %1488 = vmatpush1.msra.mxu0 0.0
    %1489 = vmatprep.subr.mxu0 0.0
    %1490 = vmatpush1.msra.mxu0 0.0
    %1491 = vmatprep.subr.mxu0 0.0
    %1492 = vmatpush1.msra.mxu0 0.0
    %1493 = vmatprep.subr.mxu0 0.0
    %1494 = vmatpush1.msra.mxu0 0.0
    %1495 = vmatprep.subr.mxu0 0.0
    %1496 = vmatpush1.msra.mxu0 0.0
    %1497 = vmatprep.subr.mxu0 0.0
    %1498 = vmatpush1.msra.mxu0 0.0
    %1499 = vmatprep.subr.mxu0 0.0
    %1500 = vmatpush1.msra.mxu0 0.0
    %1501 = vmatprep.subr.mxu0 0.0
    %1502 = vmatpush1.msra.mxu0 0.0
    %1503 = vmatprep.subr.mxu0 0.0
    %1504 = vmatpush1.msra.mxu0 %v1472
    %1505 = vmatprep.subr.mxu0 0.0
    %1506 = vmatpush1.msra.mxu0 %v1471
    %1507 = vmatprep.subr.mxu0 0.0
    %1508 = vmatpush1.msra.mxu0 %v1470
    %1509 = vmatprep.subr.mxu0 0.0
    %1510 = vmatpush1.msra.mxu0 %v1469
    %1511 = vmatprep.subr.mxu0 0.0
    %1512 = vmatpush2.msra.mxu0 0.0
    %1513 = vmatprep.subr.mxu0 0.0
    %1514 = vmatpush2.msra.mxu0 0.0
    %1515 = vmatprep.subr.mxu0 0.0
    %1516 = vmatpush2.msra.mxu0 0.0
    %1517 = vmatprep.subr.mxu0 0.0
    %1518 = vmatpush2.msra.mxu0 0.0
    %1519 = vmatprep.subr.mxu0 0.0
    %1520 = vmatpush2.msra.mxu0 0.0
    %1521 = vmatprep.subr.mxu0 0.0
    %1522 = vmatpush2.msra.mxu0 0.0
    %1523 = vmatprep.subr.mxu0 0.0
    %1524 = vmatpush2.msra.mxu0 0.0
    %1525 = vmatprep.subr.mxu0 0.0
    %1526 = vmatpush2.msra.mxu0 0.0
    %1527 = vmatprep.subr.mxu0 0.0
    %1528 = vmatpush2.msra.mxu0 0.0
    %1529 = vmatprep.subr.mxu0 0.0
    %1530 = vmatpush2.msra.mxu0 0.0
    %1531 = vmatprep.subr.mxu0 0.0
    %1532 = vmatpush2.msra.mxu0 0.0
    %1533 = vmatprep.subr.mxu0 0.0
    %1534 = vmatpush2.msra.mxu0 0.0
    %1535 = vmatprep.subr.mxu0 0.0
    %1536 = vmatpush2.msra.mxu0 0.0
    %1537 = vmatprep.subr.mxu0 0.0
    %1538 = vmatpush2.msra.mxu0 0.0
    %1539 = vmatprep.subr.mxu0 0.0
    %1540 = vmatpush2.msra.mxu0 0.0
    %1541 = vmatprep.subr.mxu0 0.0
    %1542 = vmatpush2.msra.mxu0 0.0
    %1543 = vmatprep.mubr.f32.mxu0 0.0
    %1544 = vmatmul.mubr.f32.gmra.mxu0 %v1474
    %v1545 = vpop.f32.mrf.mxu0
    %v1546 = vadd.f32 0.0, %v1545
    %v1547 = vpop.f32.mrf.mxu0
    %1548 = vmatprep.mubr.f32.mxu0 0.0
    %1549 = vmatmul.mubr.f32.gmra.mxu0 %v1477
    %v1550 = vpop.f32.mrf.mxu0
    %v1551 = vadd.f32 0.0, %v1550
    %v1552 = vpop.f32.mrf.mxu0
    %1553 = vdwg.mxu0
    %v1554 = vmul.f32 %v1546, 0.35355338
    %v1555 = vmul.f32 %v1551, 0.35355338
    %1558 = vrot.lane.b32.xlu0 %v1554, 120
    %v1559 = vpop.permute.xlu0 %1558
    %1560 = vrot.lane.b32.xlu0 %v1555, 120
    %v1561 = vpop.permute.xlu0 %1560
    %1562 = vrot.lane.b32.xlu0 %v1554, 112
    %v1563 = vpop.permute.xlu0 %1562
    %1564 = vrot.lane.b32.xlu0 %v1555, 112
    %v1565 = vpop.permute.xlu0 %1564
    %1566 = vrot.lane.b32.xlu0 %v1554, 104
    %v1567 = vpop.permute.xlu0 %1566
    %1568 = vrot.lane.b32.xlu0 %v1555, 104
    %v1569 = vpop.permute.xlu0 %1568
    %1572 = vrot.lane.b32.xlu0 %v1546, 120
    %v1573 = vpop.permute.xlu0 %1572
    %1574 = vrot.lane.b32.xlu0 %v1551, 120
    %v1575 = vpop.permute.xlu0 %1574
    %1576 = vrot.lane.b32.xlu0 %v1546, 112
    %v1577 = vpop.permute.xlu0 %1576
    %1578 = vrot.lane.b32.xlu0 %v1551, 112
    %v1579 = vpop.permute.xlu0 %1578
    %1580 = vrot.lane.b32.xlu0 %v1546, 104
    %v1581 = vpop.permute.xlu0 %1580
    %1582 = vrot.lane.b32.xlu0 %v1551, 104
    %v1583 = vpop.permute.xlu0 %1582
    %1584 = vrot.lane.b32.xlu0 %v1546, 96
    %v1585 = vpop.permute.xlu0 %1584
    %1586 = vrot.lane.b32.xlu0 %v1551, 96
    %v1587 = vpop.permute.xlu0 %1586
    %1588 = vrot.lane.b32.xlu0 %v1573, 96
    %v1589 = vpop.permute.xlu0 %1588
    %1590 = vrot.lane.b32.xlu0 %v1575, 96
    %v1591 = vpop.permute.xlu0 %1590
    %1592 = vrot.lane.b32.xlu0 %v1577, 96
    %v1593 = vpop.permute.xlu0 %1592
    %1594 = vrot.lane.b32.xlu0 %v1579, 96
    %v1595 = vpop.permute.xlu0 %1594
    %1596 = vrot.lane.b32.xlu0 %v1581, 96
    %v1597 = vpop.permute.xlu0 %1596
    %1598 = vrot.lane.b32.xlu0 %v1583, 96
    %v1599 = vpop.permute.xlu0 %1598
    %v1600 = vsel %vm350, %v1554, 0
    %v1602 = vsel %vm350, %v1555, 0
    %v1604 = vsel %vm350, %v1559, 0
    %v1606 = vsel %vm350, %v1561, 0
    %v1608 = vsel %vm350, %v1563, 0
    %v1610 = vsel %vm350, %v1565, 0
    %v1612 = vsel %vm350, %v1567, 0
    %v1614 = vsel %vm350, %v1569, 0
    %v1616 = vsel %vm350, %v1585, 0
    %v1618 = vsel %vm350, %v1587, 0
    %v1620 = vsel %vm350, %v1589, 0
    %v1622 = vsel %vm350, %v1591, 0
    %v1624 = vsel %vm350, %v1593, 0
    %v1626 = vsel %vm350, %v1595, 0
    %v1628 = vsel %vm350, %v1597, 0
    %v1630 = vsel %vm350, %v1599, 0
    %1632 = vmatprep.subr.mxu0 0.0
    %1633 = vmatpush1.xpose.msra.mxu0 0.0
    %1634 = vmatprep.subr.mxu0 0.0
    %1635 = vmatpush1.xpose.msra.mxu0 0.0
    %1636 = vmatprep.subr.mxu0 0.0
    %1637 = vmatpush1.xpose.msra.mxu0 0.0
    %1638 = vmatprep.subr.mxu0 0.0
    %1639 = vmatpush1.xpose.msra.mxu0 0.0
    %1640 = vmatprep.subr.mxu0 0.0
    %1641 = vmatpush1.xpose.msra.mxu0 0.0
    %1642 = vmatprep.subr.mxu0 0.0
    %1643 = vmatpush1.xpose.msra.mxu0 0.0
    %1644 = vmatprep.subr.mxu0 0.0
    %1645 = vmatpush1.xpose.msra.mxu0 0.0
    %1646 = vmatprep.subr.mxu0 0.0
    %1647 = vmatpush1.xpose.msra.mxu0 0.0
    %1648 = vmatprep.subr.mxu0 0.0
    %1649 = vmatpush1.xpose.msra.mxu0 %v1630
    %1650 = vmatprep.subr.mxu0 0.0
    %1651 = vmatpush1.xpose.msra.mxu0 %v1628
    %1652 = vmatprep.subr.mxu0 0.0
    %1653 = vmatpush1.xpose.msra.mxu0 %v1626
    %1654 = vmatprep.subr.mxu0 0.0
    %1655 = vmatpush1.xpose.msra.mxu0 %v1624
    %1656 = vmatprep.subr.mxu0 0.0
    %1657 = vmatpush1.xpose.msra.mxu0 %v1622
    %1658 = vmatprep.subr.mxu0 0.0
    %1659 = vmatpush1.xpose.msra.mxu0 %v1620
    %1660 = vmatprep.subr.mxu0 0.0
    %1661 = vmatpush1.xpose.msra.mxu0 %v1618
    %1662 = vmatprep.subr.mxu0 0.0
    %1663 = vmatpush1.xpose.msra.mxu0 %v1616
    %1664 = vmatprep.subr.mxu0 0.0
    %1665 = vmatpush2.xpose.msra.mxu0 0.0
    %1666 = vmatprep.subr.mxu0 0.0
    %1667 = vmatpush2.xpose.msra.mxu0 0.0
    %1668 = vmatprep.subr.mxu0 0.0
    %1669 = vmatpush2.xpose.msra.mxu0 0.0
    %1670 = vmatprep.subr.mxu0 0.0
    %1671 = vmatpush2.xpose.msra.mxu0 0.0
    %1672 = vmatprep.subr.mxu0 0.0
    %1673 = vmatpush2.xpose.msra.mxu0 0.0
    %1674 = vmatprep.subr.mxu0 0.0
    %1675 = vmatpush2.xpose.msra.mxu0 0.0
    %1676 = vmatprep.subr.mxu0 0.0
    %1677 = vmatpush2.xpose.msra.mxu0 0.0
    %1678 = vmatprep.subr.mxu0 0.0
    %1679 = vmatpush2.xpose.msra.mxu0 0.0
    %1680 = vmatprep.subr.mxu0 0.0
    %1681 = vmatpush2.xpose.msra.mxu0 0.0
    %1682 = vmatprep.subr.mxu0 0.0
    %1683 = vmatpush2.xpose.msra.mxu0 0.0
    %1684 = vmatprep.subr.mxu0 0.0
    %1685 = vmatpush2.xpose.msra.mxu0 0.0
    %1686 = vmatprep.subr.mxu0 0.0
    %1687 = vmatpush2.xpose.msra.mxu0 0.0
    %1688 = vmatprep.subr.mxu0 0.0
    %1689 = vmatpush2.xpose.msra.mxu0 0.0
    %1690 = vmatprep.subr.mxu0 0.0
    %1691 = vmatpush2.xpose.msra.mxu0 0.0
    %1692 = vmatprep.subr.mxu0 0.0
    %1693 = vmatpush2.xpose.msra.mxu0 0.0
    %1694 = vmatprep.subr.mxu0 0.0
    %1695 = vmatpush2.xpose.msra.mxu0 0.0
    %1696 = vmatprep.mubr.f32.mxu0 0.0
    %1697 = vmatmul.mubr.f32.gmra.mxu0 %v1600
    %v1698 = vpop.f32.mrf.mxu0
    %v1699 = vadd.f32 0.0, %v1698
    %v1700 = vpop.f32.mrf.mxu0
    %1701 = vmatprep.mubr.f32.mxu0 0.0
    %1702 = vmatmul.mubr.f32.gmra.mxu0 %v1602
    %v1703 = vpop.f32.mrf.mxu0
    %v1704 = vadd.f32 0.0, %v1703
    %v1705 = vpop.f32.mrf.mxu0
    %1706 = vmatprep.mubr.f32.mxu0 0.0
    %1707 = vmatmul.mubr.f32.gmra.mxu0 %v1604
    %v1708 = vpop.f32.mrf.mxu0
    %v1709 = vadd.f32 0.0, %v1708
    %v1710 = vpop.f32.mrf.mxu0
    %1711 = vmatprep.mubr.f32.mxu0 0.0
    %1712 = vmatmul.mubr.f32.gmra.mxu0 %v1606
    %v1713 = vpop.f32.mrf.mxu0
    %v1714 = vadd.f32 0.0, %v1713
    %v1715 = vpop.f32.mrf.mxu0
    %1716 = vmatprep.mubr.f32.mxu0 0.0
    %1717 = vmatmul.mubr.f32.gmra.mxu0 %v1608
    %v1718 = vpop.f32.mrf.mxu0
    %v1719 = vadd.f32 0.0, %v1718
    %v1720 = vpop.f32.mrf.mxu0
    %1721 = vmatprep.mubr.f32.mxu0 0.0
    %1722 = vmatmul.mubr.f32.gmra.mxu0 %v1610
    %v1723 = vpop.f32.mrf.mxu0
    %v1724 = vadd.f32 0.0, %v1723
    %v1725 = vpop.f32.mrf.mxu0
    %1726 = vmatprep.mubr.f32.mxu0 0.0
    %1727 = vmatmul.mubr.f32.gmra.mxu0 %v1612
    %v1728 = vpop.f32.mrf.mxu0
    %v1729 = vadd.f32 0.0, %v1728
    %v1730 = vpop.f32.mrf.mxu0
    %1731 = vmatprep.mubr.f32.mxu0 0.0
    %1732 = vmatmul.mubr.f32.gmra.mxu0 %v1614
    %v1733 = vpop.f32.mrf.mxu0
    %v1734 = vadd.f32 0.0, %v1733
    %v1735 = vpop.f32.mrf.mxu0
    %1736 = vdwg.mxu0
    %v1737 = vsel %vm34, -1e+18, %v1699
    %v1738 = vsel %vm35, -1e+18, %v1704
    %v1739 = vsel %vm36, -1e+18, %v1709
    %v1740 = vsel %vm37, -1e+18, %v1714
    %v1741 = vsel %vm38, -1e+18, %v1719
    %v1742 = vsel %vm39, -1e+18, %v1724
    %v1743 = vsel %vm40, -1e+18, %v1729
    %v1744 = vsel %vm41, -1e+18, %v1734
    %v1745 = vsel %vm26, -2e+18, %v1737
    %v1746 = vsel %vm27, -2e+18, %v1738
    %v1747 = vsel %vm28, -2e+18, %v1739
    %v1748 = vsel %vm29, -2e+18, %v1740
    %v1749 = vsel %vm30, -2e+18, %v1741
    %v1750 = vsel %vm31, -2e+18, %v1742
    %v1751 = vsel %vm32, -2e+18, %v1743
    %v1752 = vsel %vm33, -2e+18, %v1744
    %v1753 = vsel %vm504, %v1745, -inf
    %1754 = vmax.xlane.f32.xlu0 %v1753
    %v1755 = vpop.xlane.xlu0 %1754
    %v1756 = vsel %vm504, %v1746, -inf
    %1757 = vmax.xlane.f32.xlu0 %v1756
    %v1758 = vpop.xlane.xlu0 %1757
    %v1759 = vsel %vm504, %v1747, -inf
    %1760 = vmax.xlane.f32.xlu0 %v1759
    %v1761 = vpop.xlane.xlu0 %1760
    %v1762 = vsel %vm504, %v1748, -inf
    %1763 = vmax.xlane.f32.xlu0 %v1762
    %v1764 = vpop.xlane.xlu0 %1763
    %v1765 = vsel %vm504, %v1749, -inf
    %1766 = vmax.xlane.f32.xlu0 %v1765
    %v1767 = vpop.xlane.xlu0 %1766
    %v1768 = vsel %vm504, %v1750, -inf
    %1769 = vmax.xlane.f32.xlu0 %v1768
    %v1770 = vpop.xlane.xlu0 %1769
    %v1771 = vsel %vm504, %v1751, -inf
    %1772 = vmax.xlane.f32.xlu0 %v1771
    %v1773 = vpop.xlane.xlu0 %1772
    %v1774 = vsel %vm504, %v1752, -inf
    %1775 = vmax.xlane.f32.xlu0 %v1774
    %v1776 = vpop.xlane.xlu0 %1775
    %v1777 = vsub.f32 %v1745, %v1755
    %v1778 = vsub.f32 %v1746, %v1758
    %v1779 = vsub.f32 %v1747, %v1761
    %v1780 = vsub.f32 %v1748, %v1764
    %v1781 = vsub.f32 %v1749, %v1767
    %v1782 = vsub.f32 %v1750, %v1770
    %v1783 = vsub.f32 %v1751, %v1773
    %v1784 = vsub.f32 %v1752, %v1776
    %v1785 = vmul.f32 %v1777, 1.442695
    %v1786 = vpow.pop %v1785
    %v1787 = vmul.f32 %v1778, 1.442695
    %v1788 = vpow.pop %v1787
    %v1789 = vmul.f32 %v1779, 1.442695
    %v1790 = vpow.pop %v1789
    %v1791 = vmul.f32 %v1780, 1.442695
    %v1792 = vpow.pop %v1791
    %v1793 = vmul.f32 %v1781, 1.442695
    %v1794 = vpow.pop %v1793
    %v1795 = vmul.f32 %v1782, 1.442695
    %v1796 = vpow.pop %v1795
    %v1797 = vmul.f32 %v1783, 1.442695
    %v1798 = vpow.pop %v1797
    %v1799 = vmul.f32 %v1784, 1.442695
    %v1800 = vpow.pop %v1799
    %v1801 = vsel %vm504, %v1786, 0.0
    %1802 = vadd.xlane.f32.xlu0 %v1801
    %v1803 = vpop.xlane.xlu0 %1802
    %v1804 = vsel %vm504, %v1788, 0.0
    %1805 = vadd.xlane.f32.xlu0 %v1804
    %v1806 = vpop.xlane.xlu0 %1805
    %v1807 = vsel %vm504, %v1790, 0.0
    %1808 = vadd.xlane.f32.xlu0 %v1807
    %v1809 = vpop.xlane.xlu0 %1808
    %v1810 = vsel %vm504, %v1792, 0.0
    %1811 = vadd.xlane.f32.xlu0 %v1810
    %v1812 = vpop.xlane.xlu0 %1811
    %v1813 = vsel %vm504, %v1794, 0.0
    %1814 = vadd.xlane.f32.xlu0 %v1813
    %v1815 = vpop.xlane.xlu0 %1814
    %v1816 = vsel %vm504, %v1796, 0.0
    %1817 = vadd.xlane.f32.xlu0 %v1816
    %v1818 = vpop.xlane.xlu0 %1817
    %v1819 = vsel %vm504, %v1798, 0.0
    %1820 = vadd.xlane.f32.xlu0 %v1819
    %v1821 = vpop.xlane.xlu0 %1820
    %v1822 = vsel %vm504, %v1800, 0.0
    %1823 = vadd.xlane.f32.xlu0 %v1822
    %v1824 = vpop.xlane.xlu0 %1823
    %v1825 = vrcp.pop %v1803
    %v1826 = vrcp.pop %v1806
    %v1827 = vrcp.pop %v1809
    %v1828 = vrcp.pop %v1812
    %v1829 = vrcp.pop %v1815
    %v1830 = vrcp.pop %v1818
    %v1831 = vrcp.pop %v1821
    %v1832 = vrcp.pop %v1824
    %v1833 = vmul.f32 %v1786, %v1825
    %v1834 = vmul.f32 %v1788, %v1826
    %v1835 = vmul.f32 %v1790, %v1827
    %v1836 = vmul.f32 %v1792, %v1828
    %v1837 = vmul.f32 %v1794, %v1829
    %v1838 = vmul.f32 %v1796, %v1830
    %v1839 = vmul.f32 %v1798, %v1831
    %v1840 = vmul.f32 %v1800, %v1832
    %1841 = vrot.lane.b32.xlu0 %v1546, 64
    %v1842 = vpop.permute.xlu0 %1841
    %1843 = vrot.lane.b32.xlu0 %v1551, 64
    %v1844 = vpop.permute.xlu0 %1843
    %1845 = vrot.lane.b32.xlu0 %v1573, 64
    %v1846 = vpop.permute.xlu0 %1845
    %1847 = vrot.lane.b32.xlu0 %v1575, 64
    %v1848 = vpop.permute.xlu0 %1847
    %1849 = vrot.lane.b32.xlu0 %v1577, 64
    %v1850 = vpop.permute.xlu0 %1849
    %1851 = vrot.lane.b32.xlu0 %v1579, 64
    %v1852 = vpop.permute.xlu0 %1851
    %1853 = vrot.lane.b32.xlu0 %v1581, 64
    %v1854 = vpop.permute.xlu0 %1853
    %1855 = vrot.lane.b32.xlu0 %v1583, 64
    %v1856 = vpop.permute.xlu0 %1855
    %v1866 = vsel %vm504, %v1833, 0
    %v1869 = vsel %vm504, %v1834, 0
    %v1872 = vsel %vm504, %v1835, 0
    %v1875 = vsel %vm504, %v1836, 0
    %v1878 = vsel %vm504, %v1837, 0
    %v1881 = vsel %vm504, %v1838, 0
    %v1884 = vsel %vm504, %v1839, 0
    %v1887 = vsel %vm504, %v1840, 0
    %1889 = vmatprep.subr.mxu0 0.0
    %1890 = vmatpush1.msra.mxu0 0.0
    %1891 = vmatprep.subr.mxu0 0.0
    %1892 = vmatpush1.msra.mxu0 0.0
    %1893 = vmatprep.subr.mxu0 0.0
    %1894 = vmatpush1.msra.mxu0 0.0
    %1895 = vmatprep.subr.mxu0 0.0
    %1896 = vmatpush1.msra.mxu0 0.0
    %1897 = vmatprep.subr.mxu0 0.0
    %1898 = vmatpush1.msra.mxu0 0.0
    %1899 = vmatprep.subr.mxu0 0.0
    %1900 = vmatpush1.msra.mxu0 0.0
    %1901 = vmatprep.subr.mxu0 0.0
    %1902 = vmatpush1.msra.mxu0 0.0
    %1903 = vmatprep.subr.mxu0 0.0
    %1904 = vmatpush1.msra.mxu0 0.0
    %1905 = vmatprep.subr.mxu0 0.0
    %1906 = vmatpush1.msra.mxu0 %v1856
    %1907 = vmatprep.subr.mxu0 0.0
    %1908 = vmatpush1.msra.mxu0 %v1854
    %1909 = vmatprep.subr.mxu0 0.0
    %1910 = vmatpush1.msra.mxu0 %v1852
    %1911 = vmatprep.subr.mxu0 0.0
    %1912 = vmatpush1.msra.mxu0 %v1850
    %1913 = vmatprep.subr.mxu0 0.0
    %1914 = vmatpush1.msra.mxu0 %v1848
    %1915 = vmatprep.subr.mxu0 0.0
    %1916 = vmatpush1.msra.mxu0 %v1846
    %1917 = vmatprep.subr.mxu0 0.0
    %1918 = vmatpush1.msra.mxu0 %v1844
    %1919 = vmatprep.subr.mxu0 0.0
    %1920 = vmatpush1.msra.mxu0 %v1842
    %1921 = vmatprep.subr.mxu0 0.0
    %1922 = vmatpush2.msra.mxu0 0.0
    %1923 = vmatprep.subr.mxu0 0.0
    %1924 = vmatpush2.msra.mxu0 0.0
    %1925 = vmatprep.subr.mxu0 0.0
    %1926 = vmatpush2.msra.mxu0 0.0
    %1927 = vmatprep.subr.mxu0 0.0
    %1928 = vmatpush2.msra.mxu0 0.0
    %1929 = vmatprep.subr.mxu0 0.0
    %1930 = vmatpush2.msra.mxu0 0.0
    %1931 = vmatprep.subr.mxu0 0.0
    %1932 = vmatpush2.msra.mxu0 0.0
    %1933 = vmatprep.subr.mxu0 0.0
    %1934 = vmatpush2.msra.mxu0 0.0
    %1935 = vmatprep.subr.mxu0 0.0
    %1936 = vmatpush2.msra.mxu0 0.0
    %1937 = vmatprep.subr.mxu0 0.0
    %1938 = vmatpush2.msra.mxu0 0.0
    %1939 = vmatprep.subr.mxu0 0.0
    %1940 = vmatpush2.msra.mxu0 0.0
    %1941 = vmatprep.subr.mxu0 0.0
    %1942 = vmatpush2.msra.mxu0 0.0
    %1943 = vmatprep.subr.mxu0 0.0
    %1944 = vmatpush2.msra.mxu0 0.0
    %1945 = vmatprep.subr.mxu0 0.0
    %1946 = vmatpush2.msra.mxu0 0.0
    %1947 = vmatprep.subr.mxu0 0.0
    %1948 = vmatpush2.msra.mxu0 0.0
    %1949 = vmatprep.subr.mxu0 0.0
    %1950 = vmatpush2.msra.mxu0 0.0
    %1951 = vmatprep.subr.mxu0 0.0
    %1952 = vmatpush2.msra.mxu0 0.0
    %1953 = vmatprep.mubr.f32.mxu0 0.0
    %1954 = vmatmul.mubr.f32.gmra.mxu0 %v1866
    %v1955 = vpop.f32.mrf.mxu0
    %v1956 = vadd.f32 0.0, %v1955
    %v1957 = vpop.f32.mrf.mxu0
    %1958 = vmatprep.mubr.f32.mxu0 0.0
    %1959 = vmatmul.mubr.f32.gmra.mxu0 %v1869
    %v1960 = vpop.f32.mrf.mxu0
    %v1961 = vadd.f32 0.0, %v1960
    %v1962 = vpop.f32.mrf.mxu0
    %1963 = vmatprep.mubr.f32.mxu0 0.0
    %1964 = vmatmul.mubr.f32.gmra.mxu0 %v1872
    %v1965 = vpop.f32.mrf.mxu0
    %v1966 = vadd.f32 0.0, %v1965
    %v1967 = vpop.f32.mrf.mxu0
    %1968 = vmatprep.mubr.f32.mxu0 0.0
    %1969 = vmatmul.mubr.f32.gmra.mxu0 %v1875
    %v1970 = vpop.f32.mrf.mxu0
    %v1971 = vadd.f32 0.0, %v1970
    %v1972 = vpop.f32.mrf.mxu0
    %1973 = vmatprep.mubr.f32.mxu0 0.0
    %1974 = vmatmul.mubr.f32.gmra.mxu0 %v1878
    %v1975 = vpop.f32.mrf.mxu0
    %v1976 = vadd.f32 0.0, %v1975
    %v1977 = vpop.f32.mrf.mxu0
    %1978 = vmatprep.mubr.f32.mxu0 0.0
    %1979 = vmatmul.mubr.f32.gmra.mxu0 %v1881
    %v1980 = vpop.f32.mrf.mxu0
    %v1981 = vadd.f32 0.0, %v1980
    %v1982 = vpop.f32.mrf.mxu0
    %1983 = vmatprep.mubr.f32.mxu0 0.0
    %1984 = vmatmul.mubr.f32.gmra.mxu0 %v1884
    %v1985 = vpop.f32.mrf.mxu0
    %v1986 = vadd.f32 0.0, %v1985
    %v1987 = vpop.f32.mrf.mxu0
    %1988 = vmatprep.mubr.f32.mxu0 0.0
    %1989 = vmatmul.mubr.f32.gmra.mxu0 %v1887
    %v1990 = vpop.f32.mrf.mxu0
    %v1991 = vadd.f32 0.0, %v1990
    %v1992 = vpop.f32.mrf.mxu0
    %1993 = vdwg.mxu0
    %v1994 = vld [vmem:[%s2 + $0x1a0] sm:$0xff]
    %v1996 = vsel %vm350, %v1956, 0
    %v1999 = vsel %vm350, %v1961, 0
    %2001 = vmatprep.subr.mxu0 0.0
    %2002 = vmatpush1.msra.mxu0 0.0
    %2003 = vmatprep.subr.mxu0 0.0
    %2004 = vmatpush1.msra.mxu0 0.0
    %2005 = vmatprep.subr.mxu0 0.0
    %2006 = vmatpush1.msra.mxu0 0.0
    %2007 = vmatprep.subr.mxu0 0.0
    %2008 = vmatpush1.msra.mxu0 0.0
    %2009 = vmatprep.subr.mxu0 0.0
    %2010 = vmatpush1.msra.mxu0 0.0
    %2011 = vmatprep.subr.mxu0 0.0
    %2012 = vmatpush1.msra.mxu0 0.0
    %2013 = vmatprep.subr.mxu0 0.0
    %2014 = vmatpush1.msra.mxu0 0.0
    %2015 = vmatprep.subr.mxu0 0.0
    %2016 = vmatpush1.msra.mxu0 0.0
    %2017 = vmatprep.subr.mxu0 0.0
    %2018 = vmatpush1.msra.mxu0 0.0
    %2019 = vmatprep.subr.mxu0 0.0
    %2020 = vmatpush1.msra.mxu0 0.0
    %2021 = vmatprep.subr.mxu0 0.0
    %2022 = vmatpush1.msra.mxu0 0.0
    %2023 = vmatprep.subr.mxu0 0.0
    %2024 = vmatpush1.msra.mxu0 0.0
    %2025 = vmatprep.subr.mxu0 0.0
    %2026 = vmatpush1.msra.mxu0 0.0
    %2027 = vmatprep.subr.mxu0 0.0
    %2028 = vmatpush1.msra.mxu0 0.0
    %2029 = vmatprep.subr.mxu0 0.0
    %2030 = vmatpush1.msra.mxu0 0.0
    %2031 = vmatprep.subr.mxu0 0.0
    %2032 = vmatpush1.msra.mxu0 %v1994
    %2033 = vmatprep.subr.mxu0 0.0
    %2034 = vmatpush2.msra.mxu0 0.0
    %2035 = vmatprep.subr.mxu0 0.0
    %2036 = vmatpush2.msra.mxu0 0.0
    %2037 = vmatprep.subr.mxu0 0.0
    %2038 = vmatpush2.msra.mxu0 0.0
    %2039 = vmatprep.subr.mxu0 0.0
    %2040 = vmatpush2.msra.mxu0 0.0
    %2041 = vmatprep.subr.mxu0 0.0
    %2042 = vmatpush2.msra.mxu0 0.0
    %2043 = vmatprep.subr.mxu0 0.0
    %2044 = vmatpush2.msra.mxu0 0.0
    %2045 = vmatprep.subr.mxu0 0.0
    %2046 = vmatpush2.msra.mxu0 0.0
    %2047 = vmatprep.subr.mxu0 0.0
    %2048 = vmatpush2.msra.mxu0 0.0
    %2049 = vmatprep.subr.mxu0 0.0
    %2050 = vmatpush2.msra.mxu0 0.0
    %2051 = vmatprep.subr.mxu0 0.0
    %2052 = vmatpush2.msra.mxu0 0.0
    %2053 = vmatprep.subr.mxu0 0.0
    %2054 = vmatpush2.msra.mxu0 0.0
    %2055 = vmatprep.subr.mxu0 0.0
    %2056 = vmatpush2.msra.mxu0 0.0
    %2057 = vmatprep.subr.mxu0 0.0
    %2058 = vmatpush2.msra.mxu0 0.0
    %2059 = vmatprep.subr.mxu0 0.0
    %2060 = vmatpush2.msra.mxu0 0.0
    %2061 = vmatprep.subr.mxu0 0.0
    %2062 = vmatpush2.msra.mxu0 0.0
    %2063 = vmatprep.subr.mxu0 0.0
    %2064 = vmatpush2.msra.mxu0 0.0
    %2065 = vmatprep.mubr.f32.mxu0 0.0
    %2066 = vmatmul.mubr.f32.gmra.mxu0 %v1996
    %v2067 = vpop.f32.mrf.mxu0
    %v2068 = vadd.f32 0.0, %v2067
    %v2069 = vpop.f32.mrf.mxu0
    %2070 = vmatprep.mubr.f32.mxu0 0.0
    %2071 = vmatmul.mubr.f32.gmra.mxu0 %v1999
    %v2072 = vpop.f32.mrf.mxu0
    %v2073 = vadd.f32 0.0, %v2072
    %v2074 = vpop.f32.mrf.mxu0
    %2075 = vdwg.mxu0
    %v2076 = vadd.f32 %v1413, %v2068
    %v2077 = vadd.f32 %v1414, %v2073
    %v2078 = vld [vmem:[%s2 + $0x1a8] sm:$0xff]
    %v2080 = vsel %vm350, %v1966, 0
    %v2083 = vsel %vm350, %v1971, 0
    %2085 = vmatprep.subr.mxu0 0.0
    %2086 = vmatpush1.msra.mxu0 0.0
    %2087 = vmatprep.subr.mxu0 0.0
    %2088 = vmatpush1.msra.mxu0 0.0
    %2089 = vmatprep.subr.mxu0 0.0
    %2090 = vmatpush1.msra.mxu0 0.0
    %2091 = vmatprep.subr.mxu0 0.0
    %2092 = vmatpush1.msra.mxu0 0.0
    %2093 = vmatprep.subr.mxu0 0.0
    %2094 = vmatpush1.msra.mxu0 0.0
    %2095 = vmatprep.subr.mxu0 0.0
    %2096 = vmatpush1.msra.mxu0 0.0
    %2097 = vmatprep.subr.mxu0 0.0
    %2098 = vmatpush1.msra.mxu0 0.0
    %2099 = vmatprep.subr.mxu0 0.0
    %2100 = vmatpush1.msra.mxu0 0.0
    %2101 = vmatprep.subr.mxu0 0.0
    %2102 = vmatpush1.msra.mxu0 0.0
    %2103 = vmatprep.subr.mxu0 0.0
    %2104 = vmatpush1.msra.mxu0 0.0
    %2105 = vmatprep.subr.mxu0 0.0
    %2106 = vmatpush1.msra.mxu0 0.0
    %2107 = vmatprep.subr.mxu0 0.0
    %2108 = vmatpush1.msra.mxu0 0.0
    %2109 = vmatprep.subr.mxu0 0.0
    %2110 = vmatpush1.msra.mxu0 0.0
    %2111 = vmatprep.subr.mxu0 0.0
    %2112 = vmatpush1.msra.mxu0 0.0
    %2113 = vmatprep.subr.mxu0 0.0
    %2114 = vmatpush1.msra.mxu0 0.0
    %2115 = vmatprep.subr.mxu0 0.0
    %2116 = vmatpush1.msra.mxu0 %v2078
    %2117 = vmatprep.subr.mxu0 0.0
    %2118 = vmatpush2.msra.mxu0 0.0
    %2119 = vmatprep.subr.mxu0 0.0
    %2120 = vmatpush2.msra.mxu0 0.0
    %2121 = vmatprep.subr.mxu0 0.0
    %2122 = vmatpush2.msra.mxu0 0.0
    %2123 = vmatprep.subr.mxu0 0.0
    %2124 = vmatpush2.msra.mxu0 0.0
    %2125 = vmatprep.subr.mxu0 0.0
    %2126 = vmatpush2.msra.mxu0 0.0
    %2127 = vmatprep.subr.mxu0 0.0
    %2128 = vmatpush2.msra.mxu0 0.0
    %2129 = vmatprep.subr.mxu0 0.0
    %2130 = vmatpush2.msra.mxu0 0.0
    %2131 = vmatprep.subr.mxu0 0.0
    %2132 = vmatpush2.msra.mxu0 0.0
    %2133 = vmatprep.subr.mxu0 0.0
    %2134 = vmatpush2.msra.mxu0 0.0
    %2135 = vmatprep.subr.mxu0 0.0
    %2136 = vmatpush2.msra.mxu0 0.0
    %2137 = vmatprep.subr.mxu0 0.0
    %2138 = vmatpush2.msra.mxu0 0.0
    %2139 = vmatprep.subr.mxu0 0.0
    %2140 = vmatpush2.msra.mxu0 0.0
    %2141 = vmatprep.subr.mxu0 0.0
    %2142 = vmatpush2.msra.mxu0 0.0
    %2143 = vmatprep.subr.mxu0 0.0
    %2144 = vmatpush2.msra.mxu0 0.0
    %2145 = vmatprep.subr.mxu0 0.0
    %2146 = vmatpush2.msra.mxu0 0.0
    %2147 = vmatprep.subr.mxu0 0.0
    %2148 = vmatpush2.msra.mxu0 0.0
    %2149 = vmatprep.mubr.f32.mxu0 0.0
    %2150 = vmatmul.mubr.f32.gmra.mxu0 %v2080
    %v2151 = vpop.f32.mrf.mxu0
    %v2152 = vadd.f32 0.0, %v2151
    %v2153 = vpop.f32.mrf.mxu0
    %2154 = vmatprep.mubr.f32.mxu0 0.0
    %2155 = vmatmul.mubr.f32.gmra.mxu0 %v2083
    %v2156 = vpop.f32.mrf.mxu0
    %v2157 = vadd.f32 0.0, %v2156
    %v2158 = vpop.f32.mrf.mxu0
    %2159 = vdwg.mxu0
    %v2160 = vadd.f32 %v2076, %v2152
    %v2161 = vadd.f32 %v2077, %v2157
    %v2162 = vld [vmem:[%s2 + $0x1b0] sm:$0xff]
    %v2164 = vsel %vm350, %v1976, 0
    %v2167 = vsel %vm350, %v1981, 0
    %2169 = vmatprep.subr.mxu0 0.0
    %2170 = vmatpush1.msra.mxu0 0.0
    %2171 = vmatprep.subr.mxu0 0.0
    %2172 = vmatpush1.msra.mxu0 0.0
    %2173 = vmatprep.subr.mxu0 0.0
    %2174 = vmatpush1.msra.mxu0 0.0
    %2175 = vmatprep.subr.mxu0 0.0
    %2176 = vmatpush1.msra.mxu0 0.0
    %2177 = vmatprep.subr.mxu0 0.0
    %2178 = vmatpush1.msra.mxu0 0.0
    %2179 = vmatprep.subr.mxu0 0.0
    %2180 = vmatpush1.msra.mxu0 0.0
    %2181 = vmatprep.subr.mxu0 0.0
    %2182 = vmatpush1.msra.mxu0 0.0
    %2183 = vmatprep.subr.mxu0 0.0
    %2184 = vmatpush1.msra.mxu0 0.0
    %2185 = vmatprep.subr.mxu0 0.0
    %2186 = vmatpush1.msra.mxu0 0.0
    %2187 = vmatprep.subr.mxu0 0.0
    %2188 = vmatpush1.msra.mxu0 0.0
    %2189 = vmatprep.subr.mxu0 0.0
    %2190 = vmatpush1.msra.mxu0 0.0
    %2191 = vmatprep.subr.mxu0 0.0
    %2192 = vmatpush1.msra.mxu0 0.0
    %2193 = vmatprep.subr.mxu0 0.0
    %2194 = vmatpush1.msra.mxu0 0.0
    %2195 = vmatprep.subr.mxu0 0.0
    %2196 = vmatpush1.msra.mxu0 0.0
    %2197 = vmatprep.subr.mxu0 0.0
    %2198 = vmatpush1.msra.mxu0 0.0
    %2199 = vmatprep.subr.mxu0 0.0
    %2200 = vmatpush1.msra.mxu0 %v2162
    %2201 = vmatprep.subr.mxu0 0.0
    %2202 = vmatpush2.msra.mxu0 0.0
    %2203 = vmatprep.subr.mxu0 0.0
    %2204 = vmatpush2.msra.mxu0 0.0
    %2205 = vmatprep.subr.mxu0 0.0
    %2206 = vmatpush2.msra.mxu0 0.0
    %2207 = vmatprep.subr.mxu0 0.0
    %2208 = vmatpush2.msra.mxu0 0.0
    %2209 = vmatprep.subr.mxu0 0.0
    %2210 = vmatpush2.msra.mxu0 0.0
    %2211 = vmatprep.subr.mxu0 0.0
    %2212 = vmatpush2.msra.mxu0 0.0
    %2213 = vmatprep.subr.mxu0 0.0
    %2214 = vmatpush2.msra.mxu0 0.0
    %2215 = vmatprep.subr.mxu0 0.0
    %2216 = vmatpush2.msra.mxu0 0.0
    %2217 = vmatprep.subr.mxu0 0.0
    %2218 = vmatpush2.msra.mxu0 0.0
    %2219 = vmatprep.subr.mxu0 0.0
    %2220 = vmatpush2.msra.mxu0 0.0
    %2221 = vmatprep.subr.mxu0 0.0
    %2222 = vmatpush2.msra.mxu0 0.0
    %2223 = vmatprep.subr.mxu0 0.0
    %2224 = vmatpush2.msra.mxu0 0.0
    %2225 = vmatprep.subr.mxu0 0.0
    %2226 = vmatpush2.msra.mxu0 0.0
    %2227 = vmatprep.subr.mxu0 0.0
    %2228 = vmatpush2.msra.mxu0 0.0
    %2229 = vmatprep.subr.mxu0 0.0
    %2230 = vmatpush2.msra.mxu0 0.0
    %2231 = vmatprep.subr.mxu0 0.0
    %2232 = vmatpush2.msra.mxu0 0.0
    %2233 = vmatprep.mubr.f32.mxu0 0.0
    %2234 = vmatmul.mubr.f32.gmra.mxu0 %v2164
    %v2235 = vpop.f32.mrf.mxu0
    %v2236 = vadd.f32 0.0, %v2235
    %v2237 = vpop.f32.mrf.mxu0
    %2238 = vmatprep.mubr.f32.mxu0 0.0
    %2239 = vmatmul.mubr.f32.gmra.mxu0 %v2167
    %v2240 = vpop.f32.mrf.mxu0
    %v2241 = vadd.f32 0.0, %v2240
    %v2242 = vpop.f32.mrf.mxu0
    %2243 = vdwg.mxu0
    %v2244 = vadd.f32 %v2160, %v2236
    %v2245 = vadd.f32 %v2161, %v2241
    %v2246 = vld [vmem:[%s2 + $0x1b8] sm:$0xff]
    %v2248 = vsel %vm350, %v1986, 0
    %v2251 = vsel %vm350, %v1991, 0
    %2253 = vmatprep.subr.mxu0 0.0
    %2254 = vmatpush1.msra.mxu0 0.0
    %2255 = vmatprep.subr.mxu0 0.0
    %2256 = vmatpush1.msra.mxu0 0.0
    %2257 = vmatprep.subr.mxu0 0.0
    %2258 = vmatpush1.msra.mxu0 0.0
    %2259 = vmatprep.subr.mxu0 0.0
    %2260 = vmatpush1.msra.mxu0 0.0
    %2261 = vmatprep.subr.mxu0 0.0
    %2262 = vmatpush1.msra.mxu0 0.0
    %2263 = vmatprep.subr.mxu0 0.0
    %2264 = vmatpush1.msra.mxu0 0.0
    %2265 = vmatprep.subr.mxu0 0.0
    %2266 = vmatpush1.msra.mxu0 0.0
    %2267 = vmatprep.subr.mxu0 0.0
    %2268 = vmatpush1.msra.mxu0 0.0
    %2269 = vmatprep.subr.mxu0 0.0
    %2270 = vmatpush1.msra.mxu0 0.0
    %2271 = vmatprep.subr.mxu0 0.0
    %2272 = vmatpush1.msra.mxu0 0.0
    %2273 = vmatprep.subr.mxu0 0.0
    %2274 = vmatpush1.msra.mxu0 0.0
    %2275 = vmatprep.subr.mxu0 0.0
    %2276 = vmatpush1.msra.mxu0 0.0
    %2277 = vmatprep.subr.mxu0 0.0
    %2278 = vmatpush1.msra.mxu0 0.0
    %2279 = vmatprep.subr.mxu0 0.0
    %2280 = vmatpush1.msra.mxu0 0.0
    %2281 = vmatprep.subr.mxu0 0.0
    %2282 = vmatpush1.msra.mxu0 0.0
    %2283 = vmatprep.subr.mxu0 0.0
    %2284 = vmatpush1.msra.mxu0 %v2246
    %2285 = vmatprep.subr.mxu0 0.0
    %2286 = vmatpush2.msra.mxu0 0.0
    %2287 = vmatprep.subr.mxu0 0.0
    %2288 = vmatpush2.msra.mxu0 0.0
    %2289 = vmatprep.subr.mxu0 0.0
    %2290 = vmatpush2.msra.mxu0 0.0
    %2291 = vmatprep.subr.mxu0 0.0
    %2292 = vmatpush2.msra.mxu0 0.0
    %2293 = vmatprep.subr.mxu0 0.0
    %2294 = vmatpush2.msra.mxu0 0.0
    %2295 = vmatprep.subr.mxu0 0.0
    %2296 = vmatpush2.msra.mxu0 0.0
    %2297 = vmatprep.subr.mxu0 0.0
    %2298 = vmatpush2.msra.mxu0 0.0
    %2299 = vmatprep.subr.mxu0 0.0
    %2300 = vmatpush2.msra.mxu0 0.0
    %2301 = vmatprep.subr.mxu0 0.0
    %2302 = vmatpush2.msra.mxu0 0.0
    %2303 = vmatprep.subr.mxu0 0.0
    %2304 = vmatpush2.msra.mxu0 0.0
    %2305 = vmatprep.subr.mxu0 0.0
    %2306 = vmatpush2.msra.mxu0 0.0
    %2307 = vmatprep.subr.mxu0 0.0
    %2308 = vmatpush2.msra.mxu0 0.0
    %2309 = vmatprep.subr.mxu0 0.0
    %2310 = vmatpush2.msra.mxu0 0.0
    %2311 = vmatprep.subr.mxu0 0.0
    %2312 = vmatpush2.msra.mxu0 0.0
    %2313 = vmatprep.subr.mxu0 0.0
    %2314 = vmatpush2.msra.mxu0 0.0
    %2315 = vmatprep.subr.mxu0 0.0
    %2316 = vmatpush2.msra.mxu0 0.0
    %2317 = vmatprep.mubr.f32.mxu0 0.0
    %2318 = vmatmul.mubr.f32.gmra.mxu0 %v2248
    %v2319 = vpop.f32.mrf.mxu0
    %v2320 = vadd.f32 0.0, %v2319
    %v2321 = vpop.f32.mrf.mxu0
    %2322 = vmatprep.mubr.f32.mxu0 0.0
    %2323 = vmatmul.mubr.f32.gmra.mxu0 %v2251
    %v2324 = vpop.f32.mrf.mxu0
    %v2325 = vadd.f32 0.0, %v2324
    %v2326 = vpop.f32.mrf.mxu0
    %2327 = vdwg.mxu0
    %v2328 = vadd.f32 %v2244, %v2320
    %v2329 = vadd.f32 %v2245, %v2325
    %v2330 = vld [vmem:[%s3 + $0x18] sm:$0x1]
    %v2331 = vld [vmem:[%s3 + $0x19] sm:$0x1]
    %v2332 = vsel %vm81, %v2328, 0.0
    %2333 = vadd.xlane.f32.xlu0 %v2332
    %v2334 = vpop.xlane.xlu0 %2333
    %v2335 = vsel %vm81, %v2329, 0.0
    %2336 = vadd.xlane.f32.xlu0 %v2335
    %v2337 = vpop.xlane.xlu0 %2336
    %v2338 = vmul.f32 %v2334, %v171
    %v2339 = vmul.f32 %v2337, %v171
    %v2340 = vsub.f32 %v2328, %v2338
    %v2341 = vsub.f32 %v2329, %v2339
    %v2342 = vmul.f32 %v2340, %v2340
    %v2343 = vmul.f32 %v2341, %v2341
    %v2344 = vsel %vm81, %v2342, 0.0
    %2345 = vadd.xlane.f32.xlu0 %v2344
    %v2346 = vpop.xlane.xlu0 %2345
    %v2347 = vsel %vm81, %v2343, 0.0
    %2348 = vadd.xlane.f32.xlu0 %v2347
    %v2349 = vpop.xlane.xlu0 %2348
    %v2350 = vmul.f32 %v2346, %v184
    %v2351 = vmul.f32 %v2349, %v184
    %v2352 = vrsqrt.pop %v2350
    %v2353 = vmul.f32 %v2350, %v2352
    %vm2354 = vcmp.eq.f32.partialorder %v2350, inf
    %v2355 = vsel %vm2354, %v2350, %v2353
    %vm2356 = vcmp.eq.f32.partialorder %v2350, 0.0
    %v2357 = vand.u32 %v2350, 2147483648
    %v2358 = vsel %vm2356, %v2357, %v2355
    %v2359 = vrsqrt.pop %v2351
    %v2360 = vmul.f32 %v2351, %v2359
    %vm2361 = vcmp.eq.f32.partialorder %v2351, inf
    %v2362 = vsel %vm2361, %v2351, %v2360
    %vm2363 = vcmp.eq.f32.partialorder %v2351, 0.0
    %v2364 = vand.u32 %v2351, 2147483648
    %v2365 = vsel %vm2363, %v2364, %v2362
    %v2366 = vadd.f32 %v2358, 1e-06
    %v2367 = vadd.f32 %v2365, 1e-06
    %v2368 = vrcp.pop %v2366
    %v2369 = vrcp.pop %v2367
    %v2370 = vlaneseq
    %v2371 = vshrl.u32 %v2370, 7
    %v2372 = vsub.s32 0, %v2371
    %v2373 = vrot.slane %v2330, %v2372
    %v2374 = vmul.f32 %v2373, %v2340
    %v2375 = vmul.f32 %v2373, %v2341
    %v2376 = vmul.f32 %v2374, %v2368
    %v2377 = vmul.f32 %v2375, %v2369
    %v2378 = vlaneseq
    %v2379 = vshrl.u32 %v2378, 7
    %v2380 = vsub.s32 0, %v2379
    %v2381 = vrot.slane %v2331, %v2380
    %v2382 = vadd.f32 %v2376, %v2381
    %v2383 = vadd.f32 %v2377, %v2381
    %v2384 = vrot.slane %v2382, 7
    %v2385 = vrot.slane %v2383, 7
    %v2386 = vsel %vm1138, %v2384, %v2385
    %v2387 = vsel %vm1138, %v2385, %v2384
    %v2388 = vsel %vm1143, 0.0, %v2387
    %v2389 = vsel %vm1144, 0.0, %v2386
    %v2390 = vrot.slane %v2382, 1
    %v2391 = vrot.slane %v2383, 1
    %v2392 = vsel %vm1149, %v2390, %v2391
    %v2393 = vsel %vm1149, %v2391, %v2390
    %v2394 = vsel %vm1154, 0.0, %v2392
    %v2395 = vsel %vm1155, 0.0, %v2393
    %2398 = vrot.lane.b32.xlu0 %v2382, 32
    %v2399 = vpop.permute.xlu0 %2398
    %2400 = vrot.lane.b32.xlu0 %v2383, 32
    %v2401 = vpop.permute.xlu0 %2400
    %2406 = vrot.lane.b32.xlu0 %v2394, 64
    %v2407 = vpop.permute.xlu0 %2406
    %2408 = vrot.lane.b32.xlu0 %v2395, 64
    %v2409 = vpop.permute.xlu0 %2408
    %v2412 = vsel %vm81, %v2388, %v2399
    %v2413 = vsel %vm81, %v2389, %v2401
    %v2414 = vsel %vm504, %v2412, %v2407
    %v2415 = vsel %vm504, %v2413, %v2409
    %v2416 = vld [vmem:[%s2 + $0x1c0] sm:$0xff]
    %v2417 = vld [vmem:[%s2 + $0x1c8] sm:$0xff]
    %v2418 = vld [vmem:[%s2 + $0x1d0] sm:$0xff]
    %v2419 = vld [vmem:[%s2 + $0x1d8] sm:$0xff]
    %v2420 = vld [vmem:[%s2 + $0x1e0] sm:$0xff]
    %v2421 = vld [vmem:[%s2 + $0x1e8] sm:$0xff]
    %v2422 = vld [vmem:[%s2 + $0x1f0] sm:$0xff]
    %v2423 = vld [vmem:[%s2 + $0x1f8] sm:$0xff]
    %v2424 = vld [vmem:[%s2 + $0x200] sm:$0xff]
    %v2425 = vld [vmem:[%s2 + $0x208] sm:$0xff]
    %v2426 = vld [vmem:[%s2 + $0x210] sm:$0xff]
    %v2427 = vld [vmem:[%s2 + $0x218] sm:$0xff]
    %v2428 = vld [vmem:[%s3 + $0x1a] sm:$0x1]
    %v2429 = vlaneseq
    %v2430 = vshrl.u32 %v2429, 7
    %v2431 = vsub.s32 0, %v2430
    %v2432 = vrot.slane %v2428, %v2431
    %v2434 = vsel %vm1195, %v2414, 0
    %v2437 = vsel %vm1195, %v2415, 0
    %2439 = vmatprep.subr.mxu0 0.0
    %2440 = vmatpush1.msra.mxu0 0.0
    %2441 = vmatprep.subr.mxu0 0.0
    %2442 = vmatpush1.msra.mxu0 0.0
    %2443 = vmatprep.subr.mxu0 0.0
    %2444 = vmatpush1.msra.mxu0 0.0
    %2445 = vmatprep.subr.mxu0 0.0
    %2446 = vmatpush1.msra.mxu0 0.0
    %2447 = vmatprep.subr.mxu0 0.0
    %2448 = vmatpush1.msra.mxu0 %v2427
    %2449 = vmatprep.subr.mxu0 0.0
    %2450 = vmatpush1.msra.mxu0 %v2426
    %2451 = vmatprep.subr.mxu0 0.0
    %2452 = vmatpush1.msra.mxu0 %v2425
    %2453 = vmatprep.subr.mxu0 0.0
    %2454 = vmatpush1.msra.mxu0 %v2424
    %2455 = vmatprep.subr.mxu0 0.0
    %2456 = vmatpush1.msra.mxu0 %v2423
    %2457 = vmatprep.subr.mxu0 0.0
    %2458 = vmatpush1.msra.mxu0 %v2422
    %2459 = vmatprep.subr.mxu0 0.0
    %2460 = vmatpush1.msra.mxu0 %v2421
    %2461 = vmatprep.subr.mxu0 0.0
    %2462 = vmatpush1.msra.mxu0 %v2420
    %2463 = vmatprep.subr.mxu0 0.0
    %2464 = vmatpush1.msra.mxu0 %v2419
    %2465 = vmatprep.subr.mxu0 0.0
    %2466 = vmatpush1.msra.mxu0 %v2418
    %2467 = vmatprep.subr.mxu0 0.0
    %2468 = vmatpush1.msra.mxu0 %v2417
    %2469 = vmatprep.subr.mxu0 0.0
    %2470 = vmatpush1.msra.mxu0 %v2416
    %2471 = vmatprep.subr.mxu0 0.0
    %2472 = vmatpush2.msra.mxu0 0.0
    %2473 = vmatprep.subr.mxu0 0.0
    %2474 = vmatpush2.msra.mxu0 0.0
    %2475 = vmatprep.subr.mxu0 0.0
    %2476 = vmatpush2.msra.mxu0 0.0
    %2477 = vmatprep.subr.mxu0 0.0
    %2478 = vmatpush2.msra.mxu0 0.0
    %2479 = vmatprep.subr.mxu0 0.0
    %2480 = vmatpush2.msra.mxu0 0.0
    %2481 = vmatprep.subr.mxu0 0.0
    %2482 = vmatpush2.msra.mxu0 0.0
    %2483 = vmatprep.subr.mxu0 0.0
    %2484 = vmatpush2.msra.mxu0 0.0
    %2485 = vmatprep.subr.mxu0 0.0
    %2486 = vmatpush2.msra.mxu0 0.0
    %2487 = vmatprep.subr.mxu0 0.0
    %2488 = vmatpush2.msra.mxu0 0.0
    %2489 = vmatprep.subr.mxu0 0.0
    %2490 = vmatpush2.msra.mxu0 0.0
    %2491 = vmatprep.subr.mxu0 0.0
    %2492 = vmatpush2.msra.mxu0 0.0
    %2493 = vmatprep.subr.mxu0 0.0
    %2494 = vmatpush2.msra.mxu0 0.0
    %2495 = vmatprep.subr.mxu0 0.0
    %2496 = vmatpush2.msra.mxu0 0.0
    %2497 = vmatprep.subr.mxu0 0.0
    %2498 = vmatpush2.msra.mxu0 0.0
    %2499 = vmatprep.subr.mxu0 0.0
    %2500 = vmatpush2.msra.mxu0 0.0
    %2501 = vmatprep.subr.mxu0 0.0
    %2502 = vmatpush2.msra.mxu0 0.0
    %2503 = vmatprep.mubr.f32.mxu0 0.0
    %2504 = vmatmul.mubr.f32.gmra.mxu0 %v2434
    %v2505 = vpop.f32.mrf.mxu0
    %v2506 = vadd.f32 %v2432, %v2505
    %v2507 = vpop.f32.mrf.mxu0
    %2508 = vmatprep.mubr.f32.mxu0 0.0
    %2509 = vmatmul.mubr.f32.gmra.mxu0 %v2437
    %v2510 = vpop.f32.mrf.mxu0
    %v2511 = vadd.f32 %v2432, %v2510
    %v2512 = vpop.f32.mrf.mxu0
    %2513 = vdwg.mxu0
    %v2514 = vmax.f32 %v2506, 0.0
    %v2515 = vmax.f32 %v2511, 0.0
    %v2516 = vrot.slane %v2514, 7
    %v2517 = vrot.slane %v2515, 7
    %v2518 = vsel %vm1138, %v2516, %v2517
    %v2519 = vsel %vm1138, %v2517, %v2516
    %v2520 = vsel %vm1143, 0.0, %v2519
    %v2521 = vsel %vm1144, 0.0, %v2518
    %v2522 = vrot.slane %v2514, 1
    %v2523 = vrot.slane %v2515, 1
    %v2524 = vsel %vm1149, %v2522, %v2523
    %v2525 = vsel %vm1149, %v2523, %v2522
    %v2526 = vsel %vm1154, 0.0, %v2524
    %v2527 = vsel %vm1155, 0.0, %v2525
    %2530 = vrot.lane.b32.xlu0 %v2514, 64
    %v2531 = vpop.permute.xlu0 %2530
    %2532 = vrot.lane.b32.xlu0 %v2515, 64
    %v2533 = vpop.permute.xlu0 %2532
    %v2536 = vsel %vm504, %v2520, %v2531
    %v2537 = vsel %vm504, %v2521, %v2533
    %v2538 = vld [vmem:[%s2 + $0x220] sm:$0xff]
    %v2539 = vld [vmem:[%s2 + $0x228] sm:$0xff]
    %v2540 = vld [vmem:[%s2 + $0x230] sm:$0xff]
    %v2541 = vld [vmem:[%s2 + $0x238] sm:$0xff]
    %v2542 = vld [vmem:[%s2 + $0x240] sm:$0xff]
    %v2543 = vld [vmem:[%s2 + $0x248] sm:$0xff]
    %v2544 = vld [vmem:[%s2 + $0x250] sm:$0xff]
    %v2545 = vld [vmem:[%s2 + $0x258] sm:$0xff]
    %v2546 = vld [vmem:[%s2 + $0x260] sm:$0xff]
    %v2547 = vld [vmem:[%s2 + $0x268] sm:$0xff]
    %v2548 = vld [vmem:[%s2 + $0x270] sm:$0xff]
    %v2549 = vld [vmem:[%s2 + $0x278] sm:$0xff]
    %v2550 = vld [vmem:[%s2 + $0x280] sm:$0xff]
    %v2551 = vld [vmem:[%s2 + $0x288] sm:$0xff]
    %v2552 = vld [vmem:[%s2 + $0x290] sm:$0xff]
    %v2553 = vld [vmem:[%s2 + $0x298] sm:$0xff]
    %v2554 = vld [vmem:[%s2 + $0x2a0] sm:$0xff]
    %v2555 = vld [vmem:[%s2 + $0x2a8] sm:$0xff]
    %v2556 = vld [vmem:[%s2 + $0x2b0] sm:$0xff]
    %v2557 = vld [vmem:[%s2 + $0x2b8] sm:$0xff]
    %v2558 = vld [vmem:[%s2 + $0x2c0] sm:$0xff]
    %v2559 = vld [vmem:[%s2 + $0x2c8] sm:$0xff]
    %v2560 = vld [vmem:[%s2 + $0x2d0] sm:$0xff]
    %v2561 = vld [vmem:[%s2 + $0x2d8] sm:$0xff]
    %v2563 = vsel %vm504, %v2526, 0
    %v2566 = vsel %vm504, %v2527, 0
    %2568 = vmatprep.subr.mxu0 0.0
    %2569 = vmatpush1.msra.mxu0 %v2553
    %2570 = vmatprep.subr.mxu0 0.0
    %2571 = vmatpush1.msra.mxu0 %v2552
    %2572 = vmatprep.subr.mxu0 0.0
    %2573 = vmatpush1.msra.mxu0 %v2551
    %2574 = vmatprep.subr.mxu0 0.0
    %2575 = vmatpush1.msra.mxu0 %v2550
    %2576 = vmatprep.subr.mxu0 0.0
    %2577 = vmatpush1.msra.mxu0 %v2549
    %2578 = vmatprep.subr.mxu0 0.0
    %2579 = vmatpush1.msra.mxu0 %v2548
    %2580 = vmatprep.subr.mxu0 0.0
    %2581 = vmatpush1.msra.mxu0 %v2547
    %2582 = vmatprep.subr.mxu0 0.0
    %2583 = vmatpush1.msra.mxu0 %v2546
    %2584 = vmatprep.subr.mxu0 0.0
    %2585 = vmatpush1.msra.mxu0 %v2545
    %2586 = vmatprep.subr.mxu0 0.0
    %2587 = vmatpush1.msra.mxu0 %v2544
    %2588 = vmatprep.subr.mxu0 0.0
    %2589 = vmatpush1.msra.mxu0 %v2543
    %2590 = vmatprep.subr.mxu0 0.0
    %2591 = vmatpush1.msra.mxu0 %v2542
    %2592 = vmatprep.subr.mxu0 0.0
    %2593 = vmatpush1.msra.mxu0 %v2541
    %2594 = vmatprep.subr.mxu0 0.0
    %2595 = vmatpush1.msra.mxu0 %v2540
    %2596 = vmatprep.subr.mxu0 0.0
    %2597 = vmatpush1.msra.mxu0 %v2539
    %2598 = vmatprep.subr.mxu0 0.0
    %2599 = vmatpush1.msra.mxu0 %v2538
    %2600 = vmatprep.subr.mxu0 0.0
    %2601 = vmatpush2.msra.mxu0 0.0
    %2602 = vmatprep.subr.mxu0 0.0
    %2603 = vmatpush2.msra.mxu0 0.0
    %2604 = vmatprep.subr.mxu0 0.0
    %2605 = vmatpush2.msra.mxu0 0.0
    %2606 = vmatprep.subr.mxu0 0.0
    %2607 = vmatpush2.msra.mxu0 0.0
    %2608 = vmatprep.subr.mxu0 0.0
    %2609 = vmatpush2.msra.mxu0 0.0
    %2610 = vmatprep.subr.mxu0 0.0
    %2611 = vmatpush2.msra.mxu0 0.0
    %2612 = vmatprep.subr.mxu0 0.0
    %2613 = vmatpush2.msra.mxu0 0.0
    %2614 = vmatprep.subr.mxu0 0.0
    %2615 = vmatpush2.msra.mxu0 0.0
    %2616 = vmatprep.subr.mxu0 0.0
    %2617 = vmatpush2.msra.mxu0 %v2561
    %2618 = vmatprep.subr.mxu0 0.0
    %2619 = vmatpush2.msra.mxu0 %v2560
    %2620 = vmatprep.subr.mxu0 0.0
    %2621 = vmatpush2.msra.mxu0 %v2559
    %2622 = vmatprep.subr.mxu0 0.0
    %2623 = vmatpush2.msra.mxu0 %v2558
    %2624 = vmatprep.subr.mxu0 0.0
    %2625 = vmatpush2.msra.mxu0 %v2557
    %2626 = vmatprep.subr.mxu0 0.0
    %2627 = vmatpush2.msra.mxu0 %v2556
    %2628 = vmatprep.subr.mxu0 0.0
    %2629 = vmatpush2.msra.mxu0 %v2555
    %2630 = vmatprep.subr.mxu0 0.0
    %2631 = vmatpush2.msra.mxu0 %v2554
    %2632 = vmatprep.mubr.f32.mxu0 %v2563
    %2633 = vmatmul.mubr.f32.gmra.mxu0 %v2536
    %v2634 = vpop.f32.mrf.mxu0
    %v2635 = vadd.f32 0.0, %v2634
    %v2636 = vpop.f32.mrf.mxu0
    %2637 = vmatprep.mubr.f32.mxu0 %v2566
    %2638 = vmatmul.mubr.f32.gmra.mxu0 %v2537
    %v2639 = vpop.f32.mrf.mxu0
    %v2640 = vadd.f32 0.0, %v2639
    %v2641 = vpop.f32.mrf.mxu0
    %2642 = vdwg.mxu0
    %v2643 = vadd.f32 %v2328, %v2635
    %v2644 = vadd.f32 %v2329, %v2640
    %v2645 = vld [vmem:[%s3 + $0x1b] sm:$0x1]
    %v2646 = vlaneseq
    %v2647 = vshrl.u32 %v2646, 7
    %v2648 = vsub.s32 0, %v2647
    %v2649 = vrot.slane %v2645, %v2648
    %v2650 = vadd.f32 %v2643, %v2649
    %v2651 = vadd.f32 %v2644, %v2649
    %v2652 = vld [vmem:[%s3 + $0x1c] sm:$0x1]
    %v2653 = vld [vmem:[%s3 + $0x1d] sm:$0x1]
    %v2654 = vsel %vm81, %v2650, 0.0
    %2655 = vadd.xlane.f32.xlu0 %v2654
    %v2656 = vpop.xlane.xlu0 %2655
    %v2657 = vsel %vm81, %v2651, 0.0
    %2658 = vadd.xlane.f32.xlu0 %v2657
    %v2659 = vpop.xlane.xlu0 %2658
    %v2660 = vmul.f32 %v2656, %v171
    %v2661 = vmul.f32 %v2659, %v171
    %v2662 = vsub.f32 %v2650, %v2660
    %v2663 = vsub.f32 %v2651, %v2661
    %v2664 = vmul.f32 %v2662, %v2662
    %v2665 = vmul.f32 %v2663, %v2663
    %v2666 = vsel %vm81, %v2664, 0.0
    %2667 = vadd.xlane.f32.xlu0 %v2666
    %v2668 = vpop.xlane.xlu0 %2667
    %v2669 = vsel %vm81, %v2665, 0.0
    %2670 = vadd.xlane.f32.xlu0 %v2669
    %v2671 = vpop.xlane.xlu0 %2670
    %v2672 = vmul.f32 %v2668, %v184
    %v2673 = vmul.f32 %v2671, %v184
    %v2674 = vrsqrt.pop %v2672
    %v2675 = vmul.f32 %v2672, %v2674
    %vm2676 = vcmp.eq.f32.partialorder %v2672, inf
    %v2677 = vsel %vm2676, %v2672, %v2675
    %vm2678 = vcmp.eq.f32.partialorder %v2672, 0.0
    %v2679 = vand.u32 %v2672, 2147483648
    %v2680 = vsel %vm2678, %v2679, %v2677
    %v2681 = vrsqrt.pop %v2673
    %v2682 = vmul.f32 %v2673, %v2681
    %vm2683 = vcmp.eq.f32.partialorder %v2673, inf
    %v2684 = vsel %vm2683, %v2673, %v2682
    %vm2685 = vcmp.eq.f32.partialorder %v2673, 0.0
    %v2686 = vand.u32 %v2673, 2147483648
    %v2687 = vsel %vm2685, %v2686, %v2684
    %v2688 = vadd.f32 %v2680, 1e-06
    %v2689 = vadd.f32 %v2687, 1e-06
    %v2690 = vrcp.pop %v2688
    %v2691 = vrcp.pop %v2689
    %v2692 = vlaneseq
    %v2693 = vshrl.u32 %v2692, 7
    %v2694 = vsub.s32 0, %v2693
    %v2695 = vrot.slane %v2652, %v2694
    %v2696 = vmul.f32 %v2695, %v2662
    %v2697 = vmul.f32 %v2695, %v2663
    %v2698 = vmul.f32 %v2696, %v2690
    %v2699 = vmul.f32 %v2697, %v2691
    %v2700 = vlaneseq
    %v2701 = vshrl.u32 %v2700, 7
    %v2702 = vsub.s32 0, %v2701
    %v2703 = vrot.slane %v2653, %v2702
    %v2704 = vadd.f32 %v2698, %v2703
    %v2705 = vadd.f32 %v2699, %v2703
    %2706 = vst.msk [vmem:[#allocation2] sm:$0xff] %vm81, %v2704
    %2707 = vst.msk [vmem:[#allocation2 + $0x8] sm:$0xff] %vm81, %v2705
    // Predicated region
    $region18: #{encoder_forward.1} parent=1 // pred_check
      _
    $region19: #{encoder_forward.1} parent=1 // pred_check_branch
      %2709 = sbr.rel (0) target = $region21
    $region20: #{encoder_forward.1} parent=1 // pred_region
      %s2711 = ssub.s32 256, 256
      %2712 = vsyncadd [#allocation3], %s2711
      %s2713 = sshll.u32 [#allocation2], 4
      %s2714 = int_to_ptr.vmem [resolvable:$true] %s2713
      %2719 = dma.vmem_to_hbm [thread:$0]  %s2714, 256, %s4, [#allocation3], 128, 128, 8
    $region21: #{encoder_forward.1} parent=1 // pred_fallthru
      _
    // Predicated region
    $region22: #{encoder_forward.1} parent=1 // pred_check
      _
    $region23: #{encoder_forward.1} parent=1 // pred_check_branch
      %2721 = sbr.rel (0) target = $region25
    $region24: #{encoder_forward.1} parent=1 // pred_region
      %2722 = dma.done [#allocation3], 256
    $region25: #{encoder_forward.1} parent=1 // pred_fallthru
      _
    %2723 = vsyncpa [#allocation3], 1

</llo_original>
